<compile_context>
chip_gen: v5e
topology: v5e:2x2
jax: 0.10.0
libtpu: 0.0.40
codegen_flags: <defaults>
</compile_context>

<pallas_src>
import functools

import jax
import jax.numpy as jnp
from jax.experimental import pallas as pl
from jax.experimental.pallas import tpu as pltpu

# Per-block element budget: 1M elems = 4 MiB f32 in + 4 MiB i32 out per block.
# Double-buffered footprint = 16 MiB < the 32 MiB scoped-VMEM limit requested
# below, with headroom for compiler scratch on every TPU generation.
_TILE_ELEMS = 1 << 20
_VMEM_LIMIT_BYTES = 32 << 20

# Below this element count, launch + single-grid-step overhead dominates;
# XLA's fused elementwise path is strictly faster than a pallas_call.
_SMALL_ELEMS = 64 * 1024


def _float2int_kernel(x_ref, o_ref, *, scale):
    # Compute in float32; jnp.round is half-to-even, matching torch.round.
    x = x_ref[...].astype(jnp.float32)
    o_ref[...] = jnp.round(x * scale).astype(jnp.int32)


def _xla_fallback(x, scale):
    return jnp.round(x.astype(jnp.float32) * scale).astype(jnp.int32)


def float2int(x, bit_depth=8):
    """round(x * (2**bit_depth - 1)) -> int32, matching Float2Int.forward."""
    scale = float(2 ** bit_depth - 1)
    orig_shape = x.shape
    n = x.size

    # Tiny inputs: pure launch overhead -> plain fused XLA elementwise.
    if n == 0 or n < _SMALL_ELEMS:
        return _xla_fallback(x, scale)

    # Large but lane-unaligned inputs: padding + re-slicing would roughly
    # triple HBM traffic, so hand them to XLA (also bandwidth-bound, no copies).
    # TODO(synk): aligned-bulk Pallas + tiny-tail path if this case ever matters.
    if n % 128 != 0:
        return _xla_fallback(x, scale)

    # Zero-copy reshape to a lane-dense 2-D slab: widest lane width (multiple
    # of 128) dividing n -> no pad, no trailing slice, unmasked full-width vst.
    lane = next(l for l in (2048, 1024, 512, 256, 128) if n % l == 0)
    rows = n // lane
    x2d = x.reshape(rows, lane)

    # Rows per grid step: a multiple of 8, or the full extent for small arrays.
    tile_rows = max(_TILE_ELEMS // lane, 8)
    if tile_rows >= rows:
        tile_rows = rows
    grid = (pl.cdiv(rows, tile_rows),)

    out2d = pl.pallas_call(
        functools.partial(_float2int_kernel, scale=scale),
        out_shape=jax.ShapeDtypeStruct((rows, lane), jnp.int32),
        grid=grid,
        in_specs=[pl.BlockSpec((tile_rows, lane), lambda i: (i, 0))],
        out_specs=pl.BlockSpec((tile_rows, lane), lambda i: (i, 0)),
        compiler_params=pltpu.CompilerParams(
            # Carry-free grid axis.  "parallel" is sufficient; switch to
            # (pltpu.CORE_PARALLEL,) on v7x if an xprof trace shows only one
            # TensorCore streaming.
            dimension_semantics=("parallel",),
            vmem_limit_bytes=_VMEM_LIMIT_BYTES,
        ),
    )(x2d)

    # Zero-copy reshape back (rows * lane == n exactly; nothing to slice off).
    return out2d.reshape(orig_shape)


if __name__ == "__main__":
    key = jax.random.PRNGKey(0)
    k1, k2, k3 = jax.random.split(key, 3)
    scale = float(2 ** 8 - 1)

    # 1) Small NCHW input, typical of the module's image-tensor usage
    #    (exercises the tiny-input short-circuit path).
    x_small = jax.random.uniform(k1, (2, 4, 16, 16), dtype=jnp.float32)
    y_small = jax.block_until_ready(float2int(x_small, bit_depth=8))
    ref_small = jnp.round(x_small * scale).astype(jnp.int32)
    assert y_small.dtype == jnp.int32 and y_small.shape == x_small.shape
    assert bool(jnp.all(y_small == ref_small))

    # 2) Larger lane-aligned input that exercises the Pallas path
    #    (grid > 1 plus a masked partial last block, no pad/slice copies).
    x_big = jax.random.uniform(k2, (9, 128, 1024), dtype=jnp.float32) * 2.0 - 1.0
    y_big = jax.block_until_ready(float2int(x_big, bit_depth=8))
    ref_big = jnp.round(x_big * scale).astype(jnp.int32)
    assert y_big.dtype == jnp.int32 and y_big.shape == x_big.shape
    assert bool(jnp.all(y_big == ref_big))

    # 3) Ragged small shape (unaligned fallback path).
    x_rag = jax.random.uniform(k3, (3, 5, 7), dtype=jnp.float32) * 2.0 - 1.0
    y_rag = jax.block_until_ready(float2int(x_rag, bit_depth=8))
    ref_rag = jnp.round(x_rag * scale).astype(jnp.int32)
    assert y_rag.shape == x_rag.shape
    assert bool(jnp.all(y_rag == ref_rag))

    print("KERNEL_OK")
</pallas_src>

<mosaic_0001>
module attributes {stable_mosaic.version = 11 : i64} {
  func.func @_float2int_kernel(%arg0: i32, %arg1: memref<512x2048xf32, #tpu.memory_space<vmem>>, %arg2: memref<512x2048xi32, #tpu.memory_space<vmem>>) attributes {dimension_semantics = [#tpu.dimension_semantics<parallel>], iteration_bounds = array<i64: 2>, scalar_prefetch = 0 : i64, scratch_operands = 0 : i64, tpu.core_type = #tpu.core_type<tc>, window_params = [{transform_indices = @transform_0, window_bounds = array<i64: 512, 2048>}, {transform_indices = @transform_1, window_bounds = array<i64: 512, 2048>}]} {
    %c0 = arith.constant 0 : index
    %c0_0 = arith.constant 0 : index
    %0 = vector.load %arg1[%c0, %c0_0] : memref<512x2048xf32, #tpu.memory_space<vmem>>, vector<512x2048xf32>
    %cst = arith.constant 2.550000e+02 : f32
    %1 = vector.broadcast %cst : f32 to vector<512x2048xf32>
    %2 = arith.mulf %0, %1 : vector<512x2048xf32>
    %3 = math.roundeven %2 : vector<512x2048xf32>
    %4 = arith.fptosi %3 : vector<512x2048xf32> to vector<512x2048xi32>
    %c0_1 = arith.constant 0 : index
    %c0_2 = arith.constant 0 : index
    %5 = vector.load %arg2[%c0_1, %c0_2] : memref<512x2048xi32, #tpu.memory_space<vmem>>, vector<512x2048xi32>
    tpu.vector_store %arg2[%c0_1, %c0_2], %4 {strides = array<i32>} : memref<512x2048xi32, #tpu.memory_space<vmem>>, vector<512x2048xi32>,
    return
  }
  func.func @transform_0(%arg0: i32) -> (i32, i32) {
    %c0_i32 = arith.constant 0 : i32
    %c0_i32_0 = arith.constant 0 : i32
    return %arg0, %c0_i32 : i32, i32
  }
  func.func @transform_1(%arg0: i32) -> (i32, i32) {
    %c0_i32 = arith.constant 0 : i32
    %c0_i32_0 = arith.constant 0 : i32
    return %arg0, %c0_i32 : i32, i32
  }
}

</mosaic_0001>

<llo_original>
// kernel: tpu_custom_call.1
$region0: #{tpu_custom_call.1}
  #allocation0 [shape = 'u32[]', space=smem, size = 0x4, offset = 0x4, fixed_abs, tag = 'smem constant byte address 0x4 - core index']
  #allocation1 [shape = 'u32[72,128]{1,0:T(1,128)}', space=vmem, size = 0x9000, scoped, tag = 'internal scratch']
  %s0 = inlined_call_operand.hbm [shape: f32[576,2048], index: 0, kind: input, shape index: {}]
  %s1 = inlined_call_operand.hbm [shape: s32[576,2048], index: 1, kind: output, shape index: {}]
  %s2 = sld [smem:[#allocation0]]
  $region41: #{tpu_custom_call.1} parent=0
    _
  %s4 = ssub.s32 1, %s2
  %s5 = scalar_select 0, %s4, %s2
  $region1: #{tpu_custom_call.1} parent=0
    #allocation2 [shape = 'u8[8388608]{0}', space=vmem, size = 0x800000, scoped, tag = 'input window, operand 0']
    #allocation3 [shape = 's32[2]{0}', space=sflag, size = 0x8, scoped, tag = 'scoped memory for tpu_custom_call.1']
    #allocation4 [shape = 's32[2]{0}', space=sflag, size = 0x8, scoped, tag = 'scoped memory for tpu_custom_call.1']
    #allocation5 [shape = 'u8[8388608]{0}', space=vmem, size = 0x800000, scoped, tag = 'output window, operand 0']
    %6 = vsyncpa [#allocation3], 0
    %s7 = scalar_lea.sflag [#allocation3], 1
    %8 = vsyncpa %s7, 0
    %9 = vsyncpa [#allocation4], 0
    %s10 = scalar_lea.sflag [#allocation4], 1
    %11 = vsyncpa %s10, 0
    loop: start=0, step=1, limit=4
    $region2: #{tpu_custom_call.1} parent=1 // loop_pre_header
      _
    $region3: #{tpu_custom_call.1} parent=1 // loop_header
      %s13 = sphi 0, %s17
      %p14 = scmp.ge.s32.totalorder %s13, 4
      %s23 = sphi 0, %s25
      %s26 = sphi 0, %s23
      %s27 = sphi 0, %s26
      %s43 = sphi 0, %s27
      %s49 = sphi 0, %s51
      %s52 = sphi 0, %s49
      %s53 = sphi 0, %s52
      %s69 = sphi 0, %s53
    $region4: #{tpu_custom_call.1} parent=1 // loop_header_branch
      %16 = sbr.rel (%p14) target = $region8
    $region5: #{tpu_custom_call.1} parent=1 // loop_body
      %s18 = ssub.s32 %s13, 1
      %s19 = ssub.s32 %s13, 2
      %s20 = sadd.s32 %s13, 1
      %s21 = ssub.s32 %s13, %s20
      %p22 = scmp.eq.s32.totalorder %s21, 0
      %s24 = sadd.s32 %s23, 1
      %s25 = scalar_select %p22, %s23, %s24
      %p28 = pneg %p22
      %p29 = scmp.eq.s32.totalorder %s13, 1
      %p30 = por %p28, %p29
      %p31 = scmp.ne.s32.totalorder %s23, %s26
      %p32 = scmp.eq.s32.totalorder %s13, 0
      %p33 = por %p31, %p32
      %p34 = scmp.ne.s32.totalorder %s23, %s26
      %p35 = scmp.eq.s32.totalorder %s18, 1
      %p36 = por %p34, %p35
      %p37 = scmp.ne.s32.totalorder %s26, %s27
      %p38 = scmp.eq.s32.totalorder %s18, 0
      %p39 = por %p37, %p38
      %p40 = scmp.ne.s32.totalorder %s26, %s27
      %p41 = scmp.eq.s32.totalorder %s19, 1
      %p42 = por %p40, %p41
      %p44 = scmp.ne.s32.totalorder %s27, %s43
      %p45 = scmp.eq.s32.totalorder %s19, 0
      %p46 = por %p44, %p45
      %s47 = ssub.s32 %s13, %s20
      %p48 = scmp.eq.s32.totalorder %s47, 0
      %s50 = sadd.s32 %s49, 1
      %s51 = scalar_select %p48, %s49, %s50
      %p54 = pneg %p48
      %p55 = scmp.eq.s32.totalorder %s13, 1
      %p56 = por %p54, %p55
      %p57 = scmp.ne.s32.totalorder %s49, %s52
      %p58 = scmp.eq.s32.totalorder %s13, 0
      %p59 = por %p57, %p58
      %p60 = scmp.ne.s32.totalorder %s49, %s52
      %p61 = scmp.eq.s32.totalorder %s18, 1
      %p62 = por %p60, %p61
      %p63 = scmp.ne.s32.totalorder %s52, %s53
      %p64 = scmp.eq.s32.totalorder %s18, 0
      %p65 = por %p63, %p64
      %p66 = scmp.ne.s32.totalorder %s52, %s53
      %p67 = scmp.eq.s32.totalorder %s19, 1
      %p68 = por %p66, %p67
      %p70 = scmp.ne.s32.totalorder %s53, %s69
      %p71 = scmp.eq.s32.totalorder %s19, 0
      %p72 = por %p70, %p71
      %p73 = scmp.le.s32.totalorder 1, %s13
      %p74 = scmp.lt.s32.totalorder %s13, 3
      %p75 = pnand %p73, %p74
      %p76 = pneg %p75
      // Predicated region
      $region9: #{tpu_custom_call.1} parent=5 // pred_check
        _
      $region10: #{tpu_custom_call.1} parent=5 // pred_check_branch
        %78 = sbr.rel (%p75) target = $region12
      $region11: #{tpu_custom_call.1} parent=5 // pred_region
        %s79 = ssub.s32 %s13, 1
      $region12: #{tpu_custom_call.1} parent=5 // pred_fallthru
        _
      %p80 = scmp.lt.s32.totalorder %s13, 2
      // Predicated region
      $region13: #{tpu_custom_call.1} parent=5 // pred_check
        %p81 = pneg %p80
      $region14: #{tpu_custom_call.1} parent=5 // pred_check_branch
        %83 = sbr.rel (%p81) target = $region16
      $region15: #{tpu_custom_call.1} parent=5 // pred_region
        // Predicated region
        $region17: #{tpu_custom_call.1} parent=15 // pred_check
          %p84 = pneg %p33
        $region18: #{tpu_custom_call.1} parent=15 // pred_check_branch
          %86 = sbr.rel (%p84) target = $region20
        $region19: #{tpu_custom_call.1} parent=15 // pred_region
          %s87 = sand.u32 %s23, 1
          %s88 = scalar_lea.sflag [#allocation3], %s87
          %s89 = sand.u32 %s23, 1
          %s90 = smul.addr %s89, 8192
          %s91 = scalar_lea.vmem [#allocation2], %s90
          %s92 = smul.u32 64, %s13
          %s93 = ssub.s32 72, %s92
          %p94 = scmp.lt.s32.totalorder %s93, 64
          %s95 = scalar_select %p94, %s93, 64
          %s96 = smul.u32 8, %s95
          %s97 = smul.u32 %s96, 16
          %s98 = ssub.s32 8192, %s97
          %s99 = sshll.u32 %s98, 4
          %100 = vsyncadd %s88, %s99
          %p101 = scmp.ne.s32.totalorder 0, %s97
          %s102 = smul.addr %s92, 16
          %s103 = smul.addr %s102, 8
          %s104 = scalar_lea.hbm %s0, %s103
          %s105 = smul.u32 128, %s95
          %s106 = sshll.u32 %s104, 4
          %s107 = int_to_ptr.hbm [resolvable:$true] %s106
          %s108 = sshll.u32 %s91, 4
          %s109 = int_to_ptr.vmem [resolvable:$true] %s108
          %s110 = sshll.u32 %s105, 4
          %114 = dma.hbm_to_vmem [thread:$0]  (%p101), %s107, %s110, %s109, %s88, 2048, 2048, 128
        $region20: #{tpu_custom_call.1} parent=15 // pred_fallthru
          _
      $region16: #{tpu_custom_call.1} parent=5 // pred_fallthru
        _
      %p115 = scmp.le.s32.totalorder 1, %s13
      %p116 = scmp.lt.s32.totalorder %s13, 3
      %p117 = pnand %p115, %p116
      %p118 = pneg %p117
      // Predicated region
      $region21: #{tpu_custom_call.1} parent=5 // pred_check
        _
      $region22: #{tpu_custom_call.1} parent=5 // pred_check_branch
        %120 = sbr.rel (%p117) target = $region24
      $region23: #{tpu_custom_call.1} parent=5 // pred_region
        %s121 = ssub.s32 %s13, 1
        %s122 = sand.u32 %s26, 1
        %s123 = scalar_lea.sflag [#allocation3], %s122
        %s124 = sand.u32 %s26, 1
        %s125 = smul.addr %s124, 8192
        %s126 = scalar_lea.vmem [#allocation2], %s125
        // Predicated region
        $region25: #{tpu_custom_call.1} parent=23 // pred_check
          %p127 = pneg %p39
        $region26: #{tpu_custom_call.1} parent=23 // pred_check_branch
          %129 = sbr.rel (%p127) target = $region28
        $region27: #{tpu_custom_call.1} parent=23 // pred_region
          %131 = dma.done %s123, 131072
        $region28: #{tpu_custom_call.1} parent=23 // pred_fallthru
          _
        %s132 = sand.u32 %s26, 1
        %s133 = scalar_lea.sflag [#allocation3], %s132
        %s134 = sand.u32 %s26, 1
        %s135 = smul.addr %s134, 8192
        %s136 = scalar_lea.vmem [#allocation2], %s135
        %p137 = pneg %p39
        %p138 = pneg %p36
        %p139 = pneg %p65
        %p140 = pneg %p62
        %s141 = sand.u32 %s52, 1
        %s142 = scalar_lea.sflag [#allocation4], %s141
        %s143 = sand.u32 %s52, 1
        %s144 = smul.addr %s143, 8192
        %s145 = scalar_lea.vmem [#allocation5], %s144
        %s146 = smul.u32 64, %s18
        %s147 = ssub.s32 72, %s146
        %p148 = scmp.lt.s32.totalorder %s147, 64
        %s149 = scalar_select %p148, %s147, 64
        %s150 = smul.u32 8, %s149
        %s151 = smul.u32 %s150, 16
        %s152 = smul.u32 64, %s18
        %s153 = ssub.s32 72, %s152
        %p154 = scmp.lt.s32.totalorder %s153, 64
        %s155 = scalar_select %p154, %s153, 64
        %s156 = smul.u32 8, %s155
        %s157 = smul.u32 %s156, 16
        %v158 = vld [vmem:[%s126] sm:$0xff]
        %v159 = vld [vmem:[%s126 + $0x8] sm:$0xff]
        %v160 = vld [vmem:[%s126 + $0x10] sm:$0xff]
        %v161 = vld [vmem:[%s126 + $0x18] sm:$0xff]
        %v162 = vld [vmem:[%s126 + $0x20] sm:$0xff]
        %v163 = vld [vmem:[%s126 + $0x28] sm:$0xff]
        %v164 = vld [vmem:[%s126 + $0x30] sm:$0xff]
        %v165 = vld [vmem:[%s126 + $0x38] sm:$0xff]
        %v166 = vld [vmem:[%s126 + $0x40] sm:$0xff]
        %v167 = vld [vmem:[%s126 + $0x48] sm:$0xff]
        %v168 = vld [vmem:[%s126 + $0x50] sm:$0xff]
        %v169 = vld [vmem:[%s126 + $0x58] sm:$0xff]
        %v170 = vld [vmem:[%s126 + $0x60] sm:$0xff]
        %v171 = vld [vmem:[%s126 + $0x68] sm:$0xff]
        %v172 = vld [vmem:[%s126 + $0x70] sm:$0xff]
        %v173 = vld [vmem:[%s126 + $0x78] sm:$0xff]
        %v174 = vld [vmem:[%s126 + $0x80] sm:$0xff]
        %v175 = vld [vmem:[%s126 + $0x88] sm:$0xff]
        %v176 = vld [vmem:[%s126 + $0x90] sm:$0xff]
        %v177 = vld [vmem:[%s126 + $0x98] sm:$0xff]
        %v178 = vld [vmem:[%s126 + $0xa0] sm:$0xff]
        %v179 = vld [vmem:[%s126 + $0xa8] sm:$0xff]
        %v180 = vld [vmem:[%s126 + $0xb0] sm:$0xff]
        %v181 = vld [vmem:[%s126 + $0xb8] sm:$0xff]
        %v182 = vld [vmem:[%s126 + $0xc0] sm:$0xff]
        %v183 = vld [vmem:[%s126 + $0xc8] sm:$0xff]
        %v184 = vld [vmem:[%s126 + $0xd0] sm:$0xff]
        %v185 = vld [vmem:[%s126 + $0xd8] sm:$0xff]
        %v186 = vld [vmem:[%s126 + $0xe0] sm:$0xff]
        %v187 = vld [vmem:[%s126 + $0xe8] sm:$0xff]
        %v188 = vld [vmem:[%s126 + $0xf0] sm:$0xff]
        %v189 = vld [vmem:[%s126 + $0xf8] sm:$0xff]
        %v190 = vld [vmem:[%s126 + $0x100] sm:$0xff]
        %v191 = vld [vmem:[%s126 + $0x108] sm:$0xff]
        %v192 = vld [vmem:[%s126 + $0x110] sm:$0xff]
        %v193 = vld [vmem:[%s126 + $0x118] sm:$0xff]
        %v194 = vld [vmem:[%s126 + $0x120] sm:$0xff]
        %v195 = vld [vmem:[%s126 + $0x128] sm:$0xff]
        %v196 = vld [vmem:[%s126 + $0x130] sm:$0xff]
        %v197 = vld [vmem:[%s126 + $0x138] sm:$0xff]
        %v198 = vld [vmem:[%s126 + $0x140] sm:$0xff]
        %v199 = vld [vmem:[%s126 + $0x148] sm:$0xff]
        %v200 = vld [vmem:[%s126 + $0x150] sm:$0xff]
        %v201 = vld [vmem:[%s126 + $0x158] sm:$0xff]
        %v202 = vld [vmem:[%s126 + $0x160] sm:$0xff]
        %v203 = vld [vmem:[%s126 + $0x168] sm:$0xff]
        %v204 = vld [vmem:[%s126 + $0x170] sm:$0xff]
        %v205 = vld [vmem:[%s126 + $0x178] sm:$0xff]
        %v206 = vld [vmem:[%s126 + $0x180] sm:$0xff]
        %v207 = vld [vmem:[%s126 + $0x188] sm:$0xff]
        %v208 = vld [vmem:[%s126 + $0x190] sm:$0xff]
        %v209 = vld [vmem:[%s126 + $0x198] sm:$0xff]
        %v210 = vld [vmem:[%s126 + $0x1a0] sm:$0xff]
        %v211 = vld [vmem:[%s126 + $0x1a8] sm:$0xff]
        %v212 = vld [vmem:[%s126 + $0x1b0] sm:$0xff]
        %v213 = vld [vmem:[%s126 + $0x1b8] sm:$0xff]
        %v214 = vld [vmem:[%s126 + $0x1c0] sm:$0xff]
        %v215 = vld [vmem:[%s126 + $0x1c8] sm:$0xff]
        %v216 = vld [vmem:[%s126 + $0x1d0] sm:$0xff]
        %v217 = vld [vmem:[%s126 + $0x1d8] sm:$0xff]
        %v218 = vld [vmem:[%s126 + $0x1e0] sm:$0xff]
        %v219 = vld [vmem:[%s126 + $0x1e8] sm:$0xff]
        %v220 = vld [vmem:[%s126 + $0x1f0] sm:$0xff]
        %v221 = vld [vmem:[%s126 + $0x1f8] sm:$0xff]
        %v222 = vld [vmem:[%s126 + $0x200] sm:$0xff]
        %v223 = vld [vmem:[%s126 + $0x208] sm:$0xff]
        %v224 = vld [vmem:[%s126 + $0x210] sm:$0xff]
        %v225 = vld [vmem:[%s126 + $0x218] sm:$0xff]
        %v226 = vld [vmem:[%s126 + $0x220] sm:$0xff]
        %v227 = vld [vmem:[%s126 + $0x228] sm:$0xff]
        %v228 = vld [vmem:[%s126 + $0x230] sm:$0xff]
        %v229 = vld [vmem:[%s126 + $0x238] sm:$0xff]
        %v230 = vld [vmem:[%s126 + $0x240] sm:$0xff]
        %v231 = vld [vmem:[%s126 + $0x248] sm:$0xff]
        %v232 = vld [vmem:[%s126 + $0x250] sm:$0xff]
        %v233 = vld [vmem:[%s126 + $0x258] sm:$0xff]
        %v234 = vld [vmem:[%s126 + $0x260] sm:$0xff]
        %v235 = vld [vmem:[%s126 + $0x268] sm:$0xff]
        %v236 = vld [vmem:[%s126 + $0x270] sm:$0xff]
        %v237 = vld [vmem:[%s126 + $0x278] sm:$0xff]
        %v238 = vld [vmem:[%s126 + $0x280] sm:$0xff]
        %v239 = vld [vmem:[%s126 + $0x288] sm:$0xff]
        %v240 = vld [vmem:[%s126 + $0x290] sm:$0xff]
        %v241 = vld [vmem:[%s126 + $0x298] sm:$0xff]
        %v242 = vld [vmem:[%s126 + $0x2a0] sm:$0xff]
        %v243 = vld [vmem:[%s126 + $0x2a8] sm:$0xff]
        %v244 = vld [vmem:[%s126 + $0x2b0] sm:$0xff]
        %v245 = vld [vmem:[%s126 + $0x2b8] sm:$0xff]
        %v246 = vld [vmem:[%s126 + $0x2c0] sm:$0xff]
        %v247 = vld [vmem:[%s126 + $0x2c8] sm:$0xff]
        %v248 = vld [vmem:[%s126 + $0x2d0] sm:$0xff]
        %v249 = vld [vmem:[%s126 + $0x2d8] sm:$0xff]
        %v250 = vld [vmem:[%s126 + $0x2e0] sm:$0xff]
        %v251 = vld [vmem:[%s126 + $0x2e8] sm:$0xff]
        %v252 = vld [vmem:[%s126 + $0x2f0] sm:$0xff]
        %v253 = vld [vmem:[%s126 + $0x2f8] sm:$0xff]
        %v254 = vld [vmem:[%s126 + $0x300] sm:$0xff]
        %v255 = vld [vmem:[%s126 + $0x308] sm:$0xff]
        %v256 = vld [vmem:[%s126 + $0x310] sm:$0xff]
        %v257 = vld [vmem:[%s126 + $0x318] sm:$0xff]
        %v258 = vld [vmem:[%s126 + $0x320] sm:$0xff]
        %v259 = vld [vmem:[%s126 + $0x328] sm:$0xff]
        %v260 = vld [vmem:[%s126 + $0x330] sm:$0xff]
        %v261 = vld [vmem:[%s126 + $0x338] sm:$0xff]
        %v262 = vld [vmem:[%s126 + $0x340] sm:$0xff]
        %v263 = vld [vmem:[%s126 + $0x348] sm:$0xff]
        %v264 = vld [vmem:[%s126 + $0x350] sm:$0xff]
        %v265 = vld [vmem:[%s126 + $0x358] sm:$0xff]
        %v266 = vld [vmem:[%s126 + $0x360] sm:$0xff]
        %v267 = vld [vmem:[%s126 + $0x368] sm:$0xff]
        %v268 = vld [vmem:[%s126 + $0x370] sm:$0xff]
        %v269 = vld [vmem:[%s126 + $0x378] sm:$0xff]
        %v270 = vld [vmem:[%s126 + $0x380] sm:$0xff]
        %v271 = vld [vmem:[%s126 + $0x388] sm:$0xff]
        %v272 = vld [vmem:[%s126 + $0x390] sm:$0xff]
        %v273 = vld [vmem:[%s126 + $0x398] sm:$0xff]
        %v274 = vld [vmem:[%s126 + $0x3a0] sm:$0xff]
        %v275 = vld [vmem:[%s126 + $0x3a8] sm:$0xff]
        %v276 = vld [vmem:[%s126 + $0x3b0] sm:$0xff]
        %v277 = vld [vmem:[%s126 + $0x3b8] sm:$0xff]
        %v278 = vld [vmem:[%s126 + $0x3c0] sm:$0xff]
        %v279 = vld [vmem:[%s126 + $0x3c8] sm:$0xff]
        %v280 = vld [vmem:[%s126 + $0x3d0] sm:$0xff]
        %v281 = vld [vmem:[%s126 + $0x3d8] sm:$0xff]
        %v282 = vld [vmem:[%s126 + $0x3e0] sm:$0xff]
        %v283 = vld [vmem:[%s126 + $0x3e8] sm:$0xff]
        %v284 = vld [vmem:[%s126 + $0x3f0] sm:$0xff]
        %v285 = vld [vmem:[%s126 + $0x3f8] sm:$0xff]
        %v286 = vld [vmem:[%s126 + $0x400] sm:$0xff]
        %v287 = vld [vmem:[%s126 + $0x408] sm:$0xff]
        %v288 = vld [vmem:[%s126 + $0x410] sm:$0xff]
        %v289 = vld [vmem:[%s126 + $0x418] sm:$0xff]
        %v290 = vld [vmem:[%s126 + $0x420] sm:$0xff]
        %v291 = vld [vmem:[%s126 + $0x428] sm:$0xff]
        %v292 = vld [vmem:[%s126 + $0x430] sm:$0xff]
        %v293 = vld [vmem:[%s126 + $0x438] sm:$0xff]
        %v294 = vld [vmem:[%s126 + $0x440] sm:$0xff]
        %v295 = vld [vmem:[%s126 + $0x448] sm:$0xff]
        %v296 = vld [vmem:[%s126 + $0x450] sm:$0xff]
        %v297 = vld [vmem:[%s126 + $0x458] sm:$0xff]
        %v298 = vld [vmem:[%s126 + $0x460] sm:$0xff]
        %v299 = vld [vmem:[%s126 + $0x468] sm:$0xff]
        %v300 = vld [vmem:[%s126 + $0x470] sm:$0xff]
        %v301 = vld [vmem:[%s126 + $0x478] sm:$0xff]
        %v302 = vld [vmem:[%s126 + $0x480] sm:$0xff]
        %v303 = vld [vmem:[%s126 + $0x488] sm:$0xff]
        %v304 = vld [vmem:[%s126 + $0x490] sm:$0xff]
        %v305 = vld [vmem:[%s126 + $0x498] sm:$0xff]
        %v306 = vld [vmem:[%s126 + $0x4a0] sm:$0xff]
        %v307 = vld [vmem:[%s126 + $0x4a8] sm:$0xff]
        %v308 = vld [vmem:[%s126 + $0x4b0] sm:$0xff]
        %v309 = vld [vmem:[%s126 + $0x4b8] sm:$0xff]
        %v310 = vld [vmem:[%s126 + $0x4c0] sm:$0xff]
        %v311 = vld [vmem:[%s126 + $0x4c8] sm:$0xff]
        %v312 = vld [vmem:[%s126 + $0x4d0] sm:$0xff]
        %v313 = vld [vmem:[%s126 + $0x4d8] sm:$0xff]
        %v314 = vld [vmem:[%s126 + $0x4e0] sm:$0xff]
        %v315 = vld [vmem:[%s126 + $0x4e8] sm:$0xff]
        %v316 = vld [vmem:[%s126 + $0x4f0] sm:$0xff]
        %v317 = vld [vmem:[%s126 + $0x4f8] sm:$0xff]
        %v318 = vld [vmem:[%s126 + $0x500] sm:$0xff]
        %v319 = vld [vmem:[%s126 + $0x508] sm:$0xff]
        %v320 = vld [vmem:[%s126 + $0x510] sm:$0xff]
        %v321 = vld [vmem:[%s126 + $0x518] sm:$0xff]
        %v322 = vld [vmem:[%s126 + $0x520] sm:$0xff]
        %v323 = vld [vmem:[%s126 + $0x528] sm:$0xff]
        %v324 = vld [vmem:[%s126 + $0x530] sm:$0xff]
        %v325 = vld [vmem:[%s126 + $0x538] sm:$0xff]
        %v326 = vld [vmem:[%s126 + $0x540] sm:$0xff]
        %v327 = vld [vmem:[%s126 + $0x548] sm:$0xff]
        %v328 = vld [vmem:[%s126 + $0x550] sm:$0xff]
        %v329 = vld [vmem:[%s126 + $0x558] sm:$0xff]
        %v330 = vld [vmem:[%s126 + $0x560] sm:$0xff]
        %v331 = vld [vmem:[%s126 + $0x568] sm:$0xff]
        %v332 = vld [vmem:[%s126 + $0x570] sm:$0xff]
        %v333 = vld [vmem:[%s126 + $0x578] sm:$0xff]
        %v334 = vld [vmem:[%s126 + $0x580] sm:$0xff]
        %v335 = vld [vmem:[%s126 + $0x588] sm:$0xff]
        %v336 = vld [vmem:[%s126 + $0x590] sm:$0xff]
        %v337 = vld [vmem:[%s126 + $0x598] sm:$0xff]
        %v338 = vld [vmem:[%s126 + $0x5a0] sm:$0xff]
        %v339 = vld [vmem:[%s126 + $0x5a8] sm:$0xff]
        %v340 = vld [vmem:[%s126 + $0x5b0] sm:$0xff]
        %v341 = vld [vmem:[%s126 + $0x5b8] sm:$0xff]
        %v342 = vld [vmem:[%s126 + $0x5c0] sm:$0xff]
        %v343 = vld [vmem:[%s126 + $0x5c8] sm:$0xff]
        %v344 = vld [vmem:[%s126 + $0x5d0] sm:$0xff]
        %v345 = vld [vmem:[%s126 + $0x5d8] sm:$0xff]
        %v346 = vld [vmem:[%s126 + $0x5e0] sm:$0xff]
        %v347 = vld [vmem:[%s126 + $0x5e8] sm:$0xff]
        %v348 = vld [vmem:[%s126 + $0x5f0] sm:$0xff]
        %v349 = vld [vmem:[%s126 + $0x5f8] sm:$0xff]
        %v350 = vld [vmem:[%s126 + $0x600] sm:$0xff]
        %v351 = vld [vmem:[%s126 + $0x608] sm:$0xff]
        %v352 = vld [vmem:[%s126 + $0x610] sm:$0xff]
        %v353 = vld [vmem:[%s126 + $0x618] sm:$0xff]
        %v354 = vld [vmem:[%s126 + $0x620] sm:$0xff]
        %v355 = vld [vmem:[%s126 + $0x628] sm:$0xff]
        %v356 = vld [vmem:[%s126 + $0x630] sm:$0xff]
        %v357 = vld [vmem:[%s126 + $0x638] sm:$0xff]
        %v358 = vld [vmem:[%s126 + $0x640] sm:$0xff]
        %v359 = vld [vmem:[%s126 + $0x648] sm:$0xff]
        %v360 = vld [vmem:[%s126 + $0x650] sm:$0xff]
        %v361 = vld [vmem:[%s126 + $0x658] sm:$0xff]
        %v362 = vld [vmem:[%s126 + $0x660] sm:$0xff]
        %v363 = vld [vmem:[%s126 + $0x668] sm:$0xff]
        %v364 = vld [vmem:[%s126 + $0x670] sm:$0xff]
        %v365 = vld [vmem:[%s126 + $0x678] sm:$0xff]
        %v366 = vld [vmem:[%s126 + $0x680] sm:$0xff]
        %v367 = vld [vmem:[%s126 + $0x688] sm:$0xff]
        %v368 = vld [vmem:[%s126 + $0x690] sm:$0xff]
        %v369 = vld [vmem:[%s126 + $0x698] sm:$0xff]
        %v370 = vld [vmem:[%s126 + $0x6a0] sm:$0xff]
        %v371 = vld [vmem:[%s126 + $0x6a8] sm:$0xff]
        %v372 = vld [vmem:[%s126 + $0x6b0] sm:$0xff]
        %v373 = vld [vmem:[%s126 + $0x6b8] sm:$0xff]
        %v374 = vld [vmem:[%s126 + $0x6c0] sm:$0xff]
        %v375 = vld [vmem:[%s126 + $0x6c8] sm:$0xff]
        %v376 = vld [vmem:[%s126 + $0x6d0] sm:$0xff]
        %v377 = vld [vmem:[%s126 + $0x6d8] sm:$0xff]
        %v378 = vld [vmem:[%s126 + $0x6e0] sm:$0xff]
        %v379 = vld [vmem:[%s126 + $0x6e8] sm:$0xff]
        %v380 = vld [vmem:[%s126 + $0x6f0] sm:$0xff]
        %v381 = vld [vmem:[%s126 + $0x6f8] sm:$0xff]
        %v382 = vld [vmem:[%s126 + $0x700] sm:$0xff]
        %v383 = vld [vmem:[%s126 + $0x708] sm:$0xff]
        %v384 = vld [vmem:[%s126 + $0x710] sm:$0xff]
        %v385 = vld [vmem:[%s126 + $0x718] sm:$0xff]
        %v386 = vld [vmem:[%s126 + $0x720] sm:$0xff]
        %v387 = vld [vmem:[%s126 + $0x728] sm:$0xff]
        %v388 = vld [vmem:[%s126 + $0x730] sm:$0xff]
        %v389 = vld [vmem:[%s126 + $0x738] sm:$0xff]
        %v390 = vld [vmem:[%s126 + $0x740] sm:$0xff]
        %v391 = vld [vmem:[%s126 + $0x748] sm:$0xff]
        %v392 = vld [vmem:[%s126 + $0x750] sm:$0xff]
        %v393 = vld [vmem:[%s126 + $0x758] sm:$0xff]
        %v394 = vld [vmem:[%s126 + $0x760] sm:$0xff]
        %v395 = vld [vmem:[%s126 + $0x768] sm:$0xff]
        %v396 = vld [vmem:[%s126 + $0x770] sm:$0xff]
        %v397 = vld [vmem:[%s126 + $0x778] sm:$0xff]
        %v398 = vld [vmem:[%s126 + $0x780] sm:$0xff]
        %v399 = vld [vmem:[%s126 + $0x788] sm:$0xff]
        %v400 = vld [vmem:[%s126 + $0x790] sm:$0xff]
        %v401 = vld [vmem:[%s126 + $0x798] sm:$0xff]
        %v402 = vld [vmem:[%s126 + $0x7a0] sm:$0xff]
        %v403 = vld [vmem:[%s126 + $0x7a8] sm:$0xff]
        %v404 = vld [vmem:[%s126 + $0x7b0] sm:$0xff]
        %v405 = vld [vmem:[%s126 + $0x7b8] sm:$0xff]
        %v406 = vld [vmem:[%s126 + $0x7c0] sm:$0xff]
        %v407 = vld [vmem:[%s126 + $0x7c8] sm:$0xff]
        %v408 = vld [vmem:[%s126 + $0x7d0] sm:$0xff]
        %v409 = vld [vmem:[%s126 + $0x7d8] sm:$0xff]
        %v410 = vld [vmem:[%s126 + $0x7e0] sm:$0xff]
        %v411 = vld [vmem:[%s126 + $0x7e8] sm:$0xff]
        %v412 = vld [vmem:[%s126 + $0x7f0] sm:$0xff]
        %v413 = vld [vmem:[%s126 + $0x7f8] sm:$0xff]
        %v414 = vld [vmem:[%s126 + $0x800] sm:$0xff]
        %v415 = vld [vmem:[%s126 + $0x808] sm:$0xff]
        %v416 = vld [vmem:[%s126 + $0x810] sm:$0xff]
        %v417 = vld [vmem:[%s126 + $0x818] sm:$0xff]
        %v418 = vld [vmem:[%s126 + $0x820] sm:$0xff]
        %v419 = vld [vmem:[%s126 + $0x828] sm:$0xff]
        %v420 = vld [vmem:[%s126 + $0x830] sm:$0xff]
        %v421 = vld [vmem:[%s126 + $0x838] sm:$0xff]
        %v422 = vld [vmem:[%s126 + $0x840] sm:$0xff]
        %v423 = vld [vmem:[%s126 + $0x848] sm:$0xff]
        %v424 = vld [vmem:[%s126 + $0x850] sm:$0xff]
        %v425 = vld [vmem:[%s126 + $0x858] sm:$0xff]
        %v426 = vld [vmem:[%s126 + $0x860] sm:$0xff]
        %v427 = vld [vmem:[%s126 + $0x868] sm:$0xff]
        %v428 = vld [vmem:[%s126 + $0x870] sm:$0xff]
        %v429 = vld [vmem:[%s126 + $0x878] sm:$0xff]
        %v430 = vld [vmem:[%s126 + $0x880] sm:$0xff]
        %v431 = vld [vmem:[%s126 + $0x888] sm:$0xff]
        %v432 = vld [vmem:[%s126 + $0x890] sm:$0xff]
        %v433 = vld [vmem:[%s126 + $0x898] sm:$0xff]
        %v434 = vld [vmem:[%s126 + $0x8a0] sm:$0xff]
        %v435 = vld [vmem:[%s126 + $0x8a8] sm:$0xff]
        %v436 = vld [vmem:[%s126 + $0x8b0] sm:$0xff]
        %v437 = vld [vmem:[%s126 + $0x8b8] sm:$0xff]
        %v438 = vld [vmem:[%s126 + $0x8c0] sm:$0xff]
        %v439 = vld [vmem:[%s126 + $0x8c8] sm:$0xff]
        %v440 = vld [vmem:[%s126 + $0x8d0] sm:$0xff]
        %v441 = vld [vmem:[%s126 + $0x8d8] sm:$0xff]
        %v442 = vld [vmem:[%s126 + $0x8e0] sm:$0xff]
        %v443 = vld [vmem:[%s126 + $0x8e8] sm:$0xff]
        %v444 = vld [vmem:[%s126 + $0x8f0] sm:$0xff]
        %v445 = vld [vmem:[%s126 + $0x8f8] sm:$0xff]
        %v446 = vld [vmem:[%s126 + $0x900] sm:$0xff]
        %v447 = vld [vmem:[%s126 + $0x908] sm:$0xff]
        %v448 = vld [vmem:[%s126 + $0x910] sm:$0xff]
        %v449 = vld [vmem:[%s126 + $0x918] sm:$0xff]
        %v450 = vld [vmem:[%s126 + $0x920] sm:$0xff]
        %v451 = vld [vmem:[%s126 + $0x928] sm:$0xff]
        %v452 = vld [vmem:[%s126 + $0x930] sm:$0xff]
        %v453 = vld [vmem:[%s126 + $0x938] sm:$0xff]
        %v454 = vld [vmem:[%s126 + $0x940] sm:$0xff]
        %v455 = vld [vmem:[%s126 + $0x948] sm:$0xff]
        %v456 = vld [vmem:[%s126 + $0x950] sm:$0xff]
        %v457 = vld [vmem:[%s126 + $0x958] sm:$0xff]
        %v458 = vld [vmem:[%s126 + $0x960] sm:$0xff]
        %v459 = vld [vmem:[%s126 + $0x968] sm:$0xff]
        %v460 = vld [vmem:[%s126 + $0x970] sm:$0xff]
        %v461 = vld [vmem:[%s126 + $0x978] sm:$0xff]
        %v462 = vld [vmem:[%s126 + $0x980] sm:$0xff]
        %v463 = vld [vmem:[%s126 + $0x988] sm:$0xff]
        %v464 = vld [vmem:[%s126 + $0x990] sm:$0xff]
        %v465 = vld [vmem:[%s126 + $0x998] sm:$0xff]
        %v466 = vld [vmem:[%s126 + $0x9a0] sm:$0xff]
        %v467 = vld [vmem:[%s126 + $0x9a8] sm:$0xff]
        %v468 = vld [vmem:[%s126 + $0x9b0] sm:$0xff]
        %v469 = vld [vmem:[%s126 + $0x9b8] sm:$0xff]
        %v470 = vld [vmem:[%s126 + $0x9c0] sm:$0xff]
        %v471 = vld [vmem:[%s126 + $0x9c8] sm:$0xff]
        %v472 = vld [vmem:[%s126 + $0x9d0] sm:$0xff]
        %v473 = vld [vmem:[%s126 + $0x9d8] sm:$0xff]
        %v474 = vld [vmem:[%s126 + $0x9e0] sm:$0xff]
        %v475 = vld [vmem:[%s126 + $0x9e8] sm:$0xff]
        %v476 = vld [vmem:[%s126 + $0x9f0] sm:$0xff]
        %v477 = vld [vmem:[%s126 + $0x9f8] sm:$0xff]
        %v478 = vld [vmem:[%s126 + $0xa00] sm:$0xff]
        %v479 = vld [vmem:[%s126 + $0xa08] sm:$0xff]
        %v480 = vld [vmem:[%s126 + $0xa10] sm:$0xff]
        %v481 = vld [vmem:[%s126 + $0xa18] sm:$0xff]
        %v482 = vld [vmem:[%s126 + $0xa20] sm:$0xff]
        %v483 = vld [vmem:[%s126 + $0xa28] sm:$0xff]
        %v484 = vld [vmem:[%s126 + $0xa30] sm:$0xff]
        %v485 = vld [vmem:[%s126 + $0xa38] sm:$0xff]
        %v486 = vld [vmem:[%s126 + $0xa40] sm:$0xff]
        %v487 = vld [vmem:[%s126 + $0xa48] sm:$0xff]
        %v488 = vld [vmem:[%s126 + $0xa50] sm:$0xff]
        %v489 = vld [vmem:[%s126 + $0xa58] sm:$0xff]
        %v490 = vld [vmem:[%s126 + $0xa60] sm:$0xff]
        %v491 = vld [vmem:[%s126 + $0xa68] sm:$0xff]
        %v492 = vld [vmem:[%s126 + $0xa70] sm:$0xff]
        %v493 = vld [vmem:[%s126 + $0xa78] sm:$0xff]
        %v494 = vld [vmem:[%s126 + $0xa80] sm:$0xff]
        %v495 = vld [vmem:[%s126 + $0xa88] sm:$0xff]
        %v496 = vld [vmem:[%s126 + $0xa90] sm:$0xff]
        %v497 = vld [vmem:[%s126 + $0xa98] sm:$0xff]
        %v498 = vld [vmem:[%s126 + $0xaa0] sm:$0xff]
        %v499 = vld [vmem:[%s126 + $0xaa8] sm:$0xff]
        %v500 = vld [vmem:[%s126 + $0xab0] sm:$0xff]
        %v501 = vld [vmem:[%s126 + $0xab8] sm:$0xff]
        %v502 = vld [vmem:[%s126 + $0xac0] sm:$0xff]
        %v503 = vld [vmem:[%s126 + $0xac8] sm:$0xff]
        %v504 = vld [vmem:[%s126 + $0xad0] sm:$0xff]
        %v505 = vld [vmem:[%s126 + $0xad8] sm:$0xff]
        %v506 = vld [vmem:[%s126 + $0xae0] sm:$0xff]
        %v507 = vld [vmem:[%s126 + $0xae8] sm:$0xff]
        %v508 = vld [vmem:[%s126 + $0xaf0] sm:$0xff]
        %v509 = vld [vmem:[%s126 + $0xaf8] sm:$0xff]
        %v510 = vld [vmem:[%s126 + $0xb00] sm:$0xff]
        %v511 = vld [vmem:[%s126 + $0xb08] sm:$0xff]
        %v512 = vld [vmem:[%s126 + $0xb10] sm:$0xff]
        %v513 = vld [vmem:[%s126 + $0xb18] sm:$0xff]
        %v514 = vld [vmem:[%s126 + $0xb20] sm:$0xff]
        %v515 = vld [vmem:[%s126 + $0xb28] sm:$0xff]
        %v516 = vld [vmem:[%s126 + $0xb30] sm:$0xff]
        %v517 = vld [vmem:[%s126 + $0xb38] sm:$0xff]
        %v518 = vld [vmem:[%s126 + $0xb40] sm:$0xff]
        %v519 = vld [vmem:[%s126 + $0xb48] sm:$0xff]
        %v520 = vld [vmem:[%s126 + $0xb50] sm:$0xff]
        %v521 = vld [vmem:[%s126 + $0xb58] sm:$0xff]
        %v522 = vld [vmem:[%s126 + $0xb60] sm:$0xff]
        %v523 = vld [vmem:[%s126 + $0xb68] sm:$0xff]
        %v524 = vld [vmem:[%s126 + $0xb70] sm:$0xff]
        %v525 = vld [vmem:[%s126 + $0xb78] sm:$0xff]
        %v526 = vld [vmem:[%s126 + $0xb80] sm:$0xff]
        %v527 = vld [vmem:[%s126 + $0xb88] sm:$0xff]
        %v528 = vld [vmem:[%s126 + $0xb90] sm:$0xff]
        %v529 = vld [vmem:[%s126 + $0xb98] sm:$0xff]
        %v530 = vld [vmem:[%s126 + $0xba0] sm:$0xff]
        %v531 = vld [vmem:[%s126 + $0xba8] sm:$0xff]
        %v532 = vld [vmem:[%s126 + $0xbb0] sm:$0xff]
        %v533 = vld [vmem:[%s126 + $0xbb8] sm:$0xff]
        %v534 = vld [vmem:[%s126 + $0xbc0] sm:$0xff]
        %v535 = vld [vmem:[%s126 + $0xbc8] sm:$0xff]
        %v536 = vld [vmem:[%s126 + $0xbd0] sm:$0xff]
        %v537 = vld [vmem:[%s126 + $0xbd8] sm:$0xff]
        %v538 = vld [vmem:[%s126 + $0xbe0] sm:$0xff]
        %v539 = vld [vmem:[%s126 + $0xbe8] sm:$0xff]
        %v540 = vld [vmem:[%s126 + $0xbf0] sm:$0xff]
        %v541 = vld [vmem:[%s126 + $0xbf8] sm:$0xff]
        %v542 = vld [vmem:[%s126 + $0xc00] sm:$0xff]
        %v543 = vld [vmem:[%s126 + $0xc08] sm:$0xff]
        %v544 = vld [vmem:[%s126 + $0xc10] sm:$0xff]
        %v545 = vld [vmem:[%s126 + $0xc18] sm:$0xff]
        %v546 = vld [vmem:[%s126 + $0xc20] sm:$0xff]
        %v547 = vld [vmem:[%s126 + $0xc28] sm:$0xff]
        %v548 = vld [vmem:[%s126 + $0xc30] sm:$0xff]
        %v549 = vld [vmem:[%s126 + $0xc38] sm:$0xff]
        %v550 = vld [vmem:[%s126 + $0xc40] sm:$0xff]
        %v551 = vld [vmem:[%s126 + $0xc48] sm:$0xff]
        %v552 = vld [vmem:[%s126 + $0xc50] sm:$0xff]
        %v553 = vld [vmem:[%s126 + $0xc58] sm:$0xff]
        %v554 = vld [vmem:[%s126 + $0xc60] sm:$0xff]
        %v555 = vld [vmem:[%s126 + $0xc68] sm:$0xff]
        %v556 = vld [vmem:[%s126 + $0xc70] sm:$0xff]
        %v557 = vld [vmem:[%s126 + $0xc78] sm:$0xff]
        %v558 = vld [vmem:[%s126 + $0xc80] sm:$0xff]
        %v559 = vld [vmem:[%s126 + $0xc88] sm:$0xff]
        %v560 = vld [vmem:[%s126 + $0xc90] sm:$0xff]
        %v561 = vld [vmem:[%s126 + $0xc98] sm:$0xff]
        %v562 = vld [vmem:[%s126 + $0xca0] sm:$0xff]
        %v563 = vld [vmem:[%s126 + $0xca8] sm:$0xff]
        %v564 = vld [vmem:[%s126 + $0xcb0] sm:$0xff]
        %v565 = vld [vmem:[%s126 + $0xcb8] sm:$0xff]
        %v566 = vld [vmem:[%s126 + $0xcc0] sm:$0xff]
        %v567 = vld [vmem:[%s126 + $0xcc8] sm:$0xff]
        %v568 = vld [vmem:[%s126 + $0xcd0] sm:$0xff]
        %v569 = vld [vmem:[%s126 + $0xcd8] sm:$0xff]
        %v570 = vld [vmem:[%s126 + $0xce0] sm:$0xff]
        %v571 = vld [vmem:[%s126 + $0xce8] sm:$0xff]
        %v572 = vld [vmem:[%s126 + $0xcf0] sm:$0xff]
        %v573 = vld [vmem:[%s126 + $0xcf8] sm:$0xff]
        %v574 = vld [vmem:[%s126 + $0xd00] sm:$0xff]
        %v575 = vld [vmem:[%s126 + $0xd08] sm:$0xff]
        %v576 = vld [vmem:[%s126 + $0xd10] sm:$0xff]
        %v577 = vld [vmem:[%s126 + $0xd18] sm:$0xff]
        %v578 = vld [vmem:[%s126 + $0xd20] sm:$0xff]
        %v579 = vld [vmem:[%s126 + $0xd28] sm:$0xff]
        %v580 = vld [vmem:[%s126 + $0xd30] sm:$0xff]
        %v581 = vld [vmem:[%s126 + $0xd38] sm:$0xff]
        %v582 = vld [vmem:[%s126 + $0xd40] sm:$0xff]
        %v583 = vld [vmem:[%s126 + $0xd48] sm:$0xff]
        %v584 = vld [vmem:[%s126 + $0xd50] sm:$0xff]
        %v585 = vld [vmem:[%s126 + $0xd58] sm:$0xff]
        %v586 = vld [vmem:[%s126 + $0xd60] sm:$0xff]
        %v587 = vld [vmem:[%s126 + $0xd68] sm:$0xff]
        %v588 = vld [vmem:[%s126 + $0xd70] sm:$0xff]
        %v589 = vld [vmem:[%s126 + $0xd78] sm:$0xff]
        %v590 = vld [vmem:[%s126 + $0xd80] sm:$0xff]
        %v591 = vld [vmem:[%s126 + $0xd88] sm:$0xff]
        %v592 = vld [vmem:[%s126 + $0xd90] sm:$0xff]
        %v593 = vld [vmem:[%s126 + $0xd98] sm:$0xff]
        %v594 = vld [vmem:[%s126 + $0xda0] sm:$0xff]
        %v595 = vld [vmem:[%s126 + $0xda8] sm:$0xff]
        %v596 = vld [vmem:[%s126 + $0xdb0] sm:$0xff]
        %v597 = vld [vmem:[%s126 + $0xdb8] sm:$0xff]
        %v598 = vld [vmem:[%s126 + $0xdc0] sm:$0xff]
        %v599 = vld [vmem:[%s126 + $0xdc8] sm:$0xff]
        %v600 = vld [vmem:[%s126 + $0xdd0] sm:$0xff]
        %v601 = vld [vmem:[%s126 + $0xdd8] sm:$0xff]
        %v602 = vld [vmem:[%s126 + $0xde0] sm:$0xff]
        %v603 = vld [vmem:[%s126 + $0xde8] sm:$0xff]
        %v604 = vld [vmem:[%s126 + $0xdf0] sm:$0xff]
        %v605 = vld [vmem:[%s126 + $0xdf8] sm:$0xff]
        %v606 = vld [vmem:[%s126 + $0xe00] sm:$0xff]
        %v607 = vld [vmem:[%s126 + $0xe08] sm:$0xff]
        %v608 = vld [vmem:[%s126 + $0xe10] sm:$0xff]
        %v609 = vld [vmem:[%s126 + $0xe18] sm:$0xff]
        %v610 = vld [vmem:[%s126 + $0xe20] sm:$0xff]
        %v611 = vld [vmem:[%s126 + $0xe28] sm:$0xff]
        %v612 = vld [vmem:[%s126 + $0xe30] sm:$0xff]
        %v613 = vld [vmem:[%s126 + $0xe38] sm:$0xff]
        %v614 = vld [vmem:[%s126 + $0xe40] sm:$0xff]
        %v615 = vld [vmem:[%s126 + $0xe48] sm:$0xff]
        %v616 = vld [vmem:[%s126 + $0xe50] sm:$0xff]
        %v617 = vld [vmem:[%s126 + $0xe58] sm:$0xff]
        %v618 = vld [vmem:[%s126 + $0xe60] sm:$0xff]
        %v619 = vld [vmem:[%s126 + $0xe68] sm:$0xff]
        %v620 = vld [vmem:[%s126 + $0xe70] sm:$0xff]
        %v621 = vld [vmem:[%s126 + $0xe78] sm:$0xff]
        %v622 = vld [vmem:[%s126 + $0xe80] sm:$0xff]
        %v623 = vld [vmem:[%s126 + $0xe88] sm:$0xff]
        %v624 = vld [vmem:[%s126 + $0xe90] sm:$0xff]
        %v625 = vld [vmem:[%s126 + $0xe98] sm:$0xff]
        %v626 = vld [vmem:[%s126 + $0xea0] sm:$0xff]
        %v627 = vld [vmem:[%s126 + $0xea8] sm:$0xff]
        %v628 = vld [vmem:[%s126 + $0xeb0] sm:$0xff]
        %v629 = vld [vmem:[%s126 + $0xeb8] sm:$0xff]
        %v630 = vld [vmem:[%s126 + $0xec0] sm:$0xff]
        %v631 = vld [vmem:[%s126 + $0xec8] sm:$0xff]
        %v632 = vld [vmem:[%s126 + $0xed0] sm:$0xff]
        %v633 = vld [vmem:[%s126 + $0xed8] sm:$0xff]
        %v634 = vld [vmem:[%s126 + $0xee0] sm:$0xff]
        %v635 = vld [vmem:[%s126 + $0xee8] sm:$0xff]
        %v636 = vld [vmem:[%s126 + $0xef0] sm:$0xff]
        %v637 = vld [vmem:[%s126 + $0xef8] sm:$0xff]
        %v638 = vld [vmem:[%s126 + $0xf00] sm:$0xff]
        %v639 = vld [vmem:[%s126 + $0xf08] sm:$0xff]
        %v640 = vld [vmem:[%s126 + $0xf10] sm:$0xff]
        %v641 = vld [vmem:[%s126 + $0xf18] sm:$0xff]
        %v642 = vld [vmem:[%s126 + $0xf20] sm:$0xff]
        %v643 = vld [vmem:[%s126 + $0xf28] sm:$0xff]
        %v644 = vld [vmem:[%s126 + $0xf30] sm:$0xff]
        %v645 = vld [vmem:[%s126 + $0xf38] sm:$0xff]
        %v646 = vld [vmem:[%s126 + $0xf40] sm:$0xff]
        %v647 = vld [vmem:[%s126 + $0xf48] sm:$0xff]
        %v648 = vld [vmem:[%s126 + $0xf50] sm:$0xff]
        %v649 = vld [vmem:[%s126 + $0xf58] sm:$0xff]
        %v650 = vld [vmem:[%s126 + $0xf60] sm:$0xff]
        %v651 = vld [vmem:[%s126 + $0xf68] sm:$0xff]
        %v652 = vld [vmem:[%s126 + $0xf70] sm:$0xff]
        %v653 = vld [vmem:[%s126 + $0xf78] sm:$0xff]
        %v654 = vld [vmem:[%s126 + $0xf80] sm:$0xff]
        %v655 = vld [vmem:[%s126 + $0xf88] sm:$0xff]
        %v656 = vld [vmem:[%s126 + $0xf90] sm:$0xff]
        %v657 = vld [vmem:[%s126 + $0xf98] sm:$0xff]
        %v658 = vld [vmem:[%s126 + $0xfa0] sm:$0xff]
        %v659 = vld [vmem:[%s126 + $0xfa8] sm:$0xff]
        %v660 = vld [vmem:[%s126 + $0xfb0] sm:$0xff]
        %v661 = vld [vmem:[%s126 + $0xfb8] sm:$0xff]
        %v662 = vld [vmem:[%s126 + $0xfc0] sm:$0xff]
        %v663 = vld [vmem:[%s126 + $0xfc8] sm:$0xff]
        %v664 = vld [vmem:[%s126 + $0xfd0] sm:$0xff]
        %v665 = vld [vmem:[%s126 + $0xfd8] sm:$0xff]
        %v666 = vld [vmem:[%s126 + $0xfe0] sm:$0xff]
        %v667 = vld [vmem:[%s126 + $0xfe8] sm:$0xff]
        %v668 = vld [vmem:[%s126 + $0xff0] sm:$0xff]
        %v669 = vld [vmem:[%s126 + $0xff8] sm:$0xff]
        %v670 = vld [vmem:[%s126 + $0x1000] sm:$0xff]
        %v671 = vld [vmem:[%s126 + $0x1008] sm:$0xff]
        %v672 = vld [vmem:[%s126 + $0x1010] sm:$0xff]
        %v673 = vld [vmem:[%s126 + $0x1018] sm:$0xff]
        %v674 = vld [vmem:[%s126 + $0x1020] sm:$0xff]
        %v675 = vld [vmem:[%s126 + $0x1028] sm:$0xff]
        %v676 = vld [vmem:[%s126 + $0x1030] sm:$0xff]
        %v677 = vld [vmem:[%s126 + $0x1038] sm:$0xff]
        %v678 = vld [vmem:[%s126 + $0x1040] sm:$0xff]
        %v679 = vld [vmem:[%s126 + $0x1048] sm:$0xff]
        %v680 = vld [vmem:[%s126 + $0x1050] sm:$0xff]
        %v681 = vld [vmem:[%s126 + $0x1058] sm:$0xff]
        %v682 = vld [vmem:[%s126 + $0x1060] sm:$0xff]
        %v683 = vld [vmem:[%s126 + $0x1068] sm:$0xff]
        %v684 = vld [vmem:[%s126 + $0x1070] sm:$0xff]
        %v685 = vld [vmem:[%s126 + $0x1078] sm:$0xff]
        %v686 = vld [vmem:[%s126 + $0x1080] sm:$0xff]
        %v687 = vld [vmem:[%s126 + $0x1088] sm:$0xff]
        %v688 = vld [vmem:[%s126 + $0x1090] sm:$0xff]
        %v689 = vld [vmem:[%s126 + $0x1098] sm:$0xff]
        %v690 = vld [vmem:[%s126 + $0x10a0] sm:$0xff]
        %v691 = vld [vmem:[%s126 + $0x10a8] sm:$0xff]
        %v692 = vld [vmem:[%s126 + $0x10b0] sm:$0xff]
        %v693 = vld [vmem:[%s126 + $0x10b8] sm:$0xff]
        %v694 = vld [vmem:[%s126 + $0x10c0] sm:$0xff]
        %v695 = vld [vmem:[%s126 + $0x10c8] sm:$0xff]
        %v696 = vld [vmem:[%s126 + $0x10d0] sm:$0xff]
        %v697 = vld [vmem:[%s126 + $0x10d8] sm:$0xff]
        %v698 = vld [vmem:[%s126 + $0x10e0] sm:$0xff]
        %v699 = vld [vmem:[%s126 + $0x10e8] sm:$0xff]
        %v700 = vld [vmem:[%s126 + $0x10f0] sm:$0xff]
        %v701 = vld [vmem:[%s126 + $0x10f8] sm:$0xff]
        %v702 = vld [vmem:[%s126 + $0x1100] sm:$0xff]
        %v703 = vld [vmem:[%s126 + $0x1108] sm:$0xff]
        %v704 = vld [vmem:[%s126 + $0x1110] sm:$0xff]
        %v705 = vld [vmem:[%s126 + $0x1118] sm:$0xff]
        %v706 = vld [vmem:[%s126 + $0x1120] sm:$0xff]
        %v707 = vld [vmem:[%s126 + $0x1128] sm:$0xff]
        %v708 = vld [vmem:[%s126 + $0x1130] sm:$0xff]
        %v709 = vld [vmem:[%s126 + $0x1138] sm:$0xff]
        %v710 = vld [vmem:[%s126 + $0x1140] sm:$0xff]
        %v711 = vld [vmem:[%s126 + $0x1148] sm:$0xff]
        %v712 = vld [vmem:[%s126 + $0x1150] sm:$0xff]
        %v713 = vld [vmem:[%s126 + $0x1158] sm:$0xff]
        %v714 = vld [vmem:[%s126 + $0x1160] sm:$0xff]
        %v715 = vld [vmem:[%s126 + $0x1168] sm:$0xff]
        %v716 = vld [vmem:[%s126 + $0x1170] sm:$0xff]
        %v717 = vld [vmem:[%s126 + $0x1178] sm:$0xff]
        %v718 = vld [vmem:[%s126 + $0x1180] sm:$0xff]
        %v719 = vld [vmem:[%s126 + $0x1188] sm:$0xff]
        %v720 = vld [vmem:[%s126 + $0x1190] sm:$0xff]
        %v721 = vld [vmem:[%s126 + $0x1198] sm:$0xff]
        %v722 = vld [vmem:[%s126 + $0x11a0] sm:$0xff]
        %v723 = vld [vmem:[%s126 + $0x11a8] sm:$0xff]
        %v724 = vld [vmem:[%s126 + $0x11b0] sm:$0xff]
        %v725 = vld [vmem:[%s126 + $0x11b8] sm:$0xff]
        %v726 = vld [vmem:[%s126 + $0x11c0] sm:$0xff]
        %v727 = vld [vmem:[%s126 + $0x11c8] sm:$0xff]
        %v728 = vld [vmem:[%s126 + $0x11d0] sm:$0xff]
        %v729 = vld [vmem:[%s126 + $0x11d8] sm:$0xff]
        %v730 = vld [vmem:[%s126 + $0x11e0] sm:$0xff]
        %v731 = vld [vmem:[%s126 + $0x11e8] sm:$0xff]
        %v732 = vld [vmem:[%s126 + $0x11f0] sm:$0xff]
        %v733 = vld [vmem:[%s126 + $0x11f8] sm:$0xff]
        %v734 = vld [vmem:[%s126 + $0x1200] sm:$0xff]
        %v735 = vld [vmem:[%s126 + $0x1208] sm:$0xff]
        %v736 = vld [vmem:[%s126 + $0x1210] sm:$0xff]
        %v737 = vld [vmem:[%s126 + $0x1218] sm:$0xff]
        %v738 = vld [vmem:[%s126 + $0x1220] sm:$0xff]
        %v739 = vld [vmem:[%s126 + $0x1228] sm:$0xff]
        %v740 = vld [vmem:[%s126 + $0x1230] sm:$0xff]
        %v741 = vld [vmem:[%s126 + $0x1238] sm:$0xff]
        %v742 = vld [vmem:[%s126 + $0x1240] sm:$0xff]
        %v743 = vld [vmem:[%s126 + $0x1248] sm:$0xff]
        %v744 = vld [vmem:[%s126 + $0x1250] sm:$0xff]
        %v745 = vld [vmem:[%s126 + $0x1258] sm:$0xff]
        %v746 = vld [vmem:[%s126 + $0x1260] sm:$0xff]
        %v747 = vld [vmem:[%s126 + $0x1268] sm:$0xff]
        %v748 = vld [vmem:[%s126 + $0x1270] sm:$0xff]
        %v749 = vld [vmem:[%s126 + $0x1278] sm:$0xff]
        %v750 = vld [vmem:[%s126 + $0x1280] sm:$0xff]
        %v751 = vld [vmem:[%s126 + $0x1288] sm:$0xff]
        %v752 = vld [vmem:[%s126 + $0x1290] sm:$0xff]
        %v753 = vld [vmem:[%s126 + $0x1298] sm:$0xff]
        %v754 = vld [vmem:[%s126 + $0x12a0] sm:$0xff]
        %v755 = vld [vmem:[%s126 + $0x12a8] sm:$0xff]
        %v756 = vld [vmem:[%s126 + $0x12b0] sm:$0xff]
        %v757 = vld [vmem:[%s126 + $0x12b8] sm:$0xff]
        %v758 = vld [vmem:[%s126 + $0x12c0] sm:$0xff]
        %v759 = vld [vmem:[%s126 + $0x12c8] sm:$0xff]
        %v760 = vld [vmem:[%s126 + $0x12d0] sm:$0xff]
        %v761 = vld [vmem:[%s126 + $0x12d8] sm:$0xff]
        %v762 = vld [vmem:[%s126 + $0x12e0] sm:$0xff]
        %v763 = vld [vmem:[%s126 + $0x12e8] sm:$0xff]
        %v764 = vld [vmem:[%s126 + $0x12f0] sm:$0xff]
        %v765 = vld [vmem:[%s126 + $0x12f8] sm:$0xff]
        %v766 = vld [vmem:[%s126 + $0x1300] sm:$0xff]
        %v767 = vld [vmem:[%s126 + $0x1308] sm:$0xff]
        %v768 = vld [vmem:[%s126 + $0x1310] sm:$0xff]
        %v769 = vld [vmem:[%s126 + $0x1318] sm:$0xff]
        %v770 = vld [vmem:[%s126 + $0x1320] sm:$0xff]
        %v771 = vld [vmem:[%s126 + $0x1328] sm:$0xff]
        %v772 = vld [vmem:[%s126 + $0x1330] sm:$0xff]
        %v773 = vld [vmem:[%s126 + $0x1338] sm:$0xff]
        %v774 = vld [vmem:[%s126 + $0x1340] sm:$0xff]
        %v775 = vld [vmem:[%s126 + $0x1348] sm:$0xff]
        %v776 = vld [vmem:[%s126 + $0x1350] sm:$0xff]
        %v777 = vld [vmem:[%s126 + $0x1358] sm:$0xff]
        %v778 = vld [vmem:[%s126 + $0x1360] sm:$0xff]
        %v779 = vld [vmem:[%s126 + $0x1368] sm:$0xff]
        %v780 = vld [vmem:[%s126 + $0x1370] sm:$0xff]
        %v781 = vld [vmem:[%s126 + $0x1378] sm:$0xff]
        %v782 = vld [vmem:[%s126 + $0x1380] sm:$0xff]
        %v783 = vld [vmem:[%s126 + $0x1388] sm:$0xff]
        %v784 = vld [vmem:[%s126 + $0x1390] sm:$0xff]
        %v785 = vld [vmem:[%s126 + $0x1398] sm:$0xff]
        %v786 = vld [vmem:[%s126 + $0x13a0] sm:$0xff]
        %v787 = vld [vmem:[%s126 + $0x13a8] sm:$0xff]
        %v788 = vld [vmem:[%s126 + $0x13b0] sm:$0xff]
        %v789 = vld [vmem:[%s126 + $0x13b8] sm:$0xff]
        %v790 = vld [vmem:[%s126 + $0x13c0] sm:$0xff]
        %v791 = vld [vmem:[%s126 + $0x13c8] sm:$0xff]
        %v792 = vld [vmem:[%s126 + $0x13d0] sm:$0xff]
        %v793 = vld [vmem:[%s126 + $0x13d8] sm:$0xff]
        %v794 = vld [vmem:[%s126 + $0x13e0] sm:$0xff]
        %v795 = vld [vmem:[%s126 + $0x13e8] sm:$0xff]
        %v796 = vld [vmem:[%s126 + $0x13f0] sm:$0xff]
        %v797 = vld [vmem:[%s126 + $0x13f8] sm:$0xff]
        %v798 = vld [vmem:[%s126 + $0x1400] sm:$0xff]
        %v799 = vld [vmem:[%s126 + $0x1408] sm:$0xff]
        %v800 = vld [vmem:[%s126 + $0x1410] sm:$0xff]
        %v801 = vld [vmem:[%s126 + $0x1418] sm:$0xff]
        %v802 = vld [vmem:[%s126 + $0x1420] sm:$0xff]
        %v803 = vld [vmem:[%s126 + $0x1428] sm:$0xff]
        %v804 = vld [vmem:[%s126 + $0x1430] sm:$0xff]
        %v805 = vld [vmem:[%s126 + $0x1438] sm:$0xff]
        %v806 = vld [vmem:[%s126 + $0x1440] sm:$0xff]
        %v807 = vld [vmem:[%s126 + $0x1448] sm:$0xff]
        %v808 = vld [vmem:[%s126 + $0x1450] sm:$0xff]
        %v809 = vld [vmem:[%s126 + $0x1458] sm:$0xff]
        %v810 = vld [vmem:[%s126 + $0x1460] sm:$0xff]
        %v811 = vld [vmem:[%s126 + $0x1468] sm:$0xff]
        %v812 = vld [vmem:[%s126 + $0x1470] sm:$0xff]
        %v813 = vld [vmem:[%s126 + $0x1478] sm:$0xff]
        %v814 = vld [vmem:[%s126 + $0x1480] sm:$0xff]
        %v815 = vld [vmem:[%s126 + $0x1488] sm:$0xff]
        %v816 = vld [vmem:[%s126 + $0x1490] sm:$0xff]
        %v817 = vld [vmem:[%s126 + $0x1498] sm:$0xff]
        %v818 = vld [vmem:[%s126 + $0x14a0] sm:$0xff]
        %v819 = vld [vmem:[%s126 + $0x14a8] sm:$0xff]
        %v820 = vld [vmem:[%s126 + $0x14b0] sm:$0xff]
        %v821 = vld [vmem:[%s126 + $0x14b8] sm:$0xff]
        %v822 = vld [vmem:[%s126 + $0x14c0] sm:$0xff]
        %v823 = vld [vmem:[%s126 + $0x14c8] sm:$0xff]
        %v824 = vld [vmem:[%s126 + $0x14d0] sm:$0xff]
        %v825 = vld [vmem:[%s126 + $0x14d8] sm:$0xff]
        %v826 = vld [vmem:[%s126 + $0x14e0] sm:$0xff]
        %v827 = vld [vmem:[%s126 + $0x14e8] sm:$0xff]
        %v828 = vld [vmem:[%s126 + $0x14f0] sm:$0xff]
        %v829 = vld [vmem:[%s126 + $0x14f8] sm:$0xff]
        %v830 = vld [vmem:[%s126 + $0x1500] sm:$0xff]
        %v831 = vld [vmem:[%s126 + $0x1508] sm:$0xff]
        %v832 = vld [vmem:[%s126 + $0x1510] sm:$0xff]
        %v833 = vld [vmem:[%s126 + $0x1518] sm:$0xff]
        %v834 = vld [vmem:[%s126 + $0x1520] sm:$0xff]
        %v835 = vld [vmem:[%s126 + $0x1528] sm:$0xff]
        %v836 = vld [vmem:[%s126 + $0x1530] sm:$0xff]
        %v837 = vld [vmem:[%s126 + $0x1538] sm:$0xff]
        %v838 = vld [vmem:[%s126 + $0x1540] sm:$0xff]
        %v839 = vld [vmem:[%s126 + $0x1548] sm:$0xff]
        %v840 = vld [vmem:[%s126 + $0x1550] sm:$0xff]
        %v841 = vld [vmem:[%s126 + $0x1558] sm:$0xff]
        %v842 = vld [vmem:[%s126 + $0x1560] sm:$0xff]
        %v843 = vld [vmem:[%s126 + $0x1568] sm:$0xff]
        %v844 = vld [vmem:[%s126 + $0x1570] sm:$0xff]
        %v845 = vld [vmem:[%s126 + $0x1578] sm:$0xff]
        %v846 = vld [vmem:[%s126 + $0x1580] sm:$0xff]
        %v847 = vld [vmem:[%s126 + $0x1588] sm:$0xff]
        %v848 = vld [vmem:[%s126 + $0x1590] sm:$0xff]
        %v849 = vld [vmem:[%s126 + $0x1598] sm:$0xff]
        %v850 = vld [vmem:[%s126 + $0x15a0] sm:$0xff]
        %v851 = vld [vmem:[%s126 + $0x15a8] sm:$0xff]
        %v852 = vld [vmem:[%s126 + $0x15b0] sm:$0xff]
        %v853 = vld [vmem:[%s126 + $0x15b8] sm:$0xff]
        %v854 = vld [vmem:[%s126 + $0x15c0] sm:$0xff]
        %v855 = vld [vmem:[%s126 + $0x15c8] sm:$0xff]
        %v856 = vld [vmem:[%s126 + $0x15d0] sm:$0xff]
        %v857 = vld [vmem:[%s126 + $0x15d8] sm:$0xff]
        %v858 = vld [vmem:[%s126 + $0x15e0] sm:$0xff]
        %v859 = vld [vmem:[%s126 + $0x15e8] sm:$0xff]
        %v860 = vld [vmem:[%s126 + $0x15f0] sm:$0xff]
        %v861 = vld [vmem:[%s126 + $0x15f8] sm:$0xff]
        %v862 = vld [vmem:[%s126 + $0x1600] sm:$0xff]
        %v863 = vld [vmem:[%s126 + $0x1608] sm:$0xff]
        %v864 = vld [vmem:[%s126 + $0x1610] sm:$0xff]
        %v865 = vld [vmem:[%s126 + $0x1618] sm:$0xff]
        %v866 = vld [vmem:[%s126 + $0x1620] sm:$0xff]
        %v867 = vld [vmem:[%s126 + $0x1628] sm:$0xff]
        %v868 = vld [vmem:[%s126 + $0x1630] sm:$0xff]
        %v869 = vld [vmem:[%s126 + $0x1638] sm:$0xff]
        %v870 = vld [vmem:[%s126 + $0x1640] sm:$0xff]
        %v871 = vld [vmem:[%s126 + $0x1648] sm:$0xff]
        %v872 = vld [vmem:[%s126 + $0x1650] sm:$0xff]
        %v873 = vld [vmem:[%s126 + $0x1658] sm:$0xff]
        %v874 = vld [vmem:[%s126 + $0x1660] sm:$0xff]
        %v875 = vld [vmem:[%s126 + $0x1668] sm:$0xff]
        %v876 = vld [vmem:[%s126 + $0x1670] sm:$0xff]
        %v877 = vld [vmem:[%s126 + $0x1678] sm:$0xff]
        %v878 = vld [vmem:[%s126 + $0x1680] sm:$0xff]
        %v879 = vld [vmem:[%s126 + $0x1688] sm:$0xff]
        %v880 = vld [vmem:[%s126 + $0x1690] sm:$0xff]
        %v881 = vld [vmem:[%s126 + $0x1698] sm:$0xff]
        %v882 = vld [vmem:[%s126 + $0x16a0] sm:$0xff]
        %v883 = vld [vmem:[%s126 + $0x16a8] sm:$0xff]
        %v884 = vld [vmem:[%s126 + $0x16b0] sm:$0xff]
        %v885 = vld [vmem:[%s126 + $0x16b8] sm:$0xff]
        %v886 = vld [vmem:[%s126 + $0x16c0] sm:$0xff]
        %v887 = vld [vmem:[%s126 + $0x16c8] sm:$0xff]
        %v888 = vld [vmem:[%s126 + $0x16d0] sm:$0xff]
        %v889 = vld [vmem:[%s126 + $0x16d8] sm:$0xff]
        %v890 = vld [vmem:[%s126 + $0x16e0] sm:$0xff]
        %v891 = vld [vmem:[%s126 + $0x16e8] sm:$0xff]
        %v892 = vld [vmem:[%s126 + $0x16f0] sm:$0xff]
        %v893 = vld [vmem:[%s126 + $0x16f8] sm:$0xff]
        %v894 = vld [vmem:[%s126 + $0x1700] sm:$0xff]
        %v895 = vld [vmem:[%s126 + $0x1708] sm:$0xff]
        %v896 = vld [vmem:[%s126 + $0x1710] sm:$0xff]
        %v897 = vld [vmem:[%s126 + $0x1718] sm:$0xff]
        %v898 = vld [vmem:[%s126 + $0x1720] sm:$0xff]
        %v899 = vld [vmem:[%s126 + $0x1728] sm:$0xff]
        %v900 = vld [vmem:[%s126 + $0x1730] sm:$0xff]
        %v901 = vld [vmem:[%s126 + $0x1738] sm:$0xff]
        %v902 = vld [vmem:[%s126 + $0x1740] sm:$0xff]
        %v903 = vld [vmem:[%s126 + $0x1748] sm:$0xff]
        %v904 = vld [vmem:[%s126 + $0x1750] sm:$0xff]
        %v905 = vld [vmem:[%s126 + $0x1758] sm:$0xff]
        %v906 = vld [vmem:[%s126 + $0x1760] sm:$0xff]
        %v907 = vld [vmem:[%s126 + $0x1768] sm:$0xff]
        %v908 = vld [vmem:[%s126 + $0x1770] sm:$0xff]
        %v909 = vld [vmem:[%s126 + $0x1778] sm:$0xff]
        %v910 = vld [vmem:[%s126 + $0x1780] sm:$0xff]
        %v911 = vld [vmem:[%s126 + $0x1788] sm:$0xff]
        %v912 = vld [vmem:[%s126 + $0x1790] sm:$0xff]
        %v913 = vld [vmem:[%s126 + $0x1798] sm:$0xff]
        %v914 = vld [vmem:[%s126 + $0x17a0] sm:$0xff]
        %v915 = vld [vmem:[%s126 + $0x17a8] sm:$0xff]
        %v916 = vld [vmem:[%s126 + $0x17b0] sm:$0xff]
        %v917 = vld [vmem:[%s126 + $0x17b8] sm:$0xff]
        %v918 = vld [vmem:[%s126 + $0x17c0] sm:$0xff]
        %v919 = vld [vmem:[%s126 + $0x17c8] sm:$0xff]
        %v920 = vld [vmem:[%s126 + $0x17d0] sm:$0xff]
        %v921 = vld [vmem:[%s126 + $0x17d8] sm:$0xff]
        %v922 = vld [vmem:[%s126 + $0x17e0] sm:$0xff]
        %v923 = vld [vmem:[%s126 + $0x17e8] sm:$0xff]
        %v924 = vld [vmem:[%s126 + $0x17f0] sm:$0xff]
        %v925 = vld [vmem:[%s126 + $0x17f8] sm:$0xff]
        %v926 = vld [vmem:[%s126 + $0x1800] sm:$0xff]
        %v927 = vld [vmem:[%s126 + $0x1808] sm:$0xff]
        %v928 = vld [vmem:[%s126 + $0x1810] sm:$0xff]
        %v929 = vld [vmem:[%s126 + $0x1818] sm:$0xff]
        %v930 = vld [vmem:[%s126 + $0x1820] sm:$0xff]
        %v931 = vld [vmem:[%s126 + $0x1828] sm:$0xff]
        %v932 = vld [vmem:[%s126 + $0x1830] sm:$0xff]
        %v933 = vld [vmem:[%s126 + $0x1838] sm:$0xff]
        %v934 = vld [vmem:[%s126 + $0x1840] sm:$0xff]
        %v935 = vld [vmem:[%s126 + $0x1848] sm:$0xff]
        %v936 = vld [vmem:[%s126 + $0x1850] sm:$0xff]
        %v937 = vld [vmem:[%s126 + $0x1858] sm:$0xff]
        %v938 = vld [vmem:[%s126 + $0x1860] sm:$0xff]
        %v939 = vld [vmem:[%s126 + $0x1868] sm:$0xff]
        %v940 = vld [vmem:[%s126 + $0x1870] sm:$0xff]
        %v941 = vld [vmem:[%s126 + $0x1878] sm:$0xff]
        %v942 = vld [vmem:[%s126 + $0x1880] sm:$0xff]
        %v943 = vld [vmem:[%s126 + $0x1888] sm:$0xff]
        %v944 = vld [vmem:[%s126 + $0x1890] sm:$0xff]
        %v945 = vld [vmem:[%s126 + $0x1898] sm:$0xff]
        %v946 = vld [vmem:[%s126 + $0x18a0] sm:$0xff]
        %v947 = vld [vmem:[%s126 + $0x18a8] sm:$0xff]
        %v948 = vld [vmem:[%s126 + $0x18b0] sm:$0xff]
        %v949 = vld [vmem:[%s126 + $0x18b8] sm:$0xff]
        %v950 = vld [vmem:[%s126 + $0x18c0] sm:$0xff]
        %v951 = vld [vmem:[%s126 + $0x18c8] sm:$0xff]
        %v952 = vld [vmem:[%s126 + $0x18d0] sm:$0xff]
        %v953 = vld [vmem:[%s126 + $0x18d8] sm:$0xff]
        %v954 = vld [vmem:[%s126 + $0x18e0] sm:$0xff]
        %v955 = vld [vmem:[%s126 + $0x18e8] sm:$0xff]
        %v956 = vld [vmem:[%s126 + $0x18f0] sm:$0xff]
        %v957 = vld [vmem:[%s126 + $0x18f8] sm:$0xff]
        %v958 = vld [vmem:[%s126 + $0x1900] sm:$0xff]
        %v959 = vld [vmem:[%s126 + $0x1908] sm:$0xff]
        %v960 = vld [vmem:[%s126 + $0x1910] sm:$0xff]
        %v961 = vld [vmem:[%s126 + $0x1918] sm:$0xff]
        %v962 = vld [vmem:[%s126 + $0x1920] sm:$0xff]
        %v963 = vld [vmem:[%s126 + $0x1928] sm:$0xff]
        %v964 = vld [vmem:[%s126 + $0x1930] sm:$0xff]
        %v965 = vld [vmem:[%s126 + $0x1938] sm:$0xff]
        %v966 = vld [vmem:[%s126 + $0x1940] sm:$0xff]
        %v967 = vld [vmem:[%s126 + $0x1948] sm:$0xff]
        %v968 = vld [vmem:[%s126 + $0x1950] sm:$0xff]
        %v969 = vld [vmem:[%s126 + $0x1958] sm:$0xff]
        %v970 = vld [vmem:[%s126 + $0x1960] sm:$0xff]
        %v971 = vld [vmem:[%s126 + $0x1968] sm:$0xff]
        %v972 = vld [vmem:[%s126 + $0x1970] sm:$0xff]
        %v973 = vld [vmem:[%s126 + $0x1978] sm:$0xff]
        %v974 = vld [vmem:[%s126 + $0x1980] sm:$0xff]
        %v975 = vld [vmem:[%s126 + $0x1988] sm:$0xff]
        %v976 = vld [vmem:[%s126 + $0x1990] sm:$0xff]
        %v977 = vld [vmem:[%s126 + $0x1998] sm:$0xff]
        %v978 = vld [vmem:[%s126 + $0x19a0] sm:$0xff]
        %v979 = vld [vmem:[%s126 + $0x19a8] sm:$0xff]
        %v980 = vld [vmem:[%s126 + $0x19b0] sm:$0xff]
        %v981 = vld [vmem:[%s126 + $0x19b8] sm:$0xff]
        %v982 = vld [vmem:[%s126 + $0x19c0] sm:$0xff]
        %v983 = vld [vmem:[%s126 + $0x19c8] sm:$0xff]
        %v984 = vld [vmem:[%s126 + $0x19d0] sm:$0xff]
        %v985 = vld [vmem:[%s126 + $0x19d8] sm:$0xff]
        %v986 = vld [vmem:[%s126 + $0x19e0] sm:$0xff]
        %v987 = vld [vmem:[%s126 + $0x19e8] sm:$0xff]
        %v988 = vld [vmem:[%s126 + $0x19f0] sm:$0xff]
        %v989 = vld [vmem:[%s126 + $0x19f8] sm:$0xff]
        %v990 = vld [vmem:[%s126 + $0x1a00] sm:$0xff]
        %v991 = vld [vmem:[%s126 + $0x1a08] sm:$0xff]
        %v992 = vld [vmem:[%s126 + $0x1a10] sm:$0xff]
        %v993 = vld [vmem:[%s126 + $0x1a18] sm:$0xff]
        %v994 = vld [vmem:[%s126 + $0x1a20] sm:$0xff]
        %v995 = vld [vmem:[%s126 + $0x1a28] sm:$0xff]
        %v996 = vld [vmem:[%s126 + $0x1a30] sm:$0xff]
        %v997 = vld [vmem:[%s126 + $0x1a38] sm:$0xff]
        %v998 = vld [vmem:[%s126 + $0x1a40] sm:$0xff]
        %v999 = vld [vmem:[%s126 + $0x1a48] sm:$0xff]
        %v1000 = vld [vmem:[%s126 + $0x1a50] sm:$0xff]
        %v1001 = vld [vmem:[%s126 + $0x1a58] sm:$0xff]
        %v1002 = vld [vmem:[%s126 + $0x1a60] sm:$0xff]
        %v1003 = vld [vmem:[%s126 + $0x1a68] sm:$0xff]
        %v1004 = vld [vmem:[%s126 + $0x1a70] sm:$0xff]
        %v1005 = vld [vmem:[%s126 + $0x1a78] sm:$0xff]
        %v1006 = vld [vmem:[%s126 + $0x1a80] sm:$0xff]
        %v1007 = vld [vmem:[%s126 + $0x1a88] sm:$0xff]
        %v1008 = vld [vmem:[%s126 + $0x1a90] sm:$0xff]
        %v1009 = vld [vmem:[%s126 + $0x1a98] sm:$0xff]
        %v1010 = vld [vmem:[%s126 + $0x1aa0] sm:$0xff]
        %v1011 = vld [vmem:[%s126 + $0x1aa8] sm:$0xff]
        %v1012 = vld [vmem:[%s126 + $0x1ab0] sm:$0xff]
        %v1013 = vld [vmem:[%s126 + $0x1ab8] sm:$0xff]
        %v1014 = vld [vmem:[%s126 + $0x1ac0] sm:$0xff]
        %v1015 = vld [vmem:[%s126 + $0x1ac8] sm:$0xff]
        %v1016 = vld [vmem:[%s126 + $0x1ad0] sm:$0xff]
        %v1017 = vld [vmem:[%s126 + $0x1ad8] sm:$0xff]
        %v1018 = vld [vmem:[%s126 + $0x1ae0] sm:$0xff]
        %v1019 = vld [vmem:[%s126 + $0x1ae8] sm:$0xff]
        %v1020 = vld [vmem:[%s126 + $0x1af0] sm:$0xff]
        %v1021 = vld [vmem:[%s126 + $0x1af8] sm:$0xff]
        %v1022 = vld [vmem:[%s126 + $0x1b00] sm:$0xff]
        %v1023 = vld [vmem:[%s126 + $0x1b08] sm:$0xff]
        %v1024 = vld [vmem:[%s126 + $0x1b10] sm:$0xff]
        %v1025 = vld [vmem:[%s126 + $0x1b18] sm:$0xff]
        %v1026 = vld [vmem:[%s126 + $0x1b20] sm:$0xff]
        %v1027 = vld [vmem:[%s126 + $0x1b28] sm:$0xff]
        %v1028 = vld [vmem:[%s126 + $0x1b30] sm:$0xff]
        %v1029 = vld [vmem:[%s126 + $0x1b38] sm:$0xff]
        %v1030 = vld [vmem:[%s126 + $0x1b40] sm:$0xff]
        %v1031 = vld [vmem:[%s126 + $0x1b48] sm:$0xff]
        %v1032 = vld [vmem:[%s126 + $0x1b50] sm:$0xff]
        %v1033 = vld [vmem:[%s126 + $0x1b58] sm:$0xff]
        %v1034 = vld [vmem:[%s126 + $0x1b60] sm:$0xff]
        %v1035 = vld [vmem:[%s126 + $0x1b68] sm:$0xff]
        %v1036 = vld [vmem:[%s126 + $0x1b70] sm:$0xff]
        %v1037 = vld [vmem:[%s126 + $0x1b78] sm:$0xff]
        %v1038 = vld [vmem:[%s126 + $0x1b80] sm:$0xff]
        %v1039 = vld [vmem:[%s126 + $0x1b88] sm:$0xff]
        %v1040 = vld [vmem:[%s126 + $0x1b90] sm:$0xff]
        %v1041 = vld [vmem:[%s126 + $0x1b98] sm:$0xff]
        %v1042 = vld [vmem:[%s126 + $0x1ba0] sm:$0xff]
        %v1043 = vld [vmem:[%s126 + $0x1ba8] sm:$0xff]
        %v1044 = vld [vmem:[%s126 + $0x1bb0] sm:$0xff]
        %v1045 = vld [vmem:[%s126 + $0x1bb8] sm:$0xff]
        %v1046 = vld [vmem:[%s126 + $0x1bc0] sm:$0xff]
        %v1047 = vld [vmem:[%s126 + $0x1bc8] sm:$0xff]
        %v1048 = vld [vmem:[%s126 + $0x1bd0] sm:$0xff]
        %v1049 = vld [vmem:[%s126 + $0x1bd8] sm:$0xff]
        %v1050 = vld [vmem:[%s126 + $0x1be0] sm:$0xff]
        %v1051 = vld [vmem:[%s126 + $0x1be8] sm:$0xff]
        %v1052 = vld [vmem:[%s126 + $0x1bf0] sm:$0xff]
        %v1053 = vld [vmem:[%s126 + $0x1bf8] sm:$0xff]
        %v1054 = vld [vmem:[%s126 + $0x1c00] sm:$0xff]
        %v1055 = vld [vmem:[%s126 + $0x1c08] sm:$0xff]
        %v1056 = vld [vmem:[%s126 + $0x1c10] sm:$0xff]
        %v1057 = vld [vmem:[%s126 + $0x1c18] sm:$0xff]
        %v1058 = vld [vmem:[%s126 + $0x1c20] sm:$0xff]
        %v1059 = vld [vmem:[%s126 + $0x1c28] sm:$0xff]
        %v1060 = vld [vmem:[%s126 + $0x1c30] sm:$0xff]
        %v1061 = vld [vmem:[%s126 + $0x1c38] sm:$0xff]
        %v1062 = vld [vmem:[%s126 + $0x1c40] sm:$0xff]
        %v1063 = vld [vmem:[%s126 + $0x1c48] sm:$0xff]
        %v1064 = vld [vmem:[%s126 + $0x1c50] sm:$0xff]
        %v1065 = vld [vmem:[%s126 + $0x1c58] sm:$0xff]
        %v1066 = vld [vmem:[%s126 + $0x1c60] sm:$0xff]
        %v1067 = vld [vmem:[%s126 + $0x1c68] sm:$0xff]
        %v1068 = vld [vmem:[%s126 + $0x1c70] sm:$0xff]
        %v1069 = vld [vmem:[%s126 + $0x1c78] sm:$0xff]
        %v1070 = vld [vmem:[%s126 + $0x1c80] sm:$0xff]
        %v1071 = vld [vmem:[%s126 + $0x1c88] sm:$0xff]
        %v1072 = vld [vmem:[%s126 + $0x1c90] sm:$0xff]
        %v1073 = vld [vmem:[%s126 + $0x1c98] sm:$0xff]
        %v1074 = vld [vmem:[%s126 + $0x1ca0] sm:$0xff]
        %v1075 = vld [vmem:[%s126 + $0x1ca8] sm:$0xff]
        %v1076 = vld [vmem:[%s126 + $0x1cb0] sm:$0xff]
        %v1077 = vld [vmem:[%s126 + $0x1cb8] sm:$0xff]
        %v1078 = vld [vmem:[%s126 + $0x1cc0] sm:$0xff]
        %v1079 = vld [vmem:[%s126 + $0x1cc8] sm:$0xff]
        %v1080 = vld [vmem:[%s126 + $0x1cd0] sm:$0xff]
        %v1081 = vld [vmem:[%s126 + $0x1cd8] sm:$0xff]
        %v1082 = vld [vmem:[%s126 + $0x1ce0] sm:$0xff]
        %v1083 = vld [vmem:[%s126 + $0x1ce8] sm:$0xff]
        %v1084 = vld [vmem:[%s126 + $0x1cf0] sm:$0xff]
        %v1085 = vld [vmem:[%s126 + $0x1cf8] sm:$0xff]
        %v1086 = vld [vmem:[%s126 + $0x1d00] sm:$0xff]
        %v1087 = vld [vmem:[%s126 + $0x1d08] sm:$0xff]
        %v1088 = vld [vmem:[%s126 + $0x1d10] sm:$0xff]
        %v1089 = vld [vmem:[%s126 + $0x1d18] sm:$0xff]
        %v1090 = vld [vmem:[%s126 + $0x1d20] sm:$0xff]
        %v1091 = vld [vmem:[%s126 + $0x1d28] sm:$0xff]
        %v1092 = vld [vmem:[%s126 + $0x1d30] sm:$0xff]
        %v1093 = vld [vmem:[%s126 + $0x1d38] sm:$0xff]
        %v1094 = vld [vmem:[%s126 + $0x1d40] sm:$0xff]
        %v1095 = vld [vmem:[%s126 + $0x1d48] sm:$0xff]
        %v1096 = vld [vmem:[%s126 + $0x1d50] sm:$0xff]
        %v1097 = vld [vmem:[%s126 + $0x1d58] sm:$0xff]
        %v1098 = vld [vmem:[%s126 + $0x1d60] sm:$0xff]
        %v1099 = vld [vmem:[%s126 + $0x1d68] sm:$0xff]
        %v1100 = vld [vmem:[%s126 + $0x1d70] sm:$0xff]
        %v1101 = vld [vmem:[%s126 + $0x1d78] sm:$0xff]
        %v1102 = vld [vmem:[%s126 + $0x1d80] sm:$0xff]
        %v1103 = vld [vmem:[%s126 + $0x1d88] sm:$0xff]
        %v1104 = vld [vmem:[%s126 + $0x1d90] sm:$0xff]
        %v1105 = vld [vmem:[%s126 + $0x1d98] sm:$0xff]
        %v1106 = vld [vmem:[%s126 + $0x1da0] sm:$0xff]
        %v1107 = vld [vmem:[%s126 + $0x1da8] sm:$0xff]
        %v1108 = vld [vmem:[%s126 + $0x1db0] sm:$0xff]
        %v1109 = vld [vmem:[%s126 + $0x1db8] sm:$0xff]
        %v1110 = vld [vmem:[%s126 + $0x1dc0] sm:$0xff]
        %v1111 = vld [vmem:[%s126 + $0x1dc8] sm:$0xff]
        %v1112 = vld [vmem:[%s126 + $0x1dd0] sm:$0xff]
        %v1113 = vld [vmem:[%s126 + $0x1dd8] sm:$0xff]
        %v1114 = vld [vmem:[%s126 + $0x1de0] sm:$0xff]
        %v1115 = vld [vmem:[%s126 + $0x1de8] sm:$0xff]
        %v1116 = vld [vmem:[%s126 + $0x1df0] sm:$0xff]
        %v1117 = vld [vmem:[%s126 + $0x1df8] sm:$0xff]
        %v1118 = vld [vmem:[%s126 + $0x1e00] sm:$0xff]
        %v1119 = vld [vmem:[%s126 + $0x1e08] sm:$0xff]
        %v1120 = vld [vmem:[%s126 + $0x1e10] sm:$0xff]
        %v1121 = vld [vmem:[%s126 + $0x1e18] sm:$0xff]
        %v1122 = vld [vmem:[%s126 + $0x1e20] sm:$0xff]
        %v1123 = vld [vmem:[%s126 + $0x1e28] sm:$0xff]
        %v1124 = vld [vmem:[%s126 + $0x1e30] sm:$0xff]
        %v1125 = vld [vmem:[%s126 + $0x1e38] sm:$0xff]
        %v1126 = vld [vmem:[%s126 + $0x1e40] sm:$0xff]
        %v1127 = vld [vmem:[%s126 + $0x1e48] sm:$0xff]
        %v1128 = vld [vmem:[%s126 + $0x1e50] sm:$0xff]
        %v1129 = vld [vmem:[%s126 + $0x1e58] sm:$0xff]
        %v1130 = vld [vmem:[%s126 + $0x1e60] sm:$0xff]
        %v1131 = vld [vmem:[%s126 + $0x1e68] sm:$0xff]
        %v1132 = vld [vmem:[%s126 + $0x1e70] sm:$0xff]
        %v1133 = vld [vmem:[%s126 + $0x1e78] sm:$0xff]
        %v1134 = vld [vmem:[%s126 + $0x1e80] sm:$0xff]
        %v1135 = vld [vmem:[%s126 + $0x1e88] sm:$0xff]
        %v1136 = vld [vmem:[%s126 + $0x1e90] sm:$0xff]
        %v1137 = vld [vmem:[%s126 + $0x1e98] sm:$0xff]
        %v1138 = vld [vmem:[%s126 + $0x1ea0] sm:$0xff]
        %v1139 = vld [vmem:[%s126 + $0x1ea8] sm:$0xff]
        %v1140 = vld [vmem:[%s126 + $0x1eb0] sm:$0xff]
        %v1141 = vld [vmem:[%s126 + $0x1eb8] sm:$0xff]
        %v1142 = vld [vmem:[%s126 + $0x1ec0] sm:$0xff]
        %v1143 = vld [vmem:[%s126 + $0x1ec8] sm:$0xff]
        %v1144 = vld [vmem:[%s126 + $0x1ed0] sm:$0xff]
        %v1145 = vld [vmem:[%s126 + $0x1ed8] sm:$0xff]
        %v1146 = vld [vmem:[%s126 + $0x1ee0] sm:$0xff]
        %v1147 = vld [vmem:[%s126 + $0x1ee8] sm:$0xff]
        %v1148 = vld [vmem:[%s126 + $0x1ef0] sm:$0xff]
        %v1149 = vld [vmem:[%s126 + $0x1ef8] sm:$0xff]
        %v1150 = vld [vmem:[%s126 + $0x1f00] sm:$0xff]
        %v1151 = vld [vmem:[%s126 + $0x1f08] sm:$0xff]
        %v1152 = vld [vmem:[%s126 + $0x1f10] sm:$0xff]
        %v1153 = vld [vmem:[%s126 + $0x1f18] sm:$0xff]
        %v1154 = vld [vmem:[%s126 + $0x1f20] sm:$0xff]
        %v1155 = vld [vmem:[%s126 + $0x1f28] sm:$0xff]
        %v1156 = vld [vmem:[%s126 + $0x1f30] sm:$0xff]
        %v1157 = vld [vmem:[%s126 + $0x1f38] sm:$0xff]
        %v1158 = vld [vmem:[%s126 + $0x1f40] sm:$0xff]
        %v1159 = vld [vmem:[%s126 + $0x1f48] sm:$0xff]
        %v1160 = vld [vmem:[%s126 + $0x1f50] sm:$0xff]
        %v1161 = vld [vmem:[%s126 + $0x1f58] sm:$0xff]
        %v1162 = vld [vmem:[%s126 + $0x1f60] sm:$0xff]
        %v1163 = vld [vmem:[%s126 + $0x1f68] sm:$0xff]
        %v1164 = vld [vmem:[%s126 + $0x1f70] sm:$0xff]
        %v1165 = vld [vmem:[%s126 + $0x1f78] sm:$0xff]
        %v1166 = vld [vmem:[%s126 + $0x1f80] sm:$0xff]
        %v1167 = vld [vmem:[%s126 + $0x1f88] sm:$0xff]
        %v1168 = vld [vmem:[%s126 + $0x1f90] sm:$0xff]
        %v1169 = vld [vmem:[%s126 + $0x1f98] sm:$0xff]
        %v1170 = vld [vmem:[%s126 + $0x1fa0] sm:$0xff]
        %v1171 = vld [vmem:[%s126 + $0x1fa8] sm:$0xff]
        %v1172 = vld [vmem:[%s126 + $0x1fb0] sm:$0xff]
        %v1173 = vld [vmem:[%s126 + $0x1fb8] sm:$0xff]
        %v1174 = vld [vmem:[%s126 + $0x1fc0] sm:$0xff]
        %v1175 = vld [vmem:[%s126 + $0x1fc8] sm:$0xff]
        %v1176 = vld [vmem:[%s126 + $0x1fd0] sm:$0xff]
        %v1177 = vld [vmem:[%s126 + $0x1fd8] sm:$0xff]
        %v1178 = vld [vmem:[%s126 + $0x1fe0] sm:$0xff]
        %v1179 = vld [vmem:[%s126 + $0x1fe8] sm:$0xff]
        %v1180 = vld [vmem:[%s126 + $0x1ff0] sm:$0xff]
        %v1181 = vld [vmem:[%s126 + $0x1ff8] sm:$0xff]
        %v1182 = vmul.f32 %v158, 255.0
        %v1183 = vmul.f32 %v159, 255.0
        %v1184 = vmul.f32 %v160, 255.0
        %v1185 = vmul.f32 %v161, 255.0
        %v1186 = vmul.f32 %v162, 255.0
        %v1187 = vmul.f32 %v163, 255.0
        %v1188 = vmul.f32 %v164, 255.0
        %v1189 = vmul.f32 %v165, 255.0
        %v1190 = vmul.f32 %v166, 255.0
        %v1191 = vmul.f32 %v167, 255.0
        %v1192 = vmul.f32 %v168, 255.0
        %v1193 = vmul.f32 %v169, 255.0
        %v1194 = vmul.f32 %v170, 255.0
        %v1195 = vmul.f32 %v171, 255.0
        %v1196 = vmul.f32 %v172, 255.0
        %v1197 = vmul.f32 %v173, 255.0
        %v1198 = vmul.f32 %v174, 255.0
        %v1199 = vmul.f32 %v175, 255.0
        %v1200 = vmul.f32 %v176, 255.0
        %v1201 = vmul.f32 %v177, 255.0
        %v1202 = vmul.f32 %v178, 255.0
        %v1203 = vmul.f32 %v179, 255.0
        %v1204 = vmul.f32 %v180, 255.0
        %v1205 = vmul.f32 %v181, 255.0
        %v1206 = vmul.f32 %v182, 255.0
        %v1207 = vmul.f32 %v183, 255.0
        %v1208 = vmul.f32 %v184, 255.0
        %v1209 = vmul.f32 %v185, 255.0
        %v1210 = vmul.f32 %v186, 255.0
        %v1211 = vmul.f32 %v187, 255.0
        %v1212 = vmul.f32 %v188, 255.0
        %v1213 = vmul.f32 %v189, 255.0
        %v1214 = vmul.f32 %v190, 255.0
        %v1215 = vmul.f32 %v191, 255.0
        %v1216 = vmul.f32 %v192, 255.0
        %v1217 = vmul.f32 %v193, 255.0
        %v1218 = vmul.f32 %v194, 255.0
        %v1219 = vmul.f32 %v195, 255.0
        %v1220 = vmul.f32 %v196, 255.0
        %v1221 = vmul.f32 %v197, 255.0
        %v1222 = vmul.f32 %v198, 255.0
        %v1223 = vmul.f32 %v199, 255.0
        %v1224 = vmul.f32 %v200, 255.0
        %v1225 = vmul.f32 %v201, 255.0
        %v1226 = vmul.f32 %v202, 255.0
        %v1227 = vmul.f32 %v203, 255.0
        %v1228 = vmul.f32 %v204, 255.0
        %v1229 = vmul.f32 %v205, 255.0
        %v1230 = vmul.f32 %v206, 255.0
        %v1231 = vmul.f32 %v207, 255.0
        %v1232 = vmul.f32 %v208, 255.0
        %v1233 = vmul.f32 %v209, 255.0
        %v1234 = vmul.f32 %v210, 255.0
        %v1235 = vmul.f32 %v211, 255.0
        %v1236 = vmul.f32 %v212, 255.0
        %v1237 = vmul.f32 %v213, 255.0
        %v1238 = vmul.f32 %v214, 255.0
        %v1239 = vmul.f32 %v215, 255.0
        %v1240 = vmul.f32 %v216, 255.0
        %v1241 = vmul.f32 %v217, 255.0
        %v1242 = vmul.f32 %v218, 255.0
        %v1243 = vmul.f32 %v219, 255.0
        %v1244 = vmul.f32 %v220, 255.0
        %v1245 = vmul.f32 %v221, 255.0
        %v1246 = vmul.f32 %v222, 255.0
        %v1247 = vmul.f32 %v223, 255.0
        %v1248 = vmul.f32 %v224, 255.0
        %v1249 = vmul.f32 %v225, 255.0
        %v1250 = vmul.f32 %v226, 255.0
        %v1251 = vmul.f32 %v227, 255.0
        %v1252 = vmul.f32 %v228, 255.0
        %v1253 = vmul.f32 %v229, 255.0
        %v1254 = vmul.f32 %v230, 255.0
        %v1255 = vmul.f32 %v231, 255.0
        %v1256 = vmul.f32 %v232, 255.0
        %v1257 = vmul.f32 %v233, 255.0
        %v1258 = vmul.f32 %v234, 255.0
        %v1259 = vmul.f32 %v235, 255.0
        %v1260 = vmul.f32 %v236, 255.0
        %v1261 = vmul.f32 %v237, 255.0
        %v1262 = vmul.f32 %v238, 255.0
        %v1263 = vmul.f32 %v239, 255.0
        %v1264 = vmul.f32 %v240, 255.0
        %v1265 = vmul.f32 %v241, 255.0
        %v1266 = vmul.f32 %v242, 255.0
        %v1267 = vmul.f32 %v243, 255.0
        %v1268 = vmul.f32 %v244, 255.0
        %v1269 = vmul.f32 %v245, 255.0
        %v1270 = vmul.f32 %v246, 255.0
        %v1271 = vmul.f32 %v247, 255.0
        %v1272 = vmul.f32 %v248, 255.0
        %v1273 = vmul.f32 %v249, 255.0
        %v1274 = vmul.f32 %v250, 255.0
        %v1275 = vmul.f32 %v251, 255.0
        %v1276 = vmul.f32 %v252, 255.0
        %v1277 = vmul.f32 %v253, 255.0
        %v1278 = vmul.f32 %v254, 255.0
        %v1279 = vmul.f32 %v255, 255.0
        %v1280 = vmul.f32 %v256, 255.0
        %v1281 = vmul.f32 %v257, 255.0
        %v1282 = vmul.f32 %v258, 255.0
        %v1283 = vmul.f32 %v259, 255.0
        %v1284 = vmul.f32 %v260, 255.0
        %v1285 = vmul.f32 %v261, 255.0
        %v1286 = vmul.f32 %v262, 255.0
        %v1287 = vmul.f32 %v263, 255.0
        %v1288 = vmul.f32 %v264, 255.0
        %v1289 = vmul.f32 %v265, 255.0
        %v1290 = vmul.f32 %v266, 255.0
        %v1291 = vmul.f32 %v267, 255.0
        %v1292 = vmul.f32 %v268, 255.0
        %v1293 = vmul.f32 %v269, 255.0
        %v1294 = vmul.f32 %v270, 255.0
        %v1295 = vmul.f32 %v271, 255.0
        %v1296 = vmul.f32 %v272, 255.0
        %v1297 = vmul.f32 %v273, 255.0
        %v1298 = vmul.f32 %v274, 255.0
        %v1299 = vmul.f32 %v275, 255.0
        %v1300 = vmul.f32 %v276, 255.0
        %v1301 = vmul.f32 %v277, 255.0
        %v1302 = vmul.f32 %v278, 255.0
        %v1303 = vmul.f32 %v279, 255.0
        %v1304 = vmul.f32 %v280, 255.0
        %v1305 = vmul.f32 %v281, 255.0
        %v1306 = vmul.f32 %v282, 255.0
        %v1307 = vmul.f32 %v283, 255.0
        %v1308 = vmul.f32 %v284, 255.0
        %v1309 = vmul.f32 %v285, 255.0
        %v1310 = vmul.f32 %v286, 255.0
        %v1311 = vmul.f32 %v287, 255.0
        %v1312 = vmul.f32 %v288, 255.0
        %v1313 = vmul.f32 %v289, 255.0
        %v1314 = vmul.f32 %v290, 255.0
        %v1315 = vmul.f32 %v291, 255.0
        %v1316 = vmul.f32 %v292, 255.0
        %v1317 = vmul.f32 %v293, 255.0
        %v1318 = vmul.f32 %v294, 255.0
        %v1319 = vmul.f32 %v295, 255.0
        %v1320 = vmul.f32 %v296, 255.0
        %v1321 = vmul.f32 %v297, 255.0
        %v1322 = vmul.f32 %v298, 255.0
        %v1323 = vmul.f32 %v299, 255.0
        %v1324 = vmul.f32 %v300, 255.0
        %v1325 = vmul.f32 %v301, 255.0
        %v1326 = vmul.f32 %v302, 255.0
        %v1327 = vmul.f32 %v303, 255.0
        %v1328 = vmul.f32 %v304, 255.0
        %v1329 = vmul.f32 %v305, 255.0
        %v1330 = vmul.f32 %v306, 255.0
        %v1331 = vmul.f32 %v307, 255.0
        %v1332 = vmul.f32 %v308, 255.0
        %v1333 = vmul.f32 %v309, 255.0
        %v1334 = vmul.f32 %v310, 255.0
        %v1335 = vmul.f32 %v311, 255.0
        %v1336 = vmul.f32 %v312, 255.0
        %v1337 = vmul.f32 %v313, 255.0
        %v1338 = vmul.f32 %v314, 255.0
        %v1339 = vmul.f32 %v315, 255.0
        %v1340 = vmul.f32 %v316, 255.0
        %v1341 = vmul.f32 %v317, 255.0
        %v1342 = vmul.f32 %v318, 255.0
        %v1343 = vmul.f32 %v319, 255.0
        %v1344 = vmul.f32 %v320, 255.0
        %v1345 = vmul.f32 %v321, 255.0
        %v1346 = vmul.f32 %v322, 255.0
        %v1347 = vmul.f32 %v323, 255.0
        %v1348 = vmul.f32 %v324, 255.0
        %v1349 = vmul.f32 %v325, 255.0
        %v1350 = vmul.f32 %v326, 255.0
        %v1351 = vmul.f32 %v327, 255.0
        %v1352 = vmul.f32 %v328, 255.0
        %v1353 = vmul.f32 %v329, 255.0
        %v1354 = vmul.f32 %v330, 255.0
        %v1355 = vmul.f32 %v331, 255.0
        %v1356 = vmul.f32 %v332, 255.0
        %v1357 = vmul.f32 %v333, 255.0
        %v1358 = vmul.f32 %v334, 255.0
        %v1359 = vmul.f32 %v335, 255.0
        %v1360 = vmul.f32 %v336, 255.0
        %v1361 = vmul.f32 %v337, 255.0
        %v1362 = vmul.f32 %v338, 255.0
        %v1363 = vmul.f32 %v339, 255.0
        %v1364 = vmul.f32 %v340, 255.0
        %v1365 = vmul.f32 %v341, 255.0
        %v1366 = vmul.f32 %v342, 255.0
        %v1367 = vmul.f32 %v343, 255.0
        %v1368 = vmul.f32 %v344, 255.0
        %v1369 = vmul.f32 %v345, 255.0
        %v1370 = vmul.f32 %v346, 255.0
        %v1371 = vmul.f32 %v347, 255.0
        %v1372 = vmul.f32 %v348, 255.0
        %v1373 = vmul.f32 %v349, 255.0
        %v1374 = vmul.f32 %v350, 255.0
        %v1375 = vmul.f32 %v351, 255.0
        %v1376 = vmul.f32 %v352, 255.0
        %v1377 = vmul.f32 %v353, 255.0
        %v1378 = vmul.f32 %v354, 255.0
        %v1379 = vmul.f32 %v355, 255.0
        %v1380 = vmul.f32 %v356, 255.0
        %v1381 = vmul.f32 %v357, 255.0
        %v1382 = vmul.f32 %v358, 255.0
        %v1383 = vmul.f32 %v359, 255.0
        %v1384 = vmul.f32 %v360, 255.0
        %v1385 = vmul.f32 %v361, 255.0
        %v1386 = vmul.f32 %v362, 255.0
        %v1387 = vmul.f32 %v363, 255.0
        %v1388 = vmul.f32 %v364, 255.0
        %v1389 = vmul.f32 %v365, 255.0
        %v1390 = vmul.f32 %v366, 255.0
        %v1391 = vmul.f32 %v367, 255.0
        %v1392 = vmul.f32 %v368, 255.0
        %v1393 = vmul.f32 %v369, 255.0
        %v1394 = vmul.f32 %v370, 255.0
        %v1395 = vmul.f32 %v371, 255.0
        %v1396 = vmul.f32 %v372, 255.0
        %v1397 = vmul.f32 %v373, 255.0
        %v1398 = vmul.f32 %v374, 255.0
        %v1399 = vmul.f32 %v375, 255.0
        %v1400 = vmul.f32 %v376, 255.0
        %v1401 = vmul.f32 %v377, 255.0
        %v1402 = vmul.f32 %v378, 255.0
        %v1403 = vmul.f32 %v379, 255.0
        %v1404 = vmul.f32 %v380, 255.0
        %v1405 = vmul.f32 %v381, 255.0
        %v1406 = vmul.f32 %v382, 255.0
        %v1407 = vmul.f32 %v383, 255.0
        %v1408 = vmul.f32 %v384, 255.0
        %v1409 = vmul.f32 %v385, 255.0
        %v1410 = vmul.f32 %v386, 255.0
        %v1411 = vmul.f32 %v387, 255.0
        %v1412 = vmul.f32 %v388, 255.0
        %v1413 = vmul.f32 %v389, 255.0
        %v1414 = vmul.f32 %v390, 255.0
        %v1415 = vmul.f32 %v391, 255.0
        %v1416 = vmul.f32 %v392, 255.0
        %v1417 = vmul.f32 %v393, 255.0
        %v1418 = vmul.f32 %v394, 255.0
        %v1419 = vmul.f32 %v395, 255.0
        %v1420 = vmul.f32 %v396, 255.0
        %v1421 = vmul.f32 %v397, 255.0
        %v1422 = vmul.f32 %v398, 255.0
        %v1423 = vmul.f32 %v399, 255.0
        %v1424 = vmul.f32 %v400, 255.0
        %v1425 = vmul.f32 %v401, 255.0
        %v1426 = vmul.f32 %v402, 255.0
        %v1427 = vmul.f32 %v403, 255.0
        %v1428 = vmul.f32 %v404, 255.0
        %v1429 = vmul.f32 %v405, 255.0
        %v1430 = vmul.f32 %v406, 255.0
        %v1431 = vmul.f32 %v407, 255.0
        %v1432 = vmul.f32 %v408, 255.0
        %v1433 = vmul.f32 %v409, 255.0
        %v1434 = vmul.f32 %v410, 255.0
        %v1435 = vmul.f32 %v411, 255.0
        %v1436 = vmul.f32 %v412, 255.0
        %v1437 = vmul.f32 %v413, 255.0
        %v1438 = vmul.f32 %v414, 255.0
        %v1439 = vmul.f32 %v415, 255.0
        %v1440 = vmul.f32 %v416, 255.0
        %v1441 = vmul.f32 %v417, 255.0
        %v1442 = vmul.f32 %v418, 255.0
        %v1443 = vmul.f32 %v419, 255.0
        %v1444 = vmul.f32 %v420, 255.0
        %v1445 = vmul.f32 %v421, 255.0
        %v1446 = vmul.f32 %v422, 255.0
        %v1447 = vmul.f32 %v423, 255.0
        %v1448 = vmul.f32 %v424, 255.0
        %v1449 = vmul.f32 %v425, 255.0
        %v1450 = vmul.f32 %v426, 255.0
        %v1451 = vmul.f32 %v427, 255.0
        %v1452 = vmul.f32 %v428, 255.0
        %v1453 = vmul.f32 %v429, 255.0
        %v1454 = vmul.f32 %v430, 255.0
        %v1455 = vmul.f32 %v431, 255.0
        %v1456 = vmul.f32 %v432, 255.0
        %v1457 = vmul.f32 %v433, 255.0
        %v1458 = vmul.f32 %v434, 255.0
        %v1459 = vmul.f32 %v435, 255.0
        %v1460 = vmul.f32 %v436, 255.0
        %v1461 = vmul.f32 %v437, 255.0
        %v1462 = vmul.f32 %v438, 255.0
        %v1463 = vmul.f32 %v439, 255.0
        %v1464 = vmul.f32 %v440, 255.0
        %v1465 = vmul.f32 %v441, 255.0
        %v1466 = vmul.f32 %v442, 255.0
        %v1467 = vmul.f32 %v443, 255.0
        %v1468 = vmul.f32 %v444, 255.0
        %v1469 = vmul.f32 %v445, 255.0
        %v1470 = vmul.f32 %v446, 255.0
        %v1471 = vmul.f32 %v447, 255.0
        %v1472 = vmul.f32 %v448, 255.0
        %v1473 = vmul.f32 %v449, 255.0
        %v1474 = vmul.f32 %v450, 255.0
        %v1475 = vmul.f32 %v451, 255.0
        %v1476 = vmul.f32 %v452, 255.0
        %v1477 = vmul.f32 %v453, 255.0
        %v1478 = vmul.f32 %v454, 255.0
        %v1479 = vmul.f32 %v455, 255.0
        %v1480 = vmul.f32 %v456, 255.0
        %v1481 = vmul.f32 %v457, 255.0
        %v1482 = vmul.f32 %v458, 255.0
        %v1483 = vmul.f32 %v459, 255.0
        %v1484 = vmul.f32 %v460, 255.0
        %v1485 = vmul.f32 %v461, 255.0
        %v1486 = vmul.f32 %v462, 255.0
        %v1487 = vmul.f32 %v463, 255.0
        %v1488 = vmul.f32 %v464, 255.0
        %v1489 = vmul.f32 %v465, 255.0
        %v1490 = vmul.f32 %v466, 255.0
        %v1491 = vmul.f32 %v467, 255.0
        %v1492 = vmul.f32 %v468, 255.0
        %v1493 = vmul.f32 %v469, 255.0
        %v1494 = vmul.f32 %v470, 255.0
        %v1495 = vmul.f32 %v471, 255.0
        %v1496 = vmul.f32 %v472, 255.0
        %v1497 = vmul.f32 %v473, 255.0
        %v1498 = vmul.f32 %v474, 255.0
        %v1499 = vmul.f32 %v475, 255.0
        %v1500 = vmul.f32 %v476, 255.0
        %v1501 = vmul.f32 %v477, 255.0
        %v1502 = vmul.f32 %v478, 255.0
        %v1503 = vmul.f32 %v479, 255.0
        %v1504 = vmul.f32 %v480, 255.0
        %v1505 = vmul.f32 %v481, 255.0
        %v1506 = vmul.f32 %v482, 255.0
        %v1507 = vmul.f32 %v483, 255.0
        %v1508 = vmul.f32 %v484, 255.0
        %v1509 = vmul.f32 %v485, 255.0
        %v1510 = vmul.f32 %v486, 255.0
        %v1511 = vmul.f32 %v487, 255.0
        %v1512 = vmul.f32 %v488, 255.0
        %v1513 = vmul.f32 %v489, 255.0
        %v1514 = vmul.f32 %v490, 255.0
        %v1515 = vmul.f32 %v491, 255.0
        %v1516 = vmul.f32 %v492, 255.0
        %v1517 = vmul.f32 %v493, 255.0
        %v1518 = vmul.f32 %v494, 255.0
        %v1519 = vmul.f32 %v495, 255.0
        %v1520 = vmul.f32 %v496, 255.0
        %v1521 = vmul.f32 %v497, 255.0
        %v1522 = vmul.f32 %v498, 255.0
        %v1523 = vmul.f32 %v499, 255.0
        %v1524 = vmul.f32 %v500, 255.0
        %v1525 = vmul.f32 %v501, 255.0
        %v1526 = vmul.f32 %v502, 255.0
        %v1527 = vmul.f32 %v503, 255.0
        %v1528 = vmul.f32 %v504, 255.0
        %v1529 = vmul.f32 %v505, 255.0
        %v1530 = vmul.f32 %v506, 255.0
        %v1531 = vmul.f32 %v507, 255.0
        %v1532 = vmul.f32 %v508, 255.0
        %v1533 = vmul.f32 %v509, 255.0
        %v1534 = vmul.f32 %v510, 255.0
        %v1535 = vmul.f32 %v511, 255.0
        %v1536 = vmul.f32 %v512, 255.0
        %v1537 = vmul.f32 %v513, 255.0
        %v1538 = vmul.f32 %v514, 255.0
        %v1539 = vmul.f32 %v515, 255.0
        %v1540 = vmul.f32 %v516, 255.0
        %v1541 = vmul.f32 %v517, 255.0
        %v1542 = vmul.f32 %v518, 255.0
        %v1543 = vmul.f32 %v519, 255.0
        %v1544 = vmul.f32 %v520, 255.0
        %v1545 = vmul.f32 %v521, 255.0
        %v1546 = vmul.f32 %v522, 255.0
        %v1547 = vmul.f32 %v523, 255.0
        %v1548 = vmul.f32 %v524, 255.0
        %v1549 = vmul.f32 %v525, 255.0
        %v1550 = vmul.f32 %v526, 255.0
        %v1551 = vmul.f32 %v527, 255.0
        %v1552 = vmul.f32 %v528, 255.0
        %v1553 = vmul.f32 %v529, 255.0
        %v1554 = vmul.f32 %v530, 255.0
        %v1555 = vmul.f32 %v531, 255.0
        %v1556 = vmul.f32 %v532, 255.0
        %v1557 = vmul.f32 %v533, 255.0
        %v1558 = vmul.f32 %v534, 255.0
        %v1559 = vmul.f32 %v535, 255.0
        %v1560 = vmul.f32 %v536, 255.0
        %v1561 = vmul.f32 %v537, 255.0
        %v1562 = vmul.f32 %v538, 255.0
        %v1563 = vmul.f32 %v539, 255.0
        %v1564 = vmul.f32 %v540, 255.0
        %v1565 = vmul.f32 %v541, 255.0
        %v1566 = vmul.f32 %v542, 255.0
        %v1567 = vmul.f32 %v543, 255.0
        %v1568 = vmul.f32 %v544, 255.0
        %v1569 = vmul.f32 %v545, 255.0
        %v1570 = vmul.f32 %v546, 255.0
        %v1571 = vmul.f32 %v547, 255.0
        %v1572 = vmul.f32 %v548, 255.0
        %v1573 = vmul.f32 %v549, 255.0
        %v1574 = vmul.f32 %v550, 255.0
        %v1575 = vmul.f32 %v551, 255.0
        %v1576 = vmul.f32 %v552, 255.0
        %v1577 = vmul.f32 %v553, 255.0
        %v1578 = vmul.f32 %v554, 255.0
        %v1579 = vmul.f32 %v555, 255.0
        %v1580 = vmul.f32 %v556, 255.0
        %v1581 = vmul.f32 %v557, 255.0
        %v1582 = vmul.f32 %v558, 255.0
        %v1583 = vmul.f32 %v559, 255.0
        %v1584 = vmul.f32 %v560, 255.0
        %v1585 = vmul.f32 %v561, 255.0
        %v1586 = vmul.f32 %v562, 255.0
        %v1587 = vmul.f32 %v563, 255.0
        %v1588 = vmul.f32 %v564, 255.0
        %v1589 = vmul.f32 %v565, 255.0
        %v1590 = vmul.f32 %v566, 255.0
        %v1591 = vmul.f32 %v567, 255.0
        %v1592 = vmul.f32 %v568, 255.0
        %v1593 = vmul.f32 %v569, 255.0
        %v1594 = vmul.f32 %v570, 255.0
        %v1595 = vmul.f32 %v571, 255.0
        %v1596 = vmul.f32 %v572, 255.0
        %v1597 = vmul.f32 %v573, 255.0
        %v1598 = vmul.f32 %v574, 255.0
        %v1599 = vmul.f32 %v575, 255.0
        %v1600 = vmul.f32 %v576, 255.0
        %v1601 = vmul.f32 %v577, 255.0
        %v1602 = vmul.f32 %v578, 255.0
        %v1603 = vmul.f32 %v579, 255.0
        %v1604 = vmul.f32 %v580, 255.0
        %v1605 = vmul.f32 %v581, 255.0
        %v1606 = vmul.f32 %v582, 255.0
        %v1607 = vmul.f32 %v583, 255.0
        %v1608 = vmul.f32 %v584, 255.0
        %v1609 = vmul.f32 %v585, 255.0
        %v1610 = vmul.f32 %v586, 255.0
        %v1611 = vmul.f32 %v587, 255.0
        %v1612 = vmul.f32 %v588, 255.0
        %v1613 = vmul.f32 %v589, 255.0
        %v1614 = vmul.f32 %v590, 255.0
        %v1615 = vmul.f32 %v591, 255.0
        %v1616 = vmul.f32 %v592, 255.0
        %v1617 = vmul.f32 %v593, 255.0
        %v1618 = vmul.f32 %v594, 255.0
        %v1619 = vmul.f32 %v595, 255.0
        %v1620 = vmul.f32 %v596, 255.0
        %v1621 = vmul.f32 %v597, 255.0
        %v1622 = vmul.f32 %v598, 255.0
        %v1623 = vmul.f32 %v599, 255.0
        %v1624 = vmul.f32 %v600, 255.0
        %v1625 = vmul.f32 %v601, 255.0
        %v1626 = vmul.f32 %v602, 255.0
        %v1627 = vmul.f32 %v603, 255.0
        %v1628 = vmul.f32 %v604, 255.0
        %v1629 = vmul.f32 %v605, 255.0
        %v1630 = vmul.f32 %v606, 255.0
        %v1631 = vmul.f32 %v607, 255.0
        %v1632 = vmul.f32 %v608, 255.0
        %v1633 = vmul.f32 %v609, 255.0
        %v1634 = vmul.f32 %v610, 255.0
        %v1635 = vmul.f32 %v611, 255.0
        %v1636 = vmul.f32 %v612, 255.0
        %v1637 = vmul.f32 %v613, 255.0
        %v1638 = vmul.f32 %v614, 255.0
        %v1639 = vmul.f32 %v615, 255.0
        %v1640 = vmul.f32 %v616, 255.0
        %v1641 = vmul.f32 %v617, 255.0
        %v1642 = vmul.f32 %v618, 255.0
        %v1643 = vmul.f32 %v619, 255.0
        %v1644 = vmul.f32 %v620, 255.0
        %v1645 = vmul.f32 %v621, 255.0
        %v1646 = vmul.f32 %v622, 255.0
        %v1647 = vmul.f32 %v623, 255.0
        %v1648 = vmul.f32 %v624, 255.0
        %v1649 = vmul.f32 %v625, 255.0
        %v1650 = vmul.f32 %v626, 255.0
        %v1651 = vmul.f32 %v627, 255.0
        %v1652 = vmul.f32 %v628, 255.0
        %v1653 = vmul.f32 %v629, 255.0
        %v1654 = vmul.f32 %v630, 255.0
        %v1655 = vmul.f32 %v631, 255.0
        %v1656 = vmul.f32 %v632, 255.0
        %v1657 = vmul.f32 %v633, 255.0
        %v1658 = vmul.f32 %v634, 255.0
        %v1659 = vmul.f32 %v635, 255.0
        %v1660 = vmul.f32 %v636, 255.0
        %v1661 = vmul.f32 %v637, 255.0
        %v1662 = vmul.f32 %v638, 255.0
        %v1663 = vmul.f32 %v639, 255.0
        %v1664 = vmul.f32 %v640, 255.0
        %v1665 = vmul.f32 %v641, 255.0
        %v1666 = vmul.f32 %v642, 255.0
        %v1667 = vmul.f32 %v643, 255.0
        %v1668 = vmul.f32 %v644, 255.0
        %v1669 = vmul.f32 %v645, 255.0
        %v1670 = vmul.f32 %v646, 255.0
        %v1671 = vmul.f32 %v647, 255.0
        %v1672 = vmul.f32 %v648, 255.0
        %v1673 = vmul.f32 %v649, 255.0
        %v1674 = vmul.f32 %v650, 255.0
        %v1675 = vmul.f32 %v651, 255.0
        %v1676 = vmul.f32 %v652, 255.0
        %v1677 = vmul.f32 %v653, 255.0
        %v1678 = vmul.f32 %v654, 255.0
        %v1679 = vmul.f32 %v655, 255.0
        %v1680 = vmul.f32 %v656, 255.0
        %v1681 = vmul.f32 %v657, 255.0
        %v1682 = vmul.f32 %v658, 255.0
        %v1683 = vmul.f32 %v659, 255.0
        %v1684 = vmul.f32 %v660, 255.0
        %v1685 = vmul.f32 %v661, 255.0
        %v1686 = vmul.f32 %v662, 255.0
        %v1687 = vmul.f32 %v663, 255.0
        %v1688 = vmul.f32 %v664, 255.0
        %v1689 = vmul.f32 %v665, 255.0
        %v1690 = vmul.f32 %v666, 255.0
        %v1691 = vmul.f32 %v667, 255.0
        %v1692 = vmul.f32 %v668, 255.0
        %v1693 = vmul.f32 %v669, 255.0
        %v1694 = vmul.f32 %v670, 255.0
        %v1695 = vmul.f32 %v671, 255.0
        %v1696 = vmul.f32 %v672, 255.0
        %v1697 = vmul.f32 %v673, 255.0
        %v1698 = vmul.f32 %v674, 255.0
        %v1699 = vmul.f32 %v675, 255.0
        %v1700 = vmul.f32 %v676, 255.0
        %v1701 = vmul.f32 %v677, 255.0
        %v1702 = vmul.f32 %v678, 255.0
        %v1703 = vmul.f32 %v679, 255.0
        %v1704 = vmul.f32 %v680, 255.0
        %v1705 = vmul.f32 %v681, 255.0
        %v1706 = vmul.f32 %v682, 255.0
        %v1707 = vmul.f32 %v683, 255.0
        %v1708 = vmul.f32 %v684, 255.0
        %v1709 = vmul.f32 %v685, 255.0
        %v1710 = vmul.f32 %v686, 255.0
        %v1711 = vmul.f32 %v687, 255.0
        %v1712 = vmul.f32 %v688, 255.0
        %v1713 = vmul.f32 %v689, 255.0
        %v1714 = vmul.f32 %v690, 255.0
        %v1715 = vmul.f32 %v691, 255.0
        %v1716 = vmul.f32 %v692, 255.0
        %v1717 = vmul.f32 %v693, 255.0
        %v1718 = vmul.f32 %v694, 255.0
        %v1719 = vmul.f32 %v695, 255.0
        %v1720 = vmul.f32 %v696, 255.0
        %v1721 = vmul.f32 %v697, 255.0
        %v1722 = vmul.f32 %v698, 255.0
        %v1723 = vmul.f32 %v699, 255.0
        %v1724 = vmul.f32 %v700, 255.0
        %v1725 = vmul.f32 %v701, 255.0
        %v1726 = vmul.f32 %v702, 255.0
        %v1727 = vmul.f32 %v703, 255.0
        %v1728 = vmul.f32 %v704, 255.0
        %v1729 = vmul.f32 %v705, 255.0
        %v1730 = vmul.f32 %v706, 255.0
        %v1731 = vmul.f32 %v707, 255.0
        %v1732 = vmul.f32 %v708, 255.0
        %v1733 = vmul.f32 %v709, 255.0
        %v1734 = vmul.f32 %v710, 255.0
        %v1735 = vmul.f32 %v711, 255.0
        %v1736 = vmul.f32 %v712, 255.0
        %v1737 = vmul.f32 %v713, 255.0
        %v1738 = vmul.f32 %v714, 255.0
        %v1739 = vmul.f32 %v715, 255.0
        %v1740 = vmul.f32 %v716, 255.0
        %v1741 = vmul.f32 %v717, 255.0
        %v1742 = vmul.f32 %v718, 255.0
        %v1743 = vmul.f32 %v719, 255.0
        %v1744 = vmul.f32 %v720, 255.0
        %v1745 = vmul.f32 %v721, 255.0
        %v1746 = vmul.f32 %v722, 255.0
        %v1747 = vmul.f32 %v723, 255.0
        %v1748 = vmul.f32 %v724, 255.0
        %v1749 = vmul.f32 %v725, 255.0
        %v1750 = vmul.f32 %v726, 255.0
        %v1751 = vmul.f32 %v727, 255.0
        %v1752 = vmul.f32 %v728, 255.0
        %v1753 = vmul.f32 %v729, 255.0
        %v1754 = vmul.f32 %v730, 255.0
        %v1755 = vmul.f32 %v731, 255.0
        %v1756 = vmul.f32 %v732, 255.0
        %v1757 = vmul.f32 %v733, 255.0
        %v1758 = vmul.f32 %v734, 255.0
        %v1759 = vmul.f32 %v735, 255.0
        %v1760 = vmul.f32 %v736, 255.0
        %v1761 = vmul.f32 %v737, 255.0
        %v1762 = vmul.f32 %v738, 255.0
        %v1763 = vmul.f32 %v739, 255.0
        %v1764 = vmul.f32 %v740, 255.0
        %v1765 = vmul.f32 %v741, 255.0
        %v1766 = vmul.f32 %v742, 255.0
        %v1767 = vmul.f32 %v743, 255.0
        %v1768 = vmul.f32 %v744, 255.0
        %v1769 = vmul.f32 %v745, 255.0
        %v1770 = vmul.f32 %v746, 255.0
        %v1771 = vmul.f32 %v747, 255.0
        %v1772 = vmul.f32 %v748, 255.0
        %v1773 = vmul.f32 %v749, 255.0
        %v1774 = vmul.f32 %v750, 255.0
        %v1775 = vmul.f32 %v751, 255.0
        %v1776 = vmul.f32 %v752, 255.0
        %v1777 = vmul.f32 %v753, 255.0
        %v1778 = vmul.f32 %v754, 255.0
        %v1779 = vmul.f32 %v755, 255.0
        %v1780 = vmul.f32 %v756, 255.0
        %v1781 = vmul.f32 %v757, 255.0
        %v1782 = vmul.f32 %v758, 255.0
        %v1783 = vmul.f32 %v759, 255.0
        %v1784 = vmul.f32 %v760, 255.0
        %v1785 = vmul.f32 %v761, 255.0
        %v1786 = vmul.f32 %v762, 255.0
        %v1787 = vmul.f32 %v763, 255.0
        %v1788 = vmul.f32 %v764, 255.0
        %v1789 = vmul.f32 %v765, 255.0
        %v1790 = vmul.f32 %v766, 255.0
        %v1791 = vmul.f32 %v767, 255.0
        %v1792 = vmul.f32 %v768, 255.0
        %v1793 = vmul.f32 %v769, 255.0
        %v1794 = vmul.f32 %v770, 255.0
        %v1795 = vmul.f32 %v771, 255.0
        %v1796 = vmul.f32 %v772, 255.0
        %v1797 = vmul.f32 %v773, 255.0
        %v1798 = vmul.f32 %v774, 255.0
        %v1799 = vmul.f32 %v775, 255.0
        %v1800 = vmul.f32 %v776, 255.0
        %v1801 = vmul.f32 %v777, 255.0
        %v1802 = vmul.f32 %v778, 255.0
        %v1803 = vmul.f32 %v779, 255.0
        %v1804 = vmul.f32 %v780, 255.0
        %v1805 = vmul.f32 %v781, 255.0
        %v1806 = vmul.f32 %v782, 255.0
        %v1807 = vmul.f32 %v783, 255.0
        %v1808 = vmul.f32 %v784, 255.0
        %v1809 = vmul.f32 %v785, 255.0
        %v1810 = vmul.f32 %v786, 255.0
        %v1811 = vmul.f32 %v787, 255.0
        %v1812 = vmul.f32 %v788, 255.0
        %v1813 = vmul.f32 %v789, 255.0
        %v1814 = vmul.f32 %v790, 255.0
        %v1815 = vmul.f32 %v791, 255.0
        %v1816 = vmul.f32 %v792, 255.0
        %v1817 = vmul.f32 %v793, 255.0
        %v1818 = vmul.f32 %v794, 255.0
        %v1819 = vmul.f32 %v795, 255.0
        %v1820 = vmul.f32 %v796, 255.0
        %v1821 = vmul.f32 %v797, 255.0
        %v1822 = vmul.f32 %v798, 255.0
        %v1823 = vmul.f32 %v799, 255.0
        %v1824 = vmul.f32 %v800, 255.0
        %v1825 = vmul.f32 %v801, 255.0
        %v1826 = vmul.f32 %v802, 255.0
        %v1827 = vmul.f32 %v803, 255.0
        %v1828 = vmul.f32 %v804, 255.0
        %v1829 = vmul.f32 %v805, 255.0
        %v1830 = vmul.f32 %v806, 255.0
        %v1831 = vmul.f32 %v807, 255.0
        %v1832 = vmul.f32 %v808, 255.0
        %v1833 = vmul.f32 %v809, 255.0
        %v1834 = vmul.f32 %v810, 255.0
        %v1835 = vmul.f32 %v811, 255.0
        %v1836 = vmul.f32 %v812, 255.0
        %v1837 = vmul.f32 %v813, 255.0
        %v1838 = vmul.f32 %v814, 255.0
        %v1839 = vmul.f32 %v815, 255.0
        %v1840 = vmul.f32 %v816, 255.0
        %v1841 = vmul.f32 %v817, 255.0
        %v1842 = vmul.f32 %v818, 255.0
        %v1843 = vmul.f32 %v819, 255.0
        %v1844 = vmul.f32 %v820, 255.0
        %v1845 = vmul.f32 %v821, 255.0
        %v1846 = vmul.f32 %v822, 255.0
        %v1847 = vmul.f32 %v823, 255.0
        %v1848 = vmul.f32 %v824, 255.0
        %v1849 = vmul.f32 %v825, 255.0
        %v1850 = vmul.f32 %v826, 255.0
        %v1851 = vmul.f32 %v827, 255.0
        %v1852 = vmul.f32 %v828, 255.0
        %v1853 = vmul.f32 %v829, 255.0
        %v1854 = vmul.f32 %v830, 255.0
        %v1855 = vmul.f32 %v831, 255.0
        %v1856 = vmul.f32 %v832, 255.0
        %v1857 = vmul.f32 %v833, 255.0
        %v1858 = vmul.f32 %v834, 255.0
        %v1859 = vmul.f32 %v835, 255.0
        %v1860 = vmul.f32 %v836, 255.0
        %v1861 = vmul.f32 %v837, 255.0
        %v1862 = vmul.f32 %v838, 255.0
        %v1863 = vmul.f32 %v839, 255.0
        %v1864 = vmul.f32 %v840, 255.0
        %v1865 = vmul.f32 %v841, 255.0
        %v1866 = vmul.f32 %v842, 255.0
        %v1867 = vmul.f32 %v843, 255.0
        %v1868 = vmul.f32 %v844, 255.0
        %v1869 = vmul.f32 %v845, 255.0
        %v1870 = vmul.f32 %v846, 255.0
        %v1871 = vmul.f32 %v847, 255.0
        %v1872 = vmul.f32 %v848, 255.0
        %v1873 = vmul.f32 %v849, 255.0
        %v1874 = vmul.f32 %v850, 255.0
        %v1875 = vmul.f32 %v851, 255.0
        %v1876 = vmul.f32 %v852, 255.0
        %v1877 = vmul.f32 %v853, 255.0
        %v1878 = vmul.f32 %v854, 255.0
        %v1879 = vmul.f32 %v855, 255.0
        %v1880 = vmul.f32 %v856, 255.0
        %v1881 = vmul.f32 %v857, 255.0
        %v1882 = vmul.f32 %v858, 255.0
        %v1883 = vmul.f32 %v859, 255.0
        %v1884 = vmul.f32 %v860, 255.0
        %v1885 = vmul.f32 %v861, 255.0
        %v1886 = vmul.f32 %v862, 255.0
        %v1887 = vmul.f32 %v863, 255.0
        %v1888 = vmul.f32 %v864, 255.0
        %v1889 = vmul.f32 %v865, 255.0
        %v1890 = vmul.f32 %v866, 255.0
        %v1891 = vmul.f32 %v867, 255.0
        %v1892 = vmul.f32 %v868, 255.0
        %v1893 = vmul.f32 %v869, 255.0
        %v1894 = vmul.f32 %v870, 255.0
        %v1895 = vmul.f32 %v871, 255.0
        %v1896 = vmul.f32 %v872, 255.0
        %v1897 = vmul.f32 %v873, 255.0
        %v1898 = vmul.f32 %v874, 255.0
        %v1899 = vmul.f32 %v875, 255.0
        %v1900 = vmul.f32 %v876, 255.0
        %v1901 = vmul.f32 %v877, 255.0
        %v1902 = vmul.f32 %v878, 255.0
        %v1903 = vmul.f32 %v879, 255.0
        %v1904 = vmul.f32 %v880, 255.0
        %v1905 = vmul.f32 %v881, 255.0
        %v1906 = vmul.f32 %v882, 255.0
        %v1907 = vmul.f32 %v883, 255.0
        %v1908 = vmul.f32 %v884, 255.0
        %v1909 = vmul.f32 %v885, 255.0
        %v1910 = vmul.f32 %v886, 255.0
        %v1911 = vmul.f32 %v887, 255.0
        %v1912 = vmul.f32 %v888, 255.0
        %v1913 = vmul.f32 %v889, 255.0
        %v1914 = vmul.f32 %v890, 255.0
        %v1915 = vmul.f32 %v891, 255.0
        %v1916 = vmul.f32 %v892, 255.0
        %v1917 = vmul.f32 %v893, 255.0
        %v1918 = vmul.f32 %v894, 255.0
        %v1919 = vmul.f32 %v895, 255.0
        %v1920 = vmul.f32 %v896, 255.0
        %v1921 = vmul.f32 %v897, 255.0
        %v1922 = vmul.f32 %v898, 255.0
        %v1923 = vmul.f32 %v899, 255.0
        %v1924 = vmul.f32 %v900, 255.0
        %v1925 = vmul.f32 %v901, 255.0
        %v1926 = vmul.f32 %v902, 255.0
        %v1927 = vmul.f32 %v903, 255.0
        %v1928 = vmul.f32 %v904, 255.0
        %v1929 = vmul.f32 %v905, 255.0
        %v1930 = vmul.f32 %v906, 255.0
        %v1931 = vmul.f32 %v907, 255.0
        %v1932 = vmul.f32 %v908, 255.0
        %v1933 = vmul.f32 %v909, 255.0
        %v1934 = vmul.f32 %v910, 255.0
        %v1935 = vmul.f32 %v911, 255.0
        %v1936 = vmul.f32 %v912, 255.0
        %v1937 = vmul.f32 %v913, 255.0
        %v1938 = vmul.f32 %v914, 255.0
        %v1939 = vmul.f32 %v915, 255.0
        %v1940 = vmul.f32 %v916, 255.0
        %v1941 = vmul.f32 %v917, 255.0
        %v1942 = vmul.f32 %v918, 255.0
        %v1943 = vmul.f32 %v919, 255.0
        %v1944 = vmul.f32 %v920, 255.0
        %v1945 = vmul.f32 %v921, 255.0
        %v1946 = vmul.f32 %v922, 255.0
        %v1947 = vmul.f32 %v923, 255.0
        %v1948 = vmul.f32 %v924, 255.0
        %v1949 = vmul.f32 %v925, 255.0
        %v1950 = vmul.f32 %v926, 255.0
        %v1951 = vmul.f32 %v927, 255.0
        %v1952 = vmul.f32 %v928, 255.0
        %v1953 = vmul.f32 %v929, 255.0
        %v1954 = vmul.f32 %v930, 255.0
        %v1955 = vmul.f32 %v931, 255.0
        %v1956 = vmul.f32 %v932, 255.0
        %v1957 = vmul.f32 %v933, 255.0
        %v1958 = vmul.f32 %v934, 255.0
        %v1959 = vmul.f32 %v935, 255.0
        %v1960 = vmul.f32 %v936, 255.0
        %v1961 = vmul.f32 %v937, 255.0
        %v1962 = vmul.f32 %v938, 255.0
        %v1963 = vmul.f32 %v939, 255.0
        %v1964 = vmul.f32 %v940, 255.0
        %v1965 = vmul.f32 %v941, 255.0
        %v1966 = vmul.f32 %v942, 255.0
        %v1967 = vmul.f32 %v943, 255.0
        %v1968 = vmul.f32 %v944, 255.0
        %v1969 = vmul.f32 %v945, 255.0
        %v1970 = vmul.f32 %v946, 255.0
        %v1971 = vmul.f32 %v947, 255.0
        %v1972 = vmul.f32 %v948, 255.0
        %v1973 = vmul.f32 %v949, 255.0
        %v1974 = vmul.f32 %v950, 255.0
        %v1975 = vmul.f32 %v951, 255.0
        %v1976 = vmul.f32 %v952, 255.0
        %v1977 = vmul.f32 %v953, 255.0
        %v1978 = vmul.f32 %v954, 255.0
        %v1979 = vmul.f32 %v955, 255.0
        %v1980 = vmul.f32 %v956, 255.0
        %v1981 = vmul.f32 %v957, 255.0
        %v1982 = vmul.f32 %v958, 255.0
        %v1983 = vmul.f32 %v959, 255.0
        %v1984 = vmul.f32 %v960, 255.0
        %v1985 = vmul.f32 %v961, 255.0
        %v1986 = vmul.f32 %v962, 255.0
        %v1987 = vmul.f32 %v963, 255.0
        %v1988 = vmul.f32 %v964, 255.0
        %v1989 = vmul.f32 %v965, 255.0
        %v1990 = vmul.f32 %v966, 255.0
        %v1991 = vmul.f32 %v967, 255.0
        %v1992 = vmul.f32 %v968, 255.0
        %v1993 = vmul.f32 %v969, 255.0
        %v1994 = vmul.f32 %v970, 255.0
        %v1995 = vmul.f32 %v971, 255.0
        %v1996 = vmul.f32 %v972, 255.0
        %v1997 = vmul.f32 %v973, 255.0
        %v1998 = vmul.f32 %v974, 255.0
        %v1999 = vmul.f32 %v975, 255.0
        %v2000 = vmul.f32 %v976, 255.0
        %v2001 = vmul.f32 %v977, 255.0
        %v2002 = vmul.f32 %v978, 255.0
        %v2003 = vmul.f32 %v979, 255.0
        %v2004 = vmul.f32 %v980, 255.0
        %v2005 = vmul.f32 %v981, 255.0
        %v2006 = vmul.f32 %v982, 255.0
        %v2007 = vmul.f32 %v983, 255.0
        %v2008 = vmul.f32 %v984, 255.0
        %v2009 = vmul.f32 %v985, 255.0
        %v2010 = vmul.f32 %v986, 255.0
        %v2011 = vmul.f32 %v987, 255.0
        %v2012 = vmul.f32 %v988, 255.0
        %v2013 = vmul.f32 %v989, 255.0
        %v2014 = vmul.f32 %v990, 255.0
        %v2015 = vmul.f32 %v991, 255.0
        %v2016 = vmul.f32 %v992, 255.0
        %v2017 = vmul.f32 %v993, 255.0
        %v2018 = vmul.f32 %v994, 255.0
        %v2019 = vmul.f32 %v995, 255.0
        %v2020 = vmul.f32 %v996, 255.0
        %v2021 = vmul.f32 %v997, 255.0
        %v2022 = vmul.f32 %v998, 255.0
        %v2023 = vmul.f32 %v999, 255.0
        %v2024 = vmul.f32 %v1000, 255.0
        %v2025 = vmul.f32 %v1001, 255.0
        %v2026 = vmul.f32 %v1002, 255.0
        %v2027 = vmul.f32 %v1003, 255.0
        %v2028 = vmul.f32 %v1004, 255.0
        %v2029 = vmul.f32 %v1005, 255.0
        %v2030 = vmul.f32 %v1006, 255.0
        %v2031 = vmul.f32 %v1007, 255.0
        %v2032 = vmul.f32 %v1008, 255.0
        %v2033 = vmul.f32 %v1009, 255.0
        %v2034 = vmul.f32 %v1010, 255.0
        %v2035 = vmul.f32 %v1011, 255.0
        %v2036 = vmul.f32 %v1012, 255.0
        %v2037 = vmul.f32 %v1013, 255.0
        %v2038 = vmul.f32 %v1014, 255.0
        %v2039 = vmul.f32 %v1015, 255.0
        %v2040 = vmul.f32 %v1016, 255.0
        %v2041 = vmul.f32 %v1017, 255.0
        %v2042 = vmul.f32 %v1018, 255.0
        %v2043 = vmul.f32 %v1019, 255.0
        %v2044 = vmul.f32 %v1020, 255.0
        %v2045 = vmul.f32 %v1021, 255.0
        %v2046 = vmul.f32 %v1022, 255.0
        %v2047 = vmul.f32 %v1023, 255.0
        %v2048 = vmul.f32 %v1024, 255.0
        %v2049 = vmul.f32 %v1025, 255.0
        %v2050 = vmul.f32 %v1026, 255.0
        %v2051 = vmul.f32 %v1027, 255.0
        %v2052 = vmul.f32 %v1028, 255.0
        %v2053 = vmul.f32 %v1029, 255.0
        %v2054 = vmul.f32 %v1030, 255.0
        %v2055 = vmul.f32 %v1031, 255.0
        %v2056 = vmul.f32 %v1032, 255.0
        %v2057 = vmul.f32 %v1033, 255.0
        %v2058 = vmul.f32 %v1034, 255.0
        %v2059 = vmul.f32 %v1035, 255.0
        %v2060 = vmul.f32 %v1036, 255.0
        %v2061 = vmul.f32 %v1037, 255.0
        %v2062 = vmul.f32 %v1038, 255.0
        %v2063 = vmul.f32 %v1039, 255.0
        %v2064 = vmul.f32 %v1040, 255.0
        %v2065 = vmul.f32 %v1041, 255.0
        %v2066 = vmul.f32 %v1042, 255.0
        %v2067 = vmul.f32 %v1043, 255.0
        %v2068 = vmul.f32 %v1044, 255.0
        %v2069 = vmul.f32 %v1045, 255.0
        %v2070 = vmul.f32 %v1046, 255.0
        %v2071 = vmul.f32 %v1047, 255.0
        %v2072 = vmul.f32 %v1048, 255.0
        %v2073 = vmul.f32 %v1049, 255.0
        %v2074 = vmul.f32 %v1050, 255.0
        %v2075 = vmul.f32 %v1051, 255.0
        %v2076 = vmul.f32 %v1052, 255.0
        %v2077 = vmul.f32 %v1053, 255.0
        %v2078 = vmul.f32 %v1054, 255.0
        %v2079 = vmul.f32 %v1055, 255.0
        %v2080 = vmul.f32 %v1056, 255.0
        %v2081 = vmul.f32 %v1057, 255.0
        %v2082 = vmul.f32 %v1058, 255.0
        %v2083 = vmul.f32 %v1059, 255.0
        %v2084 = vmul.f32 %v1060, 255.0
        %v2085 = vmul.f32 %v1061, 255.0
        %v2086 = vmul.f32 %v1062, 255.0
        %v2087 = vmul.f32 %v1063, 255.0
        %v2088 = vmul.f32 %v1064, 255.0
        %v2089 = vmul.f32 %v1065, 255.0
        %v2090 = vmul.f32 %v1066, 255.0
        %v2091 = vmul.f32 %v1067, 255.0
        %v2092 = vmul.f32 %v1068, 255.0
        %v2093 = vmul.f32 %v1069, 255.0
        %v2094 = vmul.f32 %v1070, 255.0
        %v2095 = vmul.f32 %v1071, 255.0
        %v2096 = vmul.f32 %v1072, 255.0
        %v2097 = vmul.f32 %v1073, 255.0
        %v2098 = vmul.f32 %v1074, 255.0
        %v2099 = vmul.f32 %v1075, 255.0
        %v2100 = vmul.f32 %v1076, 255.0
        %v2101 = vmul.f32 %v1077, 255.0
        %v2102 = vmul.f32 %v1078, 255.0
        %v2103 = vmul.f32 %v1079, 255.0
        %v2104 = vmul.f32 %v1080, 255.0
        %v2105 = vmul.f32 %v1081, 255.0
        %v2106 = vmul.f32 %v1082, 255.0
        %v2107 = vmul.f32 %v1083, 255.0
        %v2108 = vmul.f32 %v1084, 255.0
        %v2109 = vmul.f32 %v1085, 255.0
        %v2110 = vmul.f32 %v1086, 255.0
        %v2111 = vmul.f32 %v1087, 255.0
        %v2112 = vmul.f32 %v1088, 255.0
        %v2113 = vmul.f32 %v1089, 255.0
        %v2114 = vmul.f32 %v1090, 255.0
        %v2115 = vmul.f32 %v1091, 255.0
        %v2116 = vmul.f32 %v1092, 255.0
        %v2117 = vmul.f32 %v1093, 255.0
        %v2118 = vmul.f32 %v1094, 255.0
        %v2119 = vmul.f32 %v1095, 255.0
        %v2120 = vmul.f32 %v1096, 255.0
        %v2121 = vmul.f32 %v1097, 255.0
        %v2122 = vmul.f32 %v1098, 255.0
        %v2123 = vmul.f32 %v1099, 255.0
        %v2124 = vmul.f32 %v1100, 255.0
        %v2125 = vmul.f32 %v1101, 255.0
        %v2126 = vmul.f32 %v1102, 255.0
        %v2127 = vmul.f32 %v1103, 255.0
        %v2128 = vmul.f32 %v1104, 255.0
        %v2129 = vmul.f32 %v1105, 255.0
        %v2130 = vmul.f32 %v1106, 255.0
        %v2131 = vmul.f32 %v1107, 255.0
        %v2132 = vmul.f32 %v1108, 255.0
        %v2133 = vmul.f32 %v1109, 255.0
        %v2134 = vmul.f32 %v1110, 255.0
        %v2135 = vmul.f32 %v1111, 255.0
        %v2136 = vmul.f32 %v1112, 255.0
        %v2137 = vmul.f32 %v1113, 255.0
        %v2138 = vmul.f32 %v1114, 255.0
        %v2139 = vmul.f32 %v1115, 255.0
        %v2140 = vmul.f32 %v1116, 255.0
        %v2141 = vmul.f32 %v1117, 255.0
        %v2142 = vmul.f32 %v1118, 255.0
        %v2143 = vmul.f32 %v1119, 255.0
        %v2144 = vmul.f32 %v1120, 255.0
        %v2145 = vmul.f32 %v1121, 255.0
        %v2146 = vmul.f32 %v1122, 255.0
        %v2147 = vmul.f32 %v1123, 255.0
        %v2148 = vmul.f32 %v1124, 255.0
        %v2149 = vmul.f32 %v1125, 255.0
        %v2150 = vmul.f32 %v1126, 255.0
        %v2151 = vmul.f32 %v1127, 255.0
        %v2152 = vmul.f32 %v1128, 255.0
        %v2153 = vmul.f32 %v1129, 255.0
        %v2154 = vmul.f32 %v1130, 255.0
        %v2155 = vmul.f32 %v1131, 255.0
        %v2156 = vmul.f32 %v1132, 255.0
        %v2157 = vmul.f32 %v1133, 255.0
        %v2158 = vmul.f32 %v1134, 255.0
        %v2159 = vmul.f32 %v1135, 255.0
        %v2160 = vmul.f32 %v1136, 255.0
        %v2161 = vmul.f32 %v1137, 255.0
        %v2162 = vmul.f32 %v1138, 255.0
        %v2163 = vmul.f32 %v1139, 255.0
        %v2164 = vmul.f32 %v1140, 255.0
        %v2165 = vmul.f32 %v1141, 255.0
        %v2166 = vmul.f32 %v1142, 255.0
        %v2167 = vmul.f32 %v1143, 255.0
        %v2168 = vmul.f32 %v1144, 255.0
        %v2169 = vmul.f32 %v1145, 255.0
        %v2170 = vmul.f32 %v1146, 255.0
        %v2171 = vmul.f32 %v1147, 255.0
        %v2172 = vmul.f32 %v1148, 255.0
        %v2173 = vmul.f32 %v1149, 255.0
        %v2174 = vmul.f32 %v1150, 255.0
        %v2175 = vmul.f32 %v1151, 255.0
        %v2176 = vmul.f32 %v1152, 255.0
        %v2177 = vmul.f32 %v1153, 255.0
        %v2178 = vmul.f32 %v1154, 255.0
        %v2179 = vmul.f32 %v1155, 255.0
        %v2180 = vmul.f32 %v1156, 255.0
        %v2181 = vmul.f32 %v1157, 255.0
        %v2182 = vmul.f32 %v1158, 255.0
        %v2183 = vmul.f32 %v1159, 255.0
        %v2184 = vmul.f32 %v1160, 255.0
        %v2185 = vmul.f32 %v1161, 255.0
        %v2186 = vmul.f32 %v1162, 255.0
        %v2187 = vmul.f32 %v1163, 255.0
        %v2188 = vmul.f32 %v1164, 255.0
        %v2189 = vmul.f32 %v1165, 255.0
        %v2190 = vmul.f32 %v1166, 255.0
        %v2191 = vmul.f32 %v1167, 255.0
        %v2192 = vmul.f32 %v1168, 255.0
        %v2193 = vmul.f32 %v1169, 255.0
        %v2194 = vmul.f32 %v1170, 255.0
        %v2195 = vmul.f32 %v1171, 255.0
        %v2196 = vmul.f32 %v1172, 255.0
        %v2197 = vmul.f32 %v1173, 255.0
        %v2198 = vmul.f32 %v1174, 255.0
        %v2199 = vmul.f32 %v1175, 255.0
        %v2200 = vmul.f32 %v1176, 255.0
        %v2201 = vmul.f32 %v1177, 255.0
        %v2202 = vmul.f32 %v1178, 255.0
        %v2203 = vmul.f32 %v1179, 255.0
        %v2204 = vmul.f32 %v1180, 255.0
        %v2205 = vmul.f32 %v1181, 255.0
        %v2206 = vcvt.f32.s32.ties.to.even %v1182
        %v2207 = vcvt.f32.s32.ties.to.even %v1183
        %v2208 = vcvt.f32.s32.ties.to.even %v1184
        %v2209 = vcvt.f32.s32.ties.to.even %v1185
        %v2210 = vcvt.f32.s32.ties.to.even %v1186
        %v2211 = vcvt.f32.s32.ties.to.even %v1187
        %v2212 = vcvt.f32.s32.ties.to.even %v1188
        %v2213 = vcvt.f32.s32.ties.to.even %v1189
        %v2214 = vcvt.f32.s32.ties.to.even %v1190
        %v2215 = vcvt.f32.s32.ties.to.even %v1191
        %v2216 = vcvt.f32.s32.ties.to.even %v1192
        %v2217 = vcvt.f32.s32.ties.to.even %v1193
        %v2218 = vcvt.f32.s32.ties.to.even %v1194
        %v2219 = vcvt.f32.s32.ties.to.even %v1195
        %v2220 = vcvt.f32.s32.ties.to.even %v1196
        %v2221 = vcvt.f32.s32.ties.to.even %v1197
        %v2222 = vcvt.f32.s32.ties.to.even %v1198
        %v2223 = vcvt.f32.s32.ties.to.even %v1199
        %v2224 = vcvt.f32.s32.ties.to.even %v1200
        %v2225 = vcvt.f32.s32.ties.to.even %v1201
        %v2226 = vcvt.f32.s32.ties.to.even %v1202
        %v2227 = vcvt.f32.s32.ties.to.even %v1203
        %v2228 = vcvt.f32.s32.ties.to.even %v1204
        %v2229 = vcvt.f32.s32.ties.to.even %v1205
        %v2230 = vcvt.f32.s32.ties.to.even %v1206
        %v2231 = vcvt.f32.s32.ties.to.even %v1207
        %v2232 = vcvt.f32.s32.ties.to.even %v1208
        %v2233 = vcvt.f32.s32.ties.to.even %v1209
        %v2234 = vcvt.f32.s32.ties.to.even %v1210
        %v2235 = vcvt.f32.s32.ties.to.even %v1211
        %v2236 = vcvt.f32.s32.ties.to.even %v1212
        %v2237 = vcvt.f32.s32.ties.to.even %v1213
        %v2238 = vcvt.f32.s32.ties.to.even %v1214
        %v2239 = vcvt.f32.s32.ties.to.even %v1215
        %v2240 = vcvt.f32.s32.ties.to.even %v1216
        %v2241 = vcvt.f32.s32.ties.to.even %v1217
        %v2242 = vcvt.f32.s32.ties.to.even %v1218
        %v2243 = vcvt.f32.s32.ties.to.even %v1219
        %v2244 = vcvt.f32.s32.ties.to.even %v1220
        %v2245 = vcvt.f32.s32.ties.to.even %v1221
        %v2246 = vcvt.f32.s32.ties.to.even %v1222
        %v2247 = vcvt.f32.s32.ties.to.even %v1223
        %v2248 = vcvt.f32.s32.ties.to.even %v1224
        %v2249 = vcvt.f32.s32.ties.to.even %v1225
        %v2250 = vcvt.f32.s32.ties.to.even %v1226
        %v2251 = vcvt.f32.s32.ties.to.even %v1227
        %v2252 = vcvt.f32.s32.ties.to.even %v1228
        %v2253 = vcvt.f32.s32.ties.to.even %v1229
        %v2254 = vcvt.f32.s32.ties.to.even %v1230
        %v2255 = vcvt.f32.s32.ties.to.even %v1231
        %v2256 = vcvt.f32.s32.ties.to.even %v1232
        %v2257 = vcvt.f32.s32.ties.to.even %v1233
        %v2258 = vcvt.f32.s32.ties.to.even %v1234
        %v2259 = vcvt.f32.s32.ties.to.even %v1235
        %v2260 = vcvt.f32.s32.ties.to.even %v1236
        %v2261 = vcvt.f32.s32.ties.to.even %v1237
        %v2262 = vcvt.f32.s32.ties.to.even %v1238
        %v2263 = vcvt.f32.s32.ties.to.even %v1239
        %v2264 = vcvt.f32.s32.ties.to.even %v1240
        %v2265 = vcvt.f32.s32.ties.to.even %v1241
        %v2266 = vcvt.f32.s32.ties.to.even %v1242
        %v2267 = vcvt.f32.s32.ties.to.even %v1243
        %v2268 = vcvt.f32.s32.ties.to.even %v1244
        %v2269 = vcvt.f32.s32.ties.to.even %v1245
        %v2270 = vcvt.f32.s32.ties.to.even %v1246
        %v2271 = vcvt.f32.s32.ties.to.even %v1247
        %v2272 = vcvt.f32.s32.ties.to.even %v1248
        %v2273 = vcvt.f32.s32.ties.to.even %v1249
        %v2274 = vcvt.f32.s32.ties.to.even %v1250
        %v2275 = vcvt.f32.s32.ties.to.even %v1251
        %v2276 = vcvt.f32.s32.ties.to.even %v1252
        %v2277 = vcvt.f32.s32.ties.to.even %v1253
        %v2278 = vcvt.f32.s32.ties.to.even %v1254
        %v2279 = vcvt.f32.s32.ties.to.even %v1255
        %v2280 = vcvt.f32.s32.ties.to.even %v1256
        %v2281 = vcvt.f32.s32.ties.to.even %v1257
        %v2282 = vcvt.f32.s32.ties.to.even %v1258
        %v2283 = vcvt.f32.s32.ties.to.even %v1259
        %v2284 = vcvt.f32.s32.ties.to.even %v1260
        %v2285 = vcvt.f32.s32.ties.to.even %v1261
        %v2286 = vcvt.f32.s32.ties.to.even %v1262
        %v2287 = vcvt.f32.s32.ties.to.even %v1263
        %v2288 = vcvt.f32.s32.ties.to.even %v1264
        %v2289 = vcvt.f32.s32.ties.to.even %v1265
        %v2290 = vcvt.f32.s32.ties.to.even %v1266
        %v2291 = vcvt.f32.s32.ties.to.even %v1267
        %v2292 = vcvt.f32.s32.ties.to.even %v1268
        %v2293 = vcvt.f32.s32.ties.to.even %v1269
        %v2294 = vcvt.f32.s32.ties.to.even %v1270
        %v2295 = vcvt.f32.s32.ties.to.even %v1271
        %v2296 = vcvt.f32.s32.ties.to.even %v1272
        %v2297 = vcvt.f32.s32.ties.to.even %v1273
        %v2298 = vcvt.f32.s32.ties.to.even %v1274
        %v2299 = vcvt.f32.s32.ties.to.even %v1275
        %v2300 = vcvt.f32.s32.ties.to.even %v1276
        %v2301 = vcvt.f32.s32.ties.to.even %v1277
        %v2302 = vcvt.f32.s32.ties.to.even %v1278
        %v2303 = vcvt.f32.s32.ties.to.even %v1279
        %v2304 = vcvt.f32.s32.ties.to.even %v1280
        %v2305 = vcvt.f32.s32.ties.to.even %v1281
        %v2306 = vcvt.f32.s32.ties.to.even %v1282
        %v2307 = vcvt.f32.s32.ties.to.even %v1283
        %v2308 = vcvt.f32.s32.ties.to.even %v1284
        %v2309 = vcvt.f32.s32.ties.to.even %v1285
        %v2310 = vcvt.f32.s32.ties.to.even %v1286
        %v2311 = vcvt.f32.s32.ties.to.even %v1287
        %v2312 = vcvt.f32.s32.ties.to.even %v1288
        %v2313 = vcvt.f32.s32.ties.to.even %v1289
        %v2314 = vcvt.f32.s32.ties.to.even %v1290
        %v2315 = vcvt.f32.s32.ties.to.even %v1291
        %v2316 = vcvt.f32.s32.ties.to.even %v1292
        %v2317 = vcvt.f32.s32.ties.to.even %v1293
        %v2318 = vcvt.f32.s32.ties.to.even %v1294
        %v2319 = vcvt.f32.s32.ties.to.even %v1295
        %v2320 = vcvt.f32.s32.ties.to.even %v1296
        %v2321 = vcvt.f32.s32.ties.to.even %v1297
        %v2322 = vcvt.f32.s32.ties.to.even %v1298
        %v2323 = vcvt.f32.s32.ties.to.even %v1299
        %v2324 = vcvt.f32.s32.ties.to.even %v1300
        %v2325 = vcvt.f32.s32.ties.to.even %v1301
        %v2326 = vcvt.f32.s32.ties.to.even %v1302
        %v2327 = vcvt.f32.s32.ties.to.even %v1303
        %v2328 = vcvt.f32.s32.ties.to.even %v1304
        %v2329 = vcvt.f32.s32.ties.to.even %v1305
        %v2330 = vcvt.f32.s32.ties.to.even %v1306
        %v2331 = vcvt.f32.s32.ties.to.even %v1307
        %v2332 = vcvt.f32.s32.ties.to.even %v1308
        %v2333 = vcvt.f32.s32.ties.to.even %v1309
        %v2334 = vcvt.f32.s32.ties.to.even %v1310
        %v2335 = vcvt.f32.s32.ties.to.even %v1311
        %v2336 = vcvt.f32.s32.ties.to.even %v1312
        %v2337 = vcvt.f32.s32.ties.to.even %v1313
        %v2338 = vcvt.f32.s32.ties.to.even %v1314
        %v2339 = vcvt.f32.s32.ties.to.even %v1315
        %v2340 = vcvt.f32.s32.ties.to.even %v1316
        %v2341 = vcvt.f32.s32.ties.to.even %v1317
        %v2342 = vcvt.f32.s32.ties.to.even %v1318
        %v2343 = vcvt.f32.s32.ties.to.even %v1319
        %v2344 = vcvt.f32.s32.ties.to.even %v1320
        %v2345 = vcvt.f32.s32.ties.to.even %v1321
        %v2346 = vcvt.f32.s32.ties.to.even %v1322
        %v2347 = vcvt.f32.s32.ties.to.even %v1323
        %v2348 = vcvt.f32.s32.ties.to.even %v1324
        %v2349 = vcvt.f32.s32.ties.to.even %v1325
        %v2350 = vcvt.f32.s32.ties.to.even %v1326
        %v2351 = vcvt.f32.s32.ties.to.even %v1327
        %v2352 = vcvt.f32.s32.ties.to.even %v1328
        %v2353 = vcvt.f32.s32.ties.to.even %v1329
        %v2354 = vcvt.f32.s32.ties.to.even %v1330
        %v2355 = vcvt.f32.s32.ties.to.even %v1331
        %v2356 = vcvt.f32.s32.ties.to.even %v1332
        %v2357 = vcvt.f32.s32.ties.to.even %v1333
        %v2358 = vcvt.f32.s32.ties.to.even %v1334
        %v2359 = vcvt.f32.s32.ties.to.even %v1335
        %v2360 = vcvt.f32.s32.ties.to.even %v1336
        %v2361 = vcvt.f32.s32.ties.to.even %v1337
        %v2362 = vcvt.f32.s32.ties.to.even %v1338
        %v2363 = vcvt.f32.s32.ties.to.even %v1339
        %v2364 = vcvt.f32.s32.ties.to.even %v1340
        %v2365 = vcvt.f32.s32.ties.to.even %v1341
        %v2366 = vcvt.f32.s32.ties.to.even %v1342
        %v2367 = vcvt.f32.s32.ties.to.even %v1343
        %v2368 = vcvt.f32.s32.ties.to.even %v1344
        %v2369 = vcvt.f32.s32.ties.to.even %v1345
        %v2370 = vcvt.f32.s32.ties.to.even %v1346
        %v2371 = vcvt.f32.s32.ties.to.even %v1347
        %v2372 = vcvt.f32.s32.ties.to.even %v1348
        %v2373 = vcvt.f32.s32.ties.to.even %v1349
        %v2374 = vcvt.f32.s32.ties.to.even %v1350
        %v2375 = vcvt.f32.s32.ties.to.even %v1351
        %v2376 = vcvt.f32.s32.ties.to.even %v1352
        %v2377 = vcvt.f32.s32.ties.to.even %v1353
        %v2378 = vcvt.f32.s32.ties.to.even %v1354
        %v2379 = vcvt.f32.s32.ties.to.even %v1355
        %v2380 = vcvt.f32.s32.ties.to.even %v1356
        %v2381 = vcvt.f32.s32.ties.to.even %v1357
        %v2382 = vcvt.f32.s32.ties.to.even %v1358
        %v2383 = vcvt.f32.s32.ties.to.even %v1359
        %v2384 = vcvt.f32.s32.ties.to.even %v1360
        %v2385 = vcvt.f32.s32.ties.to.even %v1361
        %v2386 = vcvt.f32.s32.ties.to.even %v1362
        %v2387 = vcvt.f32.s32.ties.to.even %v1363
        %v2388 = vcvt.f32.s32.ties.to.even %v1364
        %v2389 = vcvt.f32.s32.ties.to.even %v1365
        %v2390 = vcvt.f32.s32.ties.to.even %v1366
        %v2391 = vcvt.f32.s32.ties.to.even %v1367
        %v2392 = vcvt.f32.s32.ties.to.even %v1368
        %v2393 = vcvt.f32.s32.ties.to.even %v1369
        %v2394 = vcvt.f32.s32.ties.to.even %v1370
        %v2395 = vcvt.f32.s32.ties.to.even %v1371
        %v2396 = vcvt.f32.s32.ties.to.even %v1372
        %v2397 = vcvt.f32.s32.ties.to.even %v1373
        %v2398 = vcvt.f32.s32.ties.to.even %v1374
        %v2399 = vcvt.f32.s32.ties.to.even %v1375
        %v2400 = vcvt.f32.s32.ties.to.even %v1376
        %v2401 = vcvt.f32.s32.ties.to.even %v1377
        %v2402 = vcvt.f32.s32.ties.to.even %v1378
        %v2403 = vcvt.f32.s32.ties.to.even %v1379
        %v2404 = vcvt.f32.s32.ties.to.even %v1380
        %v2405 = vcvt.f32.s32.ties.to.even %v1381
        %v2406 = vcvt.f32.s32.ties.to.even %v1382
        %v2407 = vcvt.f32.s32.ties.to.even %v1383
        %v2408 = vcvt.f32.s32.ties.to.even %v1384
        %v2409 = vcvt.f32.s32.ties.to.even %v1385
        %v2410 = vcvt.f32.s32.ties.to.even %v1386
        %v2411 = vcvt.f32.s32.ties.to.even %v1387
        %v2412 = vcvt.f32.s32.ties.to.even %v1388
        %v2413 = vcvt.f32.s32.ties.to.even %v1389
        %v2414 = vcvt.f32.s32.ties.to.even %v1390
        %v2415 = vcvt.f32.s32.ties.to.even %v1391
        %v2416 = vcvt.f32.s32.ties.to.even %v1392
        %v2417 = vcvt.f32.s32.ties.to.even %v1393
        %v2418 = vcvt.f32.s32.ties.to.even %v1394
        %v2419 = vcvt.f32.s32.ties.to.even %v1395
        %v2420 = vcvt.f32.s32.ties.to.even %v1396
        %v2421 = vcvt.f32.s32.ties.to.even %v1397
        %v2422 = vcvt.f32.s32.ties.to.even %v1398
        %v2423 = vcvt.f32.s32.ties.to.even %v1399
        %v2424 = vcvt.f32.s32.ties.to.even %v1400
        %v2425 = vcvt.f32.s32.ties.to.even %v1401
        %v2426 = vcvt.f32.s32.ties.to.even %v1402
        %v2427 = vcvt.f32.s32.ties.to.even %v1403
        %v2428 = vcvt.f32.s32.ties.to.even %v1404
        %v2429 = vcvt.f32.s32.ties.to.even %v1405
        %v2430 = vcvt.f32.s32.ties.to.even %v1406
        %v2431 = vcvt.f32.s32.ties.to.even %v1407
        %v2432 = vcvt.f32.s32.ties.to.even %v1408
        %v2433 = vcvt.f32.s32.ties.to.even %v1409
        %v2434 = vcvt.f32.s32.ties.to.even %v1410
        %v2435 = vcvt.f32.s32.ties.to.even %v1411
        %v2436 = vcvt.f32.s32.ties.to.even %v1412
        %v2437 = vcvt.f32.s32.ties.to.even %v1413
        %v2438 = vcvt.f32.s32.ties.to.even %v1414
        %v2439 = vcvt.f32.s32.ties.to.even %v1415
        %v2440 = vcvt.f32.s32.ties.to.even %v1416
        %v2441 = vcvt.f32.s32.ties.to.even %v1417
        %v2442 = vcvt.f32.s32.ties.to.even %v1418
        %v2443 = vcvt.f32.s32.ties.to.even %v1419
        %v2444 = vcvt.f32.s32.ties.to.even %v1420
        %v2445 = vcvt.f32.s32.ties.to.even %v1421
        %v2446 = vcvt.f32.s32.ties.to.even %v1422
        %v2447 = vcvt.f32.s32.ties.to.even %v1423
        %v2448 = vcvt.f32.s32.ties.to.even %v1424
        %v2449 = vcvt.f32.s32.ties.to.even %v1425
        %v2450 = vcvt.f32.s32.ties.to.even %v1426
        %v2451 = vcvt.f32.s32.ties.to.even %v1427
        %v2452 = vcvt.f32.s32.ties.to.even %v1428
        %v2453 = vcvt.f32.s32.ties.to.even %v1429
        %v2454 = vcvt.f32.s32.ties.to.even %v1430
        %v2455 = vcvt.f32.s32.ties.to.even %v1431
        %v2456 = vcvt.f32.s32.ties.to.even %v1432
        %v2457 = vcvt.f32.s32.ties.to.even %v1433
        %v2458 = vcvt.f32.s32.ties.to.even %v1434
        %v2459 = vcvt.f32.s32.ties.to.even %v1435
        %v2460 = vcvt.f32.s32.ties.to.even %v1436
        %v2461 = vcvt.f32.s32.ties.to.even %v1437
        %v2462 = vcvt.f32.s32.ties.to.even %v1438
        %v2463 = vcvt.f32.s32.ties.to.even %v1439
        %v2464 = vcvt.f32.s32.ties.to.even %v1440
        %v2465 = vcvt.f32.s32.ties.to.even %v1441
        %v2466 = vcvt.f32.s32.ties.to.even %v1442
        %v2467 = vcvt.f32.s32.ties.to.even %v1443
        %v2468 = vcvt.f32.s32.ties.to.even %v1444
        %v2469 = vcvt.f32.s32.ties.to.even %v1445
        %v2470 = vcvt.f32.s32.ties.to.even %v1446
        %v2471 = vcvt.f32.s32.ties.to.even %v1447
        %v2472 = vcvt.f32.s32.ties.to.even %v1448
        %v2473 = vcvt.f32.s32.ties.to.even %v1449
        %v2474 = vcvt.f32.s32.ties.to.even %v1450
        %v2475 = vcvt.f32.s32.ties.to.even %v1451
        %v2476 = vcvt.f32.s32.ties.to.even %v1452
        %v2477 = vcvt.f32.s32.ties.to.even %v1453
        %v2478 = vcvt.f32.s32.ties.to.even %v1454
        %v2479 = vcvt.f32.s32.ties.to.even %v1455
        %v2480 = vcvt.f32.s32.ties.to.even %v1456
        %v2481 = vcvt.f32.s32.ties.to.even %v1457
        %v2482 = vcvt.f32.s32.ties.to.even %v1458
        %v2483 = vcvt.f32.s32.ties.to.even %v1459
        %v2484 = vcvt.f32.s32.ties.to.even %v1460
        %v2485 = vcvt.f32.s32.ties.to.even %v1461
        %v2486 = vcvt.f32.s32.ties.to.even %v1462
        %v2487 = vcvt.f32.s32.ties.to.even %v1463
        %v2488 = vcvt.f32.s32.ties.to.even %v1464
        %v2489 = vcvt.f32.s32.ties.to.even %v1465
        %v2490 = vcvt.f32.s32.ties.to.even %v1466
        %v2491 = vcvt.f32.s32.ties.to.even %v1467
        %v2492 = vcvt.f32.s32.ties.to.even %v1468
        %v2493 = vcvt.f32.s32.ties.to.even %v1469
        %v2494 = vcvt.f32.s32.ties.to.even %v1470
        %v2495 = vcvt.f32.s32.ties.to.even %v1471
        %v2496 = vcvt.f32.s32.ties.to.even %v1472
        %v2497 = vcvt.f32.s32.ties.to.even %v1473
        %v2498 = vcvt.f32.s32.ties.to.even %v1474
        %v2499 = vcvt.f32.s32.ties.to.even %v1475
        %v2500 = vcvt.f32.s32.ties.to.even %v1476
        %v2501 = vcvt.f32.s32.ties.to.even %v1477
        %v2502 = vcvt.f32.s32.ties.to.even %v1478
        %v2503 = vcvt.f32.s32.ties.to.even %v1479
        %v2504 = vcvt.f32.s32.ties.to.even %v1480
        %v2505 = vcvt.f32.s32.ties.to.even %v1481
        %v2506 = vcvt.f32.s32.ties.to.even %v1482
        %v2507 = vcvt.f32.s32.ties.to.even %v1483
        %v2508 = vcvt.f32.s32.ties.to.even %v1484
        %v2509 = vcvt.f32.s32.ties.to.even %v1485
        %v2510 = vcvt.f32.s32.ties.to.even %v1486
        %v2511 = vcvt.f32.s32.ties.to.even %v1487
        %v2512 = vcvt.f32.s32.ties.to.even %v1488
        %v2513 = vcvt.f32.s32.ties.to.even %v1489
        %v2514 = vcvt.f32.s32.ties.to.even %v1490
        %v2515 = vcvt.f32.s32.ties.to.even %v1491
        %v2516 = vcvt.f32.s32.ties.to.even %v1492
        %v2517 = vcvt.f32.s32.ties.to.even %v1493
        %v2518 = vcvt.f32.s32.ties.to.even %v1494
        %v2519 = vcvt.f32.s32.ties.to.even %v1495
        %v2520 = vcvt.f32.s32.ties.to.even %v1496
        %v2521 = vcvt.f32.s32.ties.to.even %v1497
        %v2522 = vcvt.f32.s32.ties.to.even %v1498
        %v2523 = vcvt.f32.s32.ties.to.even %v1499
        %v2524 = vcvt.f32.s32.ties.to.even %v1500
        %v2525 = vcvt.f32.s32.ties.to.even %v1501
        %v2526 = vcvt.f32.s32.ties.to.even %v1502
        %v2527 = vcvt.f32.s32.ties.to.even %v1503
        %v2528 = vcvt.f32.s32.ties.to.even %v1504
        %v2529 = vcvt.f32.s32.ties.to.even %v1505
        %v2530 = vcvt.f32.s32.ties.to.even %v1506
        %v2531 = vcvt.f32.s32.ties.to.even %v1507
        %v2532 = vcvt.f32.s32.ties.to.even %v1508
        %v2533 = vcvt.f32.s32.ties.to.even %v1509
        %v2534 = vcvt.f32.s32.ties.to.even %v1510
        %v2535 = vcvt.f32.s32.ties.to.even %v1511
        %v2536 = vcvt.f32.s32.ties.to.even %v1512
        %v2537 = vcvt.f32.s32.ties.to.even %v1513
        %v2538 = vcvt.f32.s32.ties.to.even %v1514
        %v2539 = vcvt.f32.s32.ties.to.even %v1515
        %v2540 = vcvt.f32.s32.ties.to.even %v1516
        %v2541 = vcvt.f32.s32.ties.to.even %v1517
        %v2542 = vcvt.f32.s32.ties.to.even %v1518
        %v2543 = vcvt.f32.s32.ties.to.even %v1519
        %v2544 = vcvt.f32.s32.ties.to.even %v1520
        %v2545 = vcvt.f32.s32.ties.to.even %v1521
        %v2546 = vcvt.f32.s32.ties.to.even %v1522
        %v2547 = vcvt.f32.s32.ties.to.even %v1523
        %v2548 = vcvt.f32.s32.ties.to.even %v1524
        %v2549 = vcvt.f32.s32.ties.to.even %v1525
        %v2550 = vcvt.f32.s32.ties.to.even %v1526
        %v2551 = vcvt.f32.s32.ties.to.even %v1527
        %v2552 = vcvt.f32.s32.ties.to.even %v1528
        %v2553 = vcvt.f32.s32.ties.to.even %v1529
        %v2554 = vcvt.f32.s32.ties.to.even %v1530
        %v2555 = vcvt.f32.s32.ties.to.even %v1531
        %v2556 = vcvt.f32.s32.ties.to.even %v1532
        %v2557 = vcvt.f32.s32.ties.to.even %v1533
        %v2558 = vcvt.f32.s32.ties.to.even %v1534
        %v2559 = vcvt.f32.s32.ties.to.even %v1535
        %v2560 = vcvt.f32.s32.ties.to.even %v1536
        %v2561 = vcvt.f32.s32.ties.to.even %v1537
        %v2562 = vcvt.f32.s32.ties.to.even %v1538
        %v2563 = vcvt.f32.s32.ties.to.even %v1539
        %v2564 = vcvt.f32.s32.ties.to.even %v1540
        %v2565 = vcvt.f32.s32.ties.to.even %v1541
        %v2566 = vcvt.f32.s32.ties.to.even %v1542
        %v2567 = vcvt.f32.s32.ties.to.even %v1543
        %v2568 = vcvt.f32.s32.ties.to.even %v1544
        %v2569 = vcvt.f32.s32.ties.to.even %v1545
        %v2570 = vcvt.f32.s32.ties.to.even %v1546
        %v2571 = vcvt.f32.s32.ties.to.even %v1547
        %v2572 = vcvt.f32.s32.ties.to.even %v1548
        %v2573 = vcvt.f32.s32.ties.to.even %v1549
        %v2574 = vcvt.f32.s32.ties.to.even %v1550
        %v2575 = vcvt.f32.s32.ties.to.even %v1551
        %v2576 = vcvt.f32.s32.ties.to.even %v1552
        %v2577 = vcvt.f32.s32.ties.to.even %v1553
        %v2578 = vcvt.f32.s32.ties.to.even %v1554
        %v2579 = vcvt.f32.s32.ties.to.even %v1555
        %v2580 = vcvt.f32.s32.ties.to.even %v1556
        %v2581 = vcvt.f32.s32.ties.to.even %v1557
        %v2582 = vcvt.f32.s32.ties.to.even %v1558
        %v2583 = vcvt.f32.s32.ties.to.even %v1559
        %v2584 = vcvt.f32.s32.ties.to.even %v1560
        %v2585 = vcvt.f32.s32.ties.to.even %v1561
        %v2586 = vcvt.f32.s32.ties.to.even %v1562
        %v2587 = vcvt.f32.s32.ties.to.even %v1563
        %v2588 = vcvt.f32.s32.ties.to.even %v1564
        %v2589 = vcvt.f32.s32.ties.to.even %v1565
        %v2590 = vcvt.f32.s32.ties.to.even %v1566
        %v2591 = vcvt.f32.s32.ties.to.even %v1567
        %v2592 = vcvt.f32.s32.ties.to.even %v1568
        %v2593 = vcvt.f32.s32.ties.to.even %v1569
        %v2594 = vcvt.f32.s32.ties.to.even %v1570
        %v2595 = vcvt.f32.s32.ties.to.even %v1571
        %v2596 = vcvt.f32.s32.ties.to.even %v1572
        %v2597 = vcvt.f32.s32.ties.to.even %v1573
        %v2598 = vcvt.f32.s32.ties.to.even %v1574
        %v2599 = vcvt.f32.s32.ties.to.even %v1575
        %v2600 = vcvt.f32.s32.ties.to.even %v1576
        %v2601 = vcvt.f32.s32.ties.to.even %v1577
        %v2602 = vcvt.f32.s32.ties.to.even %v1578
        %v2603 = vcvt.f32.s32.ties.to.even %v1579
        %v2604 = vcvt.f32.s32.ties.to.even %v1580
        %v2605 = vcvt.f32.s32.ties.to.even %v1581
        %v2606 = vcvt.f32.s32.ties.to.even %v1582
        %v2607 = vcvt.f32.s32.ties.to.even %v1583
        %v2608 = vcvt.f32.s32.ties.to.even %v1584
        %v2609 = vcvt.f32.s32.ties.to.even %v1585
        %v2610 = vcvt.f32.s32.ties.to.even %v1586
        %v2611 = vcvt.f32.s32.ties.to.even %v1587
        %v2612 = vcvt.f32.s32.ties.to.even %v1588
        %v2613 = vcvt.f32.s32.ties.to.even %v1589
        %v2614 = vcvt.f32.s32.ties.to.even %v1590
        %v2615 = vcvt.f32.s32.ties.to.even %v1591
        %v2616 = vcvt.f32.s32.ties.to.even %v1592
        %v2617 = vcvt.f32.s32.ties.to.even %v1593
        %v2618 = vcvt.f32.s32.ties.to.even %v1594
        %v2619 = vcvt.f32.s32.ties.to.even %v1595
        %v2620 = vcvt.f32.s32.ties.to.even %v1596
        %v2621 = vcvt.f32.s32.ties.to.even %v1597
        %v2622 = vcvt.f32.s32.ties.to.even %v1598
        %v2623 = vcvt.f32.s32.ties.to.even %v1599
        %v2624 = vcvt.f32.s32.ties.to.even %v1600
        %v2625 = vcvt.f32.s32.ties.to.even %v1601
        %v2626 = vcvt.f32.s32.ties.to.even %v1602
        %v2627 = vcvt.f32.s32.ties.to.even %v1603
        %v2628 = vcvt.f32.s32.ties.to.even %v1604
        %v2629 = vcvt.f32.s32.ties.to.even %v1605
        %v2630 = vcvt.f32.s32.ties.to.even %v1606
        %v2631 = vcvt.f32.s32.ties.to.even %v1607
        %v2632 = vcvt.f32.s32.ties.to.even %v1608
        %v2633 = vcvt.f32.s32.ties.to.even %v1609
        %v2634 = vcvt.f32.s32.ties.to.even %v1610
        %v2635 = vcvt.f32.s32.ties.to.even %v1611
        %v2636 = vcvt.f32.s32.ties.to.even %v1612
        %v2637 = vcvt.f32.s32.ties.to.even %v1613
        %v2638 = vcvt.f32.s32.ties.to.even %v1614
        %v2639 = vcvt.f32.s32.ties.to.even %v1615
        %v2640 = vcvt.f32.s32.ties.to.even %v1616
        %v2641 = vcvt.f32.s32.ties.to.even %v1617
        %v2642 = vcvt.f32.s32.ties.to.even %v1618
        %v2643 = vcvt.f32.s32.ties.to.even %v1619
        %v2644 = vcvt.f32.s32.ties.to.even %v1620
        %v2645 = vcvt.f32.s32.ties.to.even %v1621
        %v2646 = vcvt.f32.s32.ties.to.even %v1622
        %v2647 = vcvt.f32.s32.ties.to.even %v1623
        %v2648 = vcvt.f32.s32.ties.to.even %v1624
        %v2649 = vcvt.f32.s32.ties.to.even %v1625
        %v2650 = vcvt.f32.s32.ties.to.even %v1626
        %v2651 = vcvt.f32.s32.ties.to.even %v1627
        %v2652 = vcvt.f32.s32.ties.to.even %v1628
        %v2653 = vcvt.f32.s32.ties.to.even %v1629
        %v2654 = vcvt.f32.s32.ties.to.even %v1630
        %v2655 = vcvt.f32.s32.ties.to.even %v1631
        %v2656 = vcvt.f32.s32.ties.to.even %v1632
        %v2657 = vcvt.f32.s32.ties.to.even %v1633
        %v2658 = vcvt.f32.s32.ties.to.even %v1634
        %v2659 = vcvt.f32.s32.ties.to.even %v1635
        %v2660 = vcvt.f32.s32.ties.to.even %v1636
        %v2661 = vcvt.f32.s32.ties.to.even %v1637
        %v2662 = vcvt.f32.s32.ties.to.even %v1638
        %v2663 = vcvt.f32.s32.ties.to.even %v1639
        %v2664 = vcvt.f32.s32.ties.to.even %v1640
        %v2665 = vcvt.f32.s32.ties.to.even %v1641
        %v2666 = vcvt.f32.s32.ties.to.even %v1642
        %v2667 = vcvt.f32.s32.ties.to.even %v1643
        %v2668 = vcvt.f32.s32.ties.to.even %v1644
        %v2669 = vcvt.f32.s32.ties.to.even %v1645
        %v2670 = vcvt.f32.s32.ties.to.even %v1646
        %v2671 = vcvt.f32.s32.ties.to.even %v1647
        %v2672 = vcvt.f32.s32.ties.to.even %v1648
        %v2673 = vcvt.f32.s32.ties.to.even %v1649
        %v2674 = vcvt.f32.s32.ties.to.even %v1650
        %v2675 = vcvt.f32.s32.ties.to.even %v1651
        %v2676 = vcvt.f32.s32.ties.to.even %v1652
        %v2677 = vcvt.f32.s32.ties.to.even %v1653
        %v2678 = vcvt.f32.s32.ties.to.even %v1654
        %v2679 = vcvt.f32.s32.ties.to.even %v1655
        %v2680 = vcvt.f32.s32.ties.to.even %v1656
        %v2681 = vcvt.f32.s32.ties.to.even %v1657
        %v2682 = vcvt.f32.s32.ties.to.even %v1658
        %v2683 = vcvt.f32.s32.ties.to.even %v1659
        %v2684 = vcvt.f32.s32.ties.to.even %v1660
        %v2685 = vcvt.f32.s32.ties.to.even %v1661
        %v2686 = vcvt.f32.s32.ties.to.even %v1662
        %v2687 = vcvt.f32.s32.ties.to.even %v1663
        %v2688 = vcvt.f32.s32.ties.to.even %v1664
        %v2689 = vcvt.f32.s32.ties.to.even %v1665
        %v2690 = vcvt.f32.s32.ties.to.even %v1666
        %v2691 = vcvt.f32.s32.ties.to.even %v1667
        %v2692 = vcvt.f32.s32.ties.to.even %v1668
        %v2693 = vcvt.f32.s32.ties.to.even %v1669
        %v2694 = vcvt.f32.s32.ties.to.even %v1670
        %v2695 = vcvt.f32.s32.ties.to.even %v1671
        %v2696 = vcvt.f32.s32.ties.to.even %v1672
        %v2697 = vcvt.f32.s32.ties.to.even %v1673
        %v2698 = vcvt.f32.s32.ties.to.even %v1674
        %v2699 = vcvt.f32.s32.ties.to.even %v1675
        %v2700 = vcvt.f32.s32.ties.to.even %v1676
        %v2701 = vcvt.f32.s32.ties.to.even %v1677
        %v2702 = vcvt.f32.s32.ties.to.even %v1678
        %v2703 = vcvt.f32.s32.ties.to.even %v1679
        %v2704 = vcvt.f32.s32.ties.to.even %v1680
        %v2705 = vcvt.f32.s32.ties.to.even %v1681
        %v2706 = vcvt.f32.s32.ties.to.even %v1682
        %v2707 = vcvt.f32.s32.ties.to.even %v1683
        %v2708 = vcvt.f32.s32.ties.to.even %v1684
        %v2709 = vcvt.f32.s32.ties.to.even %v1685
        %v2710 = vcvt.f32.s32.ties.to.even %v1686
        %v2711 = vcvt.f32.s32.ties.to.even %v1687
        %v2712 = vcvt.f32.s32.ties.to.even %v1688
        %v2713 = vcvt.f32.s32.ties.to.even %v1689
        %v2714 = vcvt.f32.s32.ties.to.even %v1690
        %v2715 = vcvt.f32.s32.ties.to.even %v1691
        %v2716 = vcvt.f32.s32.ties.to.even %v1692
        %v2717 = vcvt.f32.s32.ties.to.even %v1693
        %v2718 = vcvt.f32.s32.ties.to.even %v1694
        %v2719 = vcvt.f32.s32.ties.to.even %v1695
        %v2720 = vcvt.f32.s32.ties.to.even %v1696
        %v2721 = vcvt.f32.s32.ties.to.even %v1697
        %v2722 = vcvt.f32.s32.ties.to.even %v1698
        %v2723 = vcvt.f32.s32.ties.to.even %v1699
        %v2724 = vcvt.f32.s32.ties.to.even %v1700
        %v2725 = vcvt.f32.s32.ties.to.even %v1701
        %v2726 = vcvt.f32.s32.ties.to.even %v1702
        %v2727 = vcvt.f32.s32.ties.to.even %v1703
        %v2728 = vcvt.f32.s32.ties.to.even %v1704
        %v2729 = vcvt.f32.s32.ties.to.even %v1705
        %v2730 = vcvt.f32.s32.ties.to.even %v1706
        %v2731 = vcvt.f32.s32.ties.to.even %v1707
        %v2732 = vcvt.f32.s32.ties.to.even %v1708
        %v2733 = vcvt.f32.s32.ties.to.even %v1709
        %v2734 = vcvt.f32.s32.ties.to.even %v1710
        %v2735 = vcvt.f32.s32.ties.to.even %v1711
        %v2736 = vcvt.f32.s32.ties.to.even %v1712
        %v2737 = vcvt.f32.s32.ties.to.even %v1713
        %v2738 = vcvt.f32.s32.ties.to.even %v1714
        %v2739 = vcvt.f32.s32.ties.to.even %v1715
        %v2740 = vcvt.f32.s32.ties.to.even %v1716
        %v2741 = vcvt.f32.s32.ties.to.even %v1717
        %v2742 = vcvt.f32.s32.ties.to.even %v1718
        %v2743 = vcvt.f32.s32.ties.to.even %v1719
        %v2744 = vcvt.f32.s32.ties.to.even %v1720
        %v2745 = vcvt.f32.s32.ties.to.even %v1721
        %v2746 = vcvt.f32.s32.ties.to.even %v1722
        %v2747 = vcvt.f32.s32.ties.to.even %v1723
        %v2748 = vcvt.f32.s32.ties.to.even %v1724
        %v2749 = vcvt.f32.s32.ties.to.even %v1725
        %v2750 = vcvt.f32.s32.ties.to.even %v1726
        %v2751 = vcvt.f32.s32.ties.to.even %v1727
        %v2752 = vcvt.f32.s32.ties.to.even %v1728
        %v2753 = vcvt.f32.s32.ties.to.even %v1729
        %v2754 = vcvt.f32.s32.ties.to.even %v1730
        %v2755 = vcvt.f32.s32.ties.to.even %v1731
        %v2756 = vcvt.f32.s32.ties.to.even %v1732
        %v2757 = vcvt.f32.s32.ties.to.even %v1733
        %v2758 = vcvt.f32.s32.ties.to.even %v1734
        %v2759 = vcvt.f32.s32.ties.to.even %v1735
        %v2760 = vcvt.f32.s32.ties.to.even %v1736
        %v2761 = vcvt.f32.s32.ties.to.even %v1737
        %v2762 = vcvt.f32.s32.ties.to.even %v1738
        %v2763 = vcvt.f32.s32.ties.to.even %v1739
        %v2764 = vcvt.f32.s32.ties.to.even %v1740
        %v2765 = vcvt.f32.s32.ties.to.even %v1741
        %v2766 = vcvt.f32.s32.ties.to.even %v1742
        %v2767 = vcvt.f32.s32.ties.to.even %v1743
        %v2768 = vcvt.f32.s32.ties.to.even %v1744
        %v2769 = vcvt.f32.s32.ties.to.even %v1745
        %v2770 = vcvt.f32.s32.ties.to.even %v1746
        %v2771 = vcvt.f32.s32.ties.to.even %v1747
        %v2772 = vcvt.f32.s32.ties.to.even %v1748
        %v2773 = vcvt.f32.s32.ties.to.even %v1749
        %v2774 = vcvt.f32.s32.ties.to.even %v1750
        %v2775 = vcvt.f32.s32.ties.to.even %v1751
        %v2776 = vcvt.f32.s32.ties.to.even %v1752
        %v2777 = vcvt.f32.s32.ties.to.even %v1753
        %v2778 = vcvt.f32.s32.ties.to.even %v1754
        %v2779 = vcvt.f32.s32.ties.to.even %v1755
        %v2780 = vcvt.f32.s32.ties.to.even %v1756
        %v2781 = vcvt.f32.s32.ties.to.even %v1757
        %v2782 = vcvt.f32.s32.ties.to.even %v1758
        %v2783 = vcvt.f32.s32.ties.to.even %v1759
        %v2784 = vcvt.f32.s32.ties.to.even %v1760
        %v2785 = vcvt.f32.s32.ties.to.even %v1761
        %v2786 = vcvt.f32.s32.ties.to.even %v1762
        %v2787 = vcvt.f32.s32.ties.to.even %v1763
        %v2788 = vcvt.f32.s32.ties.to.even %v1764
        %v2789 = vcvt.f32.s32.ties.to.even %v1765
        %v2790 = vcvt.f32.s32.ties.to.even %v1766
        %v2791 = vcvt.f32.s32.ties.to.even %v1767
        %v2792 = vcvt.f32.s32.ties.to.even %v1768
        %v2793 = vcvt.f32.s32.ties.to.even %v1769
        %v2794 = vcvt.f32.s32.ties.to.even %v1770
        %v2795 = vcvt.f32.s32.ties.to.even %v1771
        %v2796 = vcvt.f32.s32.ties.to.even %v1772
        %v2797 = vcvt.f32.s32.ties.to.even %v1773
        %v2798 = vcvt.f32.s32.ties.to.even %v1774
        %v2799 = vcvt.f32.s32.ties.to.even %v1775
        %v2800 = vcvt.f32.s32.ties.to.even %v1776
        %v2801 = vcvt.f32.s32.ties.to.even %v1777
        %v2802 = vcvt.f32.s32.ties.to.even %v1778
        %v2803 = vcvt.f32.s32.ties.to.even %v1779
        %v2804 = vcvt.f32.s32.ties.to.even %v1780
        %v2805 = vcvt.f32.s32.ties.to.even %v1781
        %v2806 = vcvt.f32.s32.ties.to.even %v1782
        %v2807 = vcvt.f32.s32.ties.to.even %v1783
        %v2808 = vcvt.f32.s32.ties.to.even %v1784
        %v2809 = vcvt.f32.s32.ties.to.even %v1785
        %v2810 = vcvt.f32.s32.ties.to.even %v1786
        %v2811 = vcvt.f32.s32.ties.to.even %v1787
        %v2812 = vcvt.f32.s32.ties.to.even %v1788
        %v2813 = vcvt.f32.s32.ties.to.even %v1789
        %v2814 = vcvt.f32.s32.ties.to.even %v1790
        %v2815 = vcvt.f32.s32.ties.to.even %v1791
        %v2816 = vcvt.f32.s32.ties.to.even %v1792
        %v2817 = vcvt.f32.s32.ties.to.even %v1793
        %v2818 = vcvt.f32.s32.ties.to.even %v1794
        %v2819 = vcvt.f32.s32.ties.to.even %v1795
        %v2820 = vcvt.f32.s32.ties.to.even %v1796
        %v2821 = vcvt.f32.s32.ties.to.even %v1797
        %v2822 = vcvt.f32.s32.ties.to.even %v1798
        %v2823 = vcvt.f32.s32.ties.to.even %v1799
        %v2824 = vcvt.f32.s32.ties.to.even %v1800
        %v2825 = vcvt.f32.s32.ties.to.even %v1801
        %v2826 = vcvt.f32.s32.ties.to.even %v1802
        %v2827 = vcvt.f32.s32.ties.to.even %v1803
        %v2828 = vcvt.f32.s32.ties.to.even %v1804
        %v2829 = vcvt.f32.s32.ties.to.even %v1805
        %v2830 = vcvt.f32.s32.ties.to.even %v1806
        %v2831 = vcvt.f32.s32.ties.to.even %v1807
        %v2832 = vcvt.f32.s32.ties.to.even %v1808
        %v2833 = vcvt.f32.s32.ties.to.even %v1809
        %v2834 = vcvt.f32.s32.ties.to.even %v1810
        %v2835 = vcvt.f32.s32.ties.to.even %v1811
        %v2836 = vcvt.f32.s32.ties.to.even %v1812
        %v2837 = vcvt.f32.s32.ties.to.even %v1813
        %v2838 = vcvt.f32.s32.ties.to.even %v1814
        %v2839 = vcvt.f32.s32.ties.to.even %v1815
        %v2840 = vcvt.f32.s32.ties.to.even %v1816
        %v2841 = vcvt.f32.s32.ties.to.even %v1817
        %v2842 = vcvt.f32.s32.ties.to.even %v1818
        %v2843 = vcvt.f32.s32.ties.to.even %v1819
        %v2844 = vcvt.f32.s32.ties.to.even %v1820
        %v2845 = vcvt.f32.s32.ties.to.even %v1821
        %v2846 = vcvt.f32.s32.ties.to.even %v1822
        %v2847 = vcvt.f32.s32.ties.to.even %v1823
        %v2848 = vcvt.f32.s32.ties.to.even %v1824
        %v2849 = vcvt.f32.s32.ties.to.even %v1825
        %v2850 = vcvt.f32.s32.ties.to.even %v1826
        %v2851 = vcvt.f32.s32.ties.to.even %v1827
        %v2852 = vcvt.f32.s32.ties.to.even %v1828
        %v2853 = vcvt.f32.s32.ties.to.even %v1829
        %v2854 = vcvt.f32.s32.ties.to.even %v1830
        %v2855 = vcvt.f32.s32.ties.to.even %v1831
        %v2856 = vcvt.f32.s32.ties.to.even %v1832
        %v2857 = vcvt.f32.s32.ties.to.even %v1833
        %v2858 = vcvt.f32.s32.ties.to.even %v1834
        %v2859 = vcvt.f32.s32.ties.to.even %v1835
        %v2860 = vcvt.f32.s32.ties.to.even %v1836
        %v2861 = vcvt.f32.s32.ties.to.even %v1837
        %v2862 = vcvt.f32.s32.ties.to.even %v1838
        %v2863 = vcvt.f32.s32.ties.to.even %v1839
        %v2864 = vcvt.f32.s32.ties.to.even %v1840
        %v2865 = vcvt.f32.s32.ties.to.even %v1841
        %v2866 = vcvt.f32.s32.ties.to.even %v1842
        %v2867 = vcvt.f32.s32.ties.to.even %v1843
        %v2868 = vcvt.f32.s32.ties.to.even %v1844
        %v2869 = vcvt.f32.s32.ties.to.even %v1845
        %v2870 = vcvt.f32.s32.ties.to.even %v1846
        %v2871 = vcvt.f32.s32.ties.to.even %v1847
        %v2872 = vcvt.f32.s32.ties.to.even %v1848
        %v2873 = vcvt.f32.s32.ties.to.even %v1849
        %v2874 = vcvt.f32.s32.ties.to.even %v1850
        %v2875 = vcvt.f32.s32.ties.to.even %v1851
        %v2876 = vcvt.f32.s32.ties.to.even %v1852
        %v2877 = vcvt.f32.s32.ties.to.even %v1853
        %v2878 = vcvt.f32.s32.ties.to.even %v1854
        %v2879 = vcvt.f32.s32.ties.to.even %v1855
        %v2880 = vcvt.f32.s32.ties.to.even %v1856
        %v2881 = vcvt.f32.s32.ties.to.even %v1857
        %v2882 = vcvt.f32.s32.ties.to.even %v1858
        %v2883 = vcvt.f32.s32.ties.to.even %v1859
        %v2884 = vcvt.f32.s32.ties.to.even %v1860
        %v2885 = vcvt.f32.s32.ties.to.even %v1861
        %v2886 = vcvt.f32.s32.ties.to.even %v1862
        %v2887 = vcvt.f32.s32.ties.to.even %v1863
        %v2888 = vcvt.f32.s32.ties.to.even %v1864
        %v2889 = vcvt.f32.s32.ties.to.even %v1865
        %v2890 = vcvt.f32.s32.ties.to.even %v1866
        %v2891 = vcvt.f32.s32.ties.to.even %v1867
        %v2892 = vcvt.f32.s32.ties.to.even %v1868
        %v2893 = vcvt.f32.s32.ties.to.even %v1869
        %v2894 = vcvt.f32.s32.ties.to.even %v1870
        %v2895 = vcvt.f32.s32.ties.to.even %v1871
        %v2896 = vcvt.f32.s32.ties.to.even %v1872
        %v2897 = vcvt.f32.s32.ties.to.even %v1873
        %v2898 = vcvt.f32.s32.ties.to.even %v1874
        %v2899 = vcvt.f32.s32.ties.to.even %v1875
        %v2900 = vcvt.f32.s32.ties.to.even %v1876
        %v2901 = vcvt.f32.s32.ties.to.even %v1877
        %v2902 = vcvt.f32.s32.ties.to.even %v1878
        %v2903 = vcvt.f32.s32.ties.to.even %v1879
        %v2904 = vcvt.f32.s32.ties.to.even %v1880
        %v2905 = vcvt.f32.s32.ties.to.even %v1881
        %v2906 = vcvt.f32.s32.ties.to.even %v1882
        %v2907 = vcvt.f32.s32.ties.to.even %v1883
        %v2908 = vcvt.f32.s32.ties.to.even %v1884
        %v2909 = vcvt.f32.s32.ties.to.even %v1885
        %v2910 = vcvt.f32.s32.ties.to.even %v1886
        %v2911 = vcvt.f32.s32.ties.to.even %v1887
        %v2912 = vcvt.f32.s32.ties.to.even %v1888
        %v2913 = vcvt.f32.s32.ties.to.even %v1889
        %v2914 = vcvt.f32.s32.ties.to.even %v1890
        %v2915 = vcvt.f32.s32.ties.to.even %v1891
        %v2916 = vcvt.f32.s32.ties.to.even %v1892
        %v2917 = vcvt.f32.s32.ties.to.even %v1893
        %v2918 = vcvt.f32.s32.ties.to.even %v1894
        %v2919 = vcvt.f32.s32.ties.to.even %v1895
        %v2920 = vcvt.f32.s32.ties.to.even %v1896
        %v2921 = vcvt.f32.s32.ties.to.even %v1897
        %v2922 = vcvt.f32.s32.ties.to.even %v1898
        %v2923 = vcvt.f32.s32.ties.to.even %v1899
        %v2924 = vcvt.f32.s32.ties.to.even %v1900
        %v2925 = vcvt.f32.s32.ties.to.even %v1901
        %v2926 = vcvt.f32.s32.ties.to.even %v1902
        %v2927 = vcvt.f32.s32.ties.to.even %v1903
        %v2928 = vcvt.f32.s32.ties.to.even %v1904
        %v2929 = vcvt.f32.s32.ties.to.even %v1905
        %v2930 = vcvt.f32.s32.ties.to.even %v1906
        %v2931 = vcvt.f32.s32.ties.to.even %v1907
        %v2932 = vcvt.f32.s32.ties.to.even %v1908
        %v2933 = vcvt.f32.s32.ties.to.even %v1909
        %v2934 = vcvt.f32.s32.ties.to.even %v1910
        %v2935 = vcvt.f32.s32.ties.to.even %v1911
        %v2936 = vcvt.f32.s32.ties.to.even %v1912
        %v2937 = vcvt.f32.s32.ties.to.even %v1913
        %v2938 = vcvt.f32.s32.ties.to.even %v1914
        %v2939 = vcvt.f32.s32.ties.to.even %v1915
        %v2940 = vcvt.f32.s32.ties.to.even %v1916
        %v2941 = vcvt.f32.s32.ties.to.even %v1917
        %v2942 = vcvt.f32.s32.ties.to.even %v1918
        %v2943 = vcvt.f32.s32.ties.to.even %v1919
        %v2944 = vcvt.f32.s32.ties.to.even %v1920
        %v2945 = vcvt.f32.s32.ties.to.even %v1921
        %v2946 = vcvt.f32.s32.ties.to.even %v1922
        %v2947 = vcvt.f32.s32.ties.to.even %v1923
        %v2948 = vcvt.f32.s32.ties.to.even %v1924
        %v2949 = vcvt.f32.s32.ties.to.even %v1925
        %v2950 = vcvt.f32.s32.ties.to.even %v1926
        %v2951 = vcvt.f32.s32.ties.to.even %v1927
        %v2952 = vcvt.f32.s32.ties.to.even %v1928
        %v2953 = vcvt.f32.s32.ties.to.even %v1929
        %v2954 = vcvt.f32.s32.ties.to.even %v1930
        %v2955 = vcvt.f32.s32.ties.to.even %v1931
        %v2956 = vcvt.f32.s32.ties.to.even %v1932
        %v2957 = vcvt.f32.s32.ties.to.even %v1933
        %v2958 = vcvt.f32.s32.ties.to.even %v1934
        %v2959 = vcvt.f32.s32.ties.to.even %v1935
        %v2960 = vcvt.f32.s32.ties.to.even %v1936
        %v2961 = vcvt.f32.s32.ties.to.even %v1937
        %v2962 = vcvt.f32.s32.ties.to.even %v1938
        %v2963 = vcvt.f32.s32.ties.to.even %v1939
        %v2964 = vcvt.f32.s32.ties.to.even %v1940
        %v2965 = vcvt.f32.s32.ties.to.even %v1941
        %v2966 = vcvt.f32.s32.ties.to.even %v1942
        %v2967 = vcvt.f32.s32.ties.to.even %v1943
        %v2968 = vcvt.f32.s32.ties.to.even %v1944
        %v2969 = vcvt.f32.s32.ties.to.even %v1945
        %v2970 = vcvt.f32.s32.ties.to.even %v1946
        %v2971 = vcvt.f32.s32.ties.to.even %v1947
        %v2972 = vcvt.f32.s32.ties.to.even %v1948
        %v2973 = vcvt.f32.s32.ties.to.even %v1949
        %v2974 = vcvt.f32.s32.ties.to.even %v1950
        %v2975 = vcvt.f32.s32.ties.to.even %v1951
        %v2976 = vcvt.f32.s32.ties.to.even %v1952
        %v2977 = vcvt.f32.s32.ties.to.even %v1953
        %v2978 = vcvt.f32.s32.ties.to.even %v1954
        %v2979 = vcvt.f32.s32.ties.to.even %v1955
        %v2980 = vcvt.f32.s32.ties.to.even %v1956
        %v2981 = vcvt.f32.s32.ties.to.even %v1957
        %v2982 = vcvt.f32.s32.ties.to.even %v1958
        %v2983 = vcvt.f32.s32.ties.to.even %v1959
        %v2984 = vcvt.f32.s32.ties.to.even %v1960
        %v2985 = vcvt.f32.s32.ties.to.even %v1961
        %v2986 = vcvt.f32.s32.ties.to.even %v1962
        %v2987 = vcvt.f32.s32.ties.to.even %v1963
        %v2988 = vcvt.f32.s32.ties.to.even %v1964
        %v2989 = vcvt.f32.s32.ties.to.even %v1965
        %v2990 = vcvt.f32.s32.ties.to.even %v1966
        %v2991 = vcvt.f32.s32.ties.to.even %v1967
        %v2992 = vcvt.f32.s32.ties.to.even %v1968
        %v2993 = vcvt.f32.s32.ties.to.even %v1969
        %v2994 = vcvt.f32.s32.ties.to.even %v1970
        %v2995 = vcvt.f32.s32.ties.to.even %v1971
        %v2996 = vcvt.f32.s32.ties.to.even %v1972
        %v2997 = vcvt.f32.s32.ties.to.even %v1973
        %v2998 = vcvt.f32.s32.ties.to.even %v1974
        %v2999 = vcvt.f32.s32.ties.to.even %v1975
        %v3000 = vcvt.f32.s32.ties.to.even %v1976
        %v3001 = vcvt.f32.s32.ties.to.even %v1977
        %v3002 = vcvt.f32.s32.ties.to.even %v1978
        %v3003 = vcvt.f32.s32.ties.to.even %v1979
        %v3004 = vcvt.f32.s32.ties.to.even %v1980
        %v3005 = vcvt.f32.s32.ties.to.even %v1981
        %v3006 = vcvt.f32.s32.ties.to.even %v1982
        %v3007 = vcvt.f32.s32.ties.to.even %v1983
        %v3008 = vcvt.f32.s32.ties.to.even %v1984
        %v3009 = vcvt.f32.s32.ties.to.even %v1985
        %v3010 = vcvt.f32.s32.ties.to.even %v1986
        %v3011 = vcvt.f32.s32.ties.to.even %v1987
        %v3012 = vcvt.f32.s32.ties.to.even %v1988
        %v3013 = vcvt.f32.s32.ties.to.even %v1989
        %v3014 = vcvt.f32.s32.ties.to.even %v1990
        %v3015 = vcvt.f32.s32.ties.to.even %v1991
        %v3016 = vcvt.f32.s32.ties.to.even %v1992
        %v3017 = vcvt.f32.s32.ties.to.even %v1993
        %v3018 = vcvt.f32.s32.ties.to.even %v1994
        %v3019 = vcvt.f32.s32.ties.to.even %v1995
        %v3020 = vcvt.f32.s32.ties.to.even %v1996
        %v3021 = vcvt.f32.s32.ties.to.even %v1997
        %v3022 = vcvt.f32.s32.ties.to.even %v1998
        %v3023 = vcvt.f32.s32.ties.to.even %v1999
        %v3024 = vcvt.f32.s32.ties.to.even %v2000
        %v3025 = vcvt.f32.s32.ties.to.even %v2001
        %v3026 = vcvt.f32.s32.ties.to.even %v2002
        %v3027 = vcvt.f32.s32.ties.to.even %v2003
        %v3028 = vcvt.f32.s32.ties.to.even %v2004
        %v3029 = vcvt.f32.s32.ties.to.even %v2005
        %v3030 = vcvt.f32.s32.ties.to.even %v2006
        %v3031 = vcvt.f32.s32.ties.to.even %v2007
        %v3032 = vcvt.f32.s32.ties.to.even %v2008
        %v3033 = vcvt.f32.s32.ties.to.even %v2009
        %v3034 = vcvt.f32.s32.ties.to.even %v2010
        %v3035 = vcvt.f32.s32.ties.to.even %v2011
        %v3036 = vcvt.f32.s32.ties.to.even %v2012
        %v3037 = vcvt.f32.s32.ties.to.even %v2013
        %v3038 = vcvt.f32.s32.ties.to.even %v2014
        %v3039 = vcvt.f32.s32.ties.to.even %v2015
        %v3040 = vcvt.f32.s32.ties.to.even %v2016
        %v3041 = vcvt.f32.s32.ties.to.even %v2017
        %v3042 = vcvt.f32.s32.ties.to.even %v2018
        %v3043 = vcvt.f32.s32.ties.to.even %v2019
        %v3044 = vcvt.f32.s32.ties.to.even %v2020
        %v3045 = vcvt.f32.s32.ties.to.even %v2021
        %v3046 = vcvt.f32.s32.ties.to.even %v2022
        %v3047 = vcvt.f32.s32.ties.to.even %v2023
        %v3048 = vcvt.f32.s32.ties.to.even %v2024
        %v3049 = vcvt.f32.s32.ties.to.even %v2025
        %v3050 = vcvt.f32.s32.ties.to.even %v2026
        %v3051 = vcvt.f32.s32.ties.to.even %v2027
        %v3052 = vcvt.f32.s32.ties.to.even %v2028
        %v3053 = vcvt.f32.s32.ties.to.even %v2029
        %v3054 = vcvt.f32.s32.ties.to.even %v2030
        %v3055 = vcvt.f32.s32.ties.to.even %v2031
        %v3056 = vcvt.f32.s32.ties.to.even %v2032
        %v3057 = vcvt.f32.s32.ties.to.even %v2033
        %v3058 = vcvt.f32.s32.ties.to.even %v2034
        %v3059 = vcvt.f32.s32.ties.to.even %v2035
        %v3060 = vcvt.f32.s32.ties.to.even %v2036
        %v3061 = vcvt.f32.s32.ties.to.even %v2037
        %v3062 = vcvt.f32.s32.ties.to.even %v2038
        %v3063 = vcvt.f32.s32.ties.to.even %v2039
        %v3064 = vcvt.f32.s32.ties.to.even %v2040
        %v3065 = vcvt.f32.s32.ties.to.even %v2041
        %v3066 = vcvt.f32.s32.ties.to.even %v2042
        %v3067 = vcvt.f32.s32.ties.to.even %v2043
        %v3068 = vcvt.f32.s32.ties.to.even %v2044
        %v3069 = vcvt.f32.s32.ties.to.even %v2045
        %v3070 = vcvt.f32.s32.ties.to.even %v2046
        %v3071 = vcvt.f32.s32.ties.to.even %v2047
        %v3072 = vcvt.f32.s32.ties.to.even %v2048
        %v3073 = vcvt.f32.s32.ties.to.even %v2049
        %v3074 = vcvt.f32.s32.ties.to.even %v2050
        %v3075 = vcvt.f32.s32.ties.to.even %v2051
        %v3076 = vcvt.f32.s32.ties.to.even %v2052
        %v3077 = vcvt.f32.s32.ties.to.even %v2053
        %v3078 = vcvt.f32.s32.ties.to.even %v2054
        %v3079 = vcvt.f32.s32.ties.to.even %v2055
        %v3080 = vcvt.f32.s32.ties.to.even %v2056
        %v3081 = vcvt.f32.s32.ties.to.even %v2057
        %v3082 = vcvt.f32.s32.ties.to.even %v2058
        %v3083 = vcvt.f32.s32.ties.to.even %v2059
        %v3084 = vcvt.f32.s32.ties.to.even %v2060
        %v3085 = vcvt.f32.s32.ties.to.even %v2061
        %v3086 = vcvt.f32.s32.ties.to.even %v2062
        %v3087 = vcvt.f32.s32.ties.to.even %v2063
        %v3088 = vcvt.f32.s32.ties.to.even %v2064
        %v3089 = vcvt.f32.s32.ties.to.even %v2065
        %v3090 = vcvt.f32.s32.ties.to.even %v2066
        %v3091 = vcvt.f32.s32.ties.to.even %v2067
        %v3092 = vcvt.f32.s32.ties.to.even %v2068
        %v3093 = vcvt.f32.s32.ties.to.even %v2069
        %v3094 = vcvt.f32.s32.ties.to.even %v2070
        %v3095 = vcvt.f32.s32.ties.to.even %v2071
        %v3096 = vcvt.f32.s32.ties.to.even %v2072
        %v3097 = vcvt.f32.s32.ties.to.even %v2073
        %v3098 = vcvt.f32.s32.ties.to.even %v2074
        %v3099 = vcvt.f32.s32.ties.to.even %v2075
        %v3100 = vcvt.f32.s32.ties.to.even %v2076
        %v3101 = vcvt.f32.s32.ties.to.even %v2077
        %v3102 = vcvt.f32.s32.ties.to.even %v2078
        %v3103 = vcvt.f32.s32.ties.to.even %v2079
        %v3104 = vcvt.f32.s32.ties.to.even %v2080
        %v3105 = vcvt.f32.s32.ties.to.even %v2081
        %v3106 = vcvt.f32.s32.ties.to.even %v2082
        %v3107 = vcvt.f32.s32.ties.to.even %v2083
        %v3108 = vcvt.f32.s32.ties.to.even %v2084
        %v3109 = vcvt.f32.s32.ties.to.even %v2085
        %v3110 = vcvt.f32.s32.ties.to.even %v2086
        %v3111 = vcvt.f32.s32.ties.to.even %v2087
        %v3112 = vcvt.f32.s32.ties.to.even %v2088
        %v3113 = vcvt.f32.s32.ties.to.even %v2089
        %v3114 = vcvt.f32.s32.ties.to.even %v2090
        %v3115 = vcvt.f32.s32.ties.to.even %v2091
        %v3116 = vcvt.f32.s32.ties.to.even %v2092
        %v3117 = vcvt.f32.s32.ties.to.even %v2093
        %v3118 = vcvt.f32.s32.ties.to.even %v2094
        %v3119 = vcvt.f32.s32.ties.to.even %v2095
        %v3120 = vcvt.f32.s32.ties.to.even %v2096
        %v3121 = vcvt.f32.s32.ties.to.even %v2097
        %v3122 = vcvt.f32.s32.ties.to.even %v2098
        %v3123 = vcvt.f32.s32.ties.to.even %v2099
        %v3124 = vcvt.f32.s32.ties.to.even %v2100
        %v3125 = vcvt.f32.s32.ties.to.even %v2101
        %v3126 = vcvt.f32.s32.ties.to.even %v2102
        %v3127 = vcvt.f32.s32.ties.to.even %v2103
        %v3128 = vcvt.f32.s32.ties.to.even %v2104
        %v3129 = vcvt.f32.s32.ties.to.even %v2105
        %v3130 = vcvt.f32.s32.ties.to.even %v2106
        %v3131 = vcvt.f32.s32.ties.to.even %v2107
        %v3132 = vcvt.f32.s32.ties.to.even %v2108
        %v3133 = vcvt.f32.s32.ties.to.even %v2109
        %v3134 = vcvt.f32.s32.ties.to.even %v2110
        %v3135 = vcvt.f32.s32.ties.to.even %v2111
        %v3136 = vcvt.f32.s32.ties.to.even %v2112
        %v3137 = vcvt.f32.s32.ties.to.even %v2113
        %v3138 = vcvt.f32.s32.ties.to.even %v2114
        %v3139 = vcvt.f32.s32.ties.to.even %v2115
        %v3140 = vcvt.f32.s32.ties.to.even %v2116
        %v3141 = vcvt.f32.s32.ties.to.even %v2117
        %v3142 = vcvt.f32.s32.ties.to.even %v2118
        %v3143 = vcvt.f32.s32.ties.to.even %v2119
        %v3144 = vcvt.f32.s32.ties.to.even %v2120
        %v3145 = vcvt.f32.s32.ties.to.even %v2121
        %v3146 = vcvt.f32.s32.ties.to.even %v2122
        %v3147 = vcvt.f32.s32.ties.to.even %v2123
        %v3148 = vcvt.f32.s32.ties.to.even %v2124
        %v3149 = vcvt.f32.s32.ties.to.even %v2125
        %v3150 = vcvt.f32.s32.ties.to.even %v2126
        %v3151 = vcvt.f32.s32.ties.to.even %v2127
        %v3152 = vcvt.f32.s32.ties.to.even %v2128
        %v3153 = vcvt.f32.s32.ties.to.even %v2129
        %v3154 = vcvt.f32.s32.ties.to.even %v2130
        %v3155 = vcvt.f32.s32.ties.to.even %v2131
        %v3156 = vcvt.f32.s32.ties.to.even %v2132
        %v3157 = vcvt.f32.s32.ties.to.even %v2133
        %v3158 = vcvt.f32.s32.ties.to.even %v2134
        %v3159 = vcvt.f32.s32.ties.to.even %v2135
        %v3160 = vcvt.f32.s32.ties.to.even %v2136
        %v3161 = vcvt.f32.s32.ties.to.even %v2137
        %v3162 = vcvt.f32.s32.ties.to.even %v2138
        %v3163 = vcvt.f32.s32.ties.to.even %v2139
        %v3164 = vcvt.f32.s32.ties.to.even %v2140
        %v3165 = vcvt.f32.s32.ties.to.even %v2141
        %v3166 = vcvt.f32.s32.ties.to.even %v2142
        %v3167 = vcvt.f32.s32.ties.to.even %v2143
        %v3168 = vcvt.f32.s32.ties.to.even %v2144
        %v3169 = vcvt.f32.s32.ties.to.even %v2145
        %v3170 = vcvt.f32.s32.ties.to.even %v2146
        %v3171 = vcvt.f32.s32.ties.to.even %v2147
        %v3172 = vcvt.f32.s32.ties.to.even %v2148
        %v3173 = vcvt.f32.s32.ties.to.even %v2149
        %v3174 = vcvt.f32.s32.ties.to.even %v2150
        %v3175 = vcvt.f32.s32.ties.to.even %v2151
        %v3176 = vcvt.f32.s32.ties.to.even %v2152
        %v3177 = vcvt.f32.s32.ties.to.even %v2153
        %v3178 = vcvt.f32.s32.ties.to.even %v2154
        %v3179 = vcvt.f32.s32.ties.to.even %v2155
        %v3180 = vcvt.f32.s32.ties.to.even %v2156
        %v3181 = vcvt.f32.s32.ties.to.even %v2157
        %v3182 = vcvt.f32.s32.ties.to.even %v2158
        %v3183 = vcvt.f32.s32.ties.to.even %v2159
        %v3184 = vcvt.f32.s32.ties.to.even %v2160
        %v3185 = vcvt.f32.s32.ties.to.even %v2161
        %v3186 = vcvt.f32.s32.ties.to.even %v2162
        %v3187 = vcvt.f32.s32.ties.to.even %v2163
        %v3188 = vcvt.f32.s32.ties.to.even %v2164
        %v3189 = vcvt.f32.s32.ties.to.even %v2165
        %v3190 = vcvt.f32.s32.ties.to.even %v2166
        %v3191 = vcvt.f32.s32.ties.to.even %v2167
        %v3192 = vcvt.f32.s32.ties.to.even %v2168
        %v3193 = vcvt.f32.s32.ties.to.even %v2169
        %v3194 = vcvt.f32.s32.ties.to.even %v2170
        %v3195 = vcvt.f32.s32.ties.to.even %v2171
        %v3196 = vcvt.f32.s32.ties.to.even %v2172
        %v3197 = vcvt.f32.s32.ties.to.even %v2173
        %v3198 = vcvt.f32.s32.ties.to.even %v2174
        %v3199 = vcvt.f32.s32.ties.to.even %v2175
        %v3200 = vcvt.f32.s32.ties.to.even %v2176
        %v3201 = vcvt.f32.s32.ties.to.even %v2177
        %v3202 = vcvt.f32.s32.ties.to.even %v2178
        %v3203 = vcvt.f32.s32.ties.to.even %v2179
        %v3204 = vcvt.f32.s32.ties.to.even %v2180
        %v3205 = vcvt.f32.s32.ties.to.even %v2181
        %v3206 = vcvt.f32.s32.ties.to.even %v2182
        %v3207 = vcvt.f32.s32.ties.to.even %v2183
        %v3208 = vcvt.f32.s32.ties.to.even %v2184
        %v3209 = vcvt.f32.s32.ties.to.even %v2185
        %v3210 = vcvt.f32.s32.ties.to.even %v2186
        %v3211 = vcvt.f32.s32.ties.to.even %v2187
        %v3212 = vcvt.f32.s32.ties.to.even %v2188
        %v3213 = vcvt.f32.s32.ties.to.even %v2189
        %v3214 = vcvt.f32.s32.ties.to.even %v2190
        %v3215 = vcvt.f32.s32.ties.to.even %v2191
        %v3216 = vcvt.f32.s32.ties.to.even %v2192
        %v3217 = vcvt.f32.s32.ties.to.even %v2193
        %v3218 = vcvt.f32.s32.ties.to.even %v2194
        %v3219 = vcvt.f32.s32.ties.to.even %v2195
        %v3220 = vcvt.f32.s32.ties.to.even %v2196
        %v3221 = vcvt.f32.s32.ties.to.even %v2197
        %v3222 = vcvt.f32.s32.ties.to.even %v2198
        %v3223 = vcvt.f32.s32.ties.to.even %v2199
        %v3224 = vcvt.f32.s32.ties.to.even %v2200
        %v3225 = vcvt.f32.s32.ties.to.even %v2201
        %v3226 = vcvt.f32.s32.ties.to.even %v2202
        %v3227 = vcvt.f32.s32.ties.to.even %v2203
        %v3228 = vcvt.f32.s32.ties.to.even %v2204
        %v3229 = vcvt.f32.s32.ties.to.even %v2205
        %3230 = vst [vmem:[%s145] sm:$0xff] %v2206
        %3231 = vst [vmem:[%s145 + $0x8] sm:$0xff] %v2207
        %3232 = vst [vmem:[%s145 + $0x10] sm:$0xff] %v2208
        %3233 = vst [vmem:[%s145 + $0x18] sm:$0xff] %v2209
        %3234 = vst [vmem:[%s145 + $0x20] sm:$0xff] %v2210
        %3235 = vst [vmem:[%s145 + $0x28] sm:$0xff] %v2211
        %3236 = vst [vmem:[%s145 + $0x30] sm:$0xff] %v2212
        %3237 = vst [vmem:[%s145 + $0x38] sm:$0xff] %v2213
        %3238 = vst [vmem:[%s145 + $0x40] sm:$0xff] %v2214
        %3239 = vst [vmem:[%s145 + $0x48] sm:$0xff] %v2215
        %3240 = vst [vmem:[%s145 + $0x50] sm:$0xff] %v2216
        %3241 = vst [vmem:[%s145 + $0x58] sm:$0xff] %v2217
        %3242 = vst [vmem:[%s145 + $0x60] sm:$0xff] %v2218
        %3243 = vst [vmem:[%s145 + $0x68] sm:$0xff] %v2219
        %3244 = vst [vmem:[%s145 + $0x70] sm:$0xff] %v2220
        %3245 = vst [vmem:[%s145 + $0x78] sm:$0xff] %v2221
        %3246 = vst [vmem:[%s145 + $0x80] sm:$0xff] %v2222
        %3247 = vst [vmem:[%s145 + $0x88] sm:$0xff] %v2223
        %3248 = vst [vmem:[%s145 + $0x90] sm:$0xff] %v2224
        %3249 = vst [vmem:[%s145 + $0x98] sm:$0xff] %v2225
        %3250 = vst [vmem:[%s145 + $0xa0] sm:$0xff] %v2226
        %3251 = vst [vmem:[%s145 + $0xa8] sm:$0xff] %v2227
        %3252 = vst [vmem:[%s145 + $0xb0] sm:$0xff] %v2228
        %3253 = vst [vmem:[%s145 + $0xb8] sm:$0xff] %v2229
        %3254 = vst [vmem:[%s145 + $0xc0] sm:$0xff] %v2230
        %3255 = vst [vmem:[%s145 + $0xc8] sm:$0xff] %v2231
        %3256 = vst [vmem:[%s145 + $0xd0] sm:$0xff] %v2232
        %3257 = vst [vmem:[%s145 + $0xd8] sm:$0xff] %v2233
        %3258 = vst [vmem:[%s145 + $0xe0] sm:$0xff] %v2234
        %3259 = vst [vmem:[%s145 + $0xe8] sm:$0xff] %v2235
        %3260 = vst [vmem:[%s145 + $0xf0] sm:$0xff] %v2236
        %3261 = vst [vmem:[%s145 + $0xf8] sm:$0xff] %v2237
        %3262 = vst [vmem:[%s145 + $0x100] sm:$0xff] %v2238
        %3263 = vst [vmem:[%s145 + $0x108] sm:$0xff] %v2239
        %3264 = vst [vmem:[%s145 + $0x110] sm:$0xff] %v2240
        %3265 = vst [vmem:[%s145 + $0x118] sm:$0xff] %v2241
        %3266 = vst [vmem:[%s145 + $0x120] sm:$0xff] %v2242
        %3267 = vst [vmem:[%s145 + $0x128] sm:$0xff] %v2243
        %3268 = vst [vmem:[%s145 + $0x130] sm:$0xff] %v2244
        %3269 = vst [vmem:[%s145 + $0x138] sm:$0xff] %v2245
        %3270 = vst [vmem:[%s145 + $0x140] sm:$0xff] %v2246
        %3271 = vst [vmem:[%s145 + $0x148] sm:$0xff] %v2247
        %3272 = vst [vmem:[%s145 + $0x150] sm:$0xff] %v2248
        %3273 = vst [vmem:[%s145 + $0x158] sm:$0xff] %v2249
        %3274 = vst [vmem:[%s145 + $0x160] sm:$0xff] %v2250
        %3275 = vst [vmem:[%s145 + $0x168] sm:$0xff] %v2251
        %3276 = vst [vmem:[%s145 + $0x170] sm:$0xff] %v2252
        %3277 = vst [vmem:[%s145 + $0x178] sm:$0xff] %v2253
        %3278 = vst [vmem:[%s145 + $0x180] sm:$0xff] %v2254
        %3279 = vst [vmem:[%s145 + $0x188] sm:$0xff] %v2255
        %3280 = vst [vmem:[%s145 + $0x190] sm:$0xff] %v2256
        %3281 = vst [vmem:[%s145 + $0x198] sm:$0xff] %v2257
        %3282 = vst [vmem:[%s145 + $0x1a0] sm:$0xff] %v2258
        %3283 = vst [vmem:[%s145 + $0x1a8] sm:$0xff] %v2259
        %3284 = vst [vmem:[%s145 + $0x1b0] sm:$0xff] %v2260
        %3285 = vst [vmem:[%s145 + $0x1b8] sm:$0xff] %v2261
        %3286 = vst [vmem:[%s145 + $0x1c0] sm:$0xff] %v2262
        %3287 = vst [vmem:[%s145 + $0x1c8] sm:$0xff] %v2263
        %3288 = vst [vmem:[%s145 + $0x1d0] sm:$0xff] %v2264
        %3289 = vst [vmem:[%s145 + $0x1d8] sm:$0xff] %v2265
        %3290 = vst [vmem:[%s145 + $0x1e0] sm:$0xff] %v2266
        %3291 = vst [vmem:[%s145 + $0x1e8] sm:$0xff] %v2267
        %3292 = vst [vmem:[%s145 + $0x1f0] sm:$0xff] %v2268
        %3293 = vst [vmem:[%s145 + $0x1f8] sm:$0xff] %v2269
        %3294 = vst [vmem:[%s145 + $0x200] sm:$0xff] %v2270
        %3295 = vst [vmem:[%s145 + $0x208] sm:$0xff] %v2271
        %3296 = vst [vmem:[%s145 + $0x210] sm:$0xff] %v2272
        %3297 = vst [vmem:[%s145 + $0x218] sm:$0xff] %v2273
        %3298 = vst [vmem:[%s145 + $0x220] sm:$0xff] %v2274
        %3299 = vst [vmem:[%s145 + $0x228] sm:$0xff] %v2275
        %3300 = vst [vmem:[%s145 + $0x230] sm:$0xff] %v2276
        %3301 = vst [vmem:[%s145 + $0x238] sm:$0xff] %v2277
        %3302 = vst [vmem:[%s145 + $0x240] sm:$0xff] %v2278
        %3303 = vst [vmem:[%s145 + $0x248] sm:$0xff] %v2279
        %3304 = vst [vmem:[%s145 + $0x250] sm:$0xff] %v2280
        %3305 = vst [vmem:[%s145 + $0x258] sm:$0xff] %v2281
        %3306 = vst [vmem:[%s145 + $0x260] sm:$0xff] %v2282
        %3307 = vst [vmem:[%s145 + $0x268] sm:$0xff] %v2283
        %3308 = vst [vmem:[%s145 + $0x270] sm:$0xff] %v2284
        %3309 = vst [vmem:[%s145 + $0x278] sm:$0xff] %v2285
        %3310 = vst [vmem:[%s145 + $0x280] sm:$0xff] %v2286
        %3311 = vst [vmem:[%s145 + $0x288] sm:$0xff] %v2287
        %3312 = vst [vmem:[%s145 + $0x290] sm:$0xff] %v2288
        %3313 = vst [vmem:[%s145 + $0x298] sm:$0xff] %v2289
        %3314 = vst [vmem:[%s145 + $0x2a0] sm:$0xff] %v2290
        %3315 = vst [vmem:[%s145 + $0x2a8] sm:$0xff] %v2291
        %3316 = vst [vmem:[%s145 + $0x2b0] sm:$0xff] %v2292
        %3317 = vst [vmem:[%s145 + $0x2b8] sm:$0xff] %v2293
        %3318 = vst [vmem:[%s145 + $0x2c0] sm:$0xff] %v2294
        %3319 = vst [vmem:[%s145 + $0x2c8] sm:$0xff] %v2295
        %3320 = vst [vmem:[%s145 + $0x2d0] sm:$0xff] %v2296
        %3321 = vst [vmem:[%s145 + $0x2d8] sm:$0xff] %v2297
        %3322 = vst [vmem:[%s145 + $0x2e0] sm:$0xff] %v2298
        %3323 = vst [vmem:[%s145 + $0x2e8] sm:$0xff] %v2299
        %3324 = vst [vmem:[%s145 + $0x2f0] sm:$0xff] %v2300
        %3325 = vst [vmem:[%s145 + $0x2f8] sm:$0xff] %v2301
        %3326 = vst [vmem:[%s145 + $0x300] sm:$0xff] %v2302
        %3327 = vst [vmem:[%s145 + $0x308] sm:$0xff] %v2303
        %3328 = vst [vmem:[%s145 + $0x310] sm:$0xff] %v2304
        %3329 = vst [vmem:[%s145 + $0x318] sm:$0xff] %v2305
        %3330 = vst [vmem:[%s145 + $0x320] sm:$0xff] %v2306
        %3331 = vst [vmem:[%s145 + $0x328] sm:$0xff] %v2307
        %3332 = vst [vmem:[%s145 + $0x330] sm:$0xff] %v2308
        %3333 = vst [vmem:[%s145 + $0x338] sm:$0xff] %v2309
        %3334 = vst [vmem:[%s145 + $0x340] sm:$0xff] %v2310
        %3335 = vst [vmem:[%s145 + $0x348] sm:$0xff] %v2311
        %3336 = vst [vmem:[%s145 + $0x350] sm:$0xff] %v2312
        %3337 = vst [vmem:[%s145 + $0x358] sm:$0xff] %v2313
        %3338 = vst [vmem:[%s145 + $0x360] sm:$0xff] %v2314
        %3339 = vst [vmem:[%s145 + $0x368] sm:$0xff] %v2315
        %3340 = vst [vmem:[%s145 + $0x370] sm:$0xff] %v2316
        %3341 = vst [vmem:[%s145 + $0x378] sm:$0xff] %v2317
        %3342 = vst [vmem:[%s145 + $0x380] sm:$0xff] %v2318
        %3343 = vst [vmem:[%s145 + $0x388] sm:$0xff] %v2319
        %3344 = vst [vmem:[%s145 + $0x390] sm:$0xff] %v2320
        %3345 = vst [vmem:[%s145 + $0x398] sm:$0xff] %v2321
        %3346 = vst [vmem:[%s145 + $0x3a0] sm:$0xff] %v2322
        %3347 = vst [vmem:[%s145 + $0x3a8] sm:$0xff] %v2323
        %3348 = vst [vmem:[%s145 + $0x3b0] sm:$0xff] %v2324
        %3349 = vst [vmem:[%s145 + $0x3b8] sm:$0xff] %v2325
        %3350 = vst [vmem:[%s145 + $0x3c0] sm:$0xff] %v2326
        %3351 = vst [vmem:[%s145 + $0x3c8] sm:$0xff] %v2327
        %3352 = vst [vmem:[%s145 + $0x3d0] sm:$0xff] %v2328
        %3353 = vst [vmem:[%s145 + $0x3d8] sm:$0xff] %v2329
        %3354 = vst [vmem:[%s145 + $0x3e0] sm:$0xff] %v2330
        %3355 = vst [vmem:[%s145 + $0x3e8] sm:$0xff] %v2331
        %3356 = vst [vmem:[%s145 + $0x3f0] sm:$0xff] %v2332
        %3357 = vst [vmem:[%s145 + $0x3f8] sm:$0xff] %v2333
        %3358 = vst [vmem:[%s145 + $0x400] sm:$0xff] %v2334
        %3359 = vst [vmem:[%s145 + $0x408] sm:$0xff] %v2335
        %3360 = vst [vmem:[%s145 + $0x410] sm:$0xff] %v2336
        %3361 = vst [vmem:[%s145 + $0x418] sm:$0xff] %v2337
        %3362 = vst [vmem:[%s145 + $0x420] sm:$0xff] %v2338
        %3363 = vst [vmem:[%s145 + $0x428] sm:$0xff] %v2339
        %3364 = vst [vmem:[%s145 + $0x430] sm:$0xff] %v2340
        %3365 = vst [vmem:[%s145 + $0x438] sm:$0xff] %v2341
        %3366 = vst [vmem:[%s145 + $0x440] sm:$0xff] %v2342
        %3367 = vst [vmem:[%s145 + $0x448] sm:$0xff] %v2343
        %3368 = vst [vmem:[%s145 + $0x450] sm:$0xff] %v2344
        %3369 = vst [vmem:[%s145 + $0x458] sm:$0xff] %v2345
        %3370 = vst [vmem:[%s145 + $0x460] sm:$0xff] %v2346
        %3371 = vst [vmem:[%s145 + $0x468] sm:$0xff] %v2347
        %3372 = vst [vmem:[%s145 + $0x470] sm:$0xff] %v2348
        %3373 = vst [vmem:[%s145 + $0x478] sm:$0xff] %v2349
        %3374 = vst [vmem:[%s145 + $0x480] sm:$0xff] %v2350
        %3375 = vst [vmem:[%s145 + $0x488] sm:$0xff] %v2351
        %3376 = vst [vmem:[%s145 + $0x490] sm:$0xff] %v2352
        %3377 = vst [vmem:[%s145 + $0x498] sm:$0xff] %v2353
        %3378 = vst [vmem:[%s145 + $0x4a0] sm:$0xff] %v2354
        %3379 = vst [vmem:[%s145 + $0x4a8] sm:$0xff] %v2355
        %3380 = vst [vmem:[%s145 + $0x4b0] sm:$0xff] %v2356
        %3381 = vst [vmem:[%s145 + $0x4b8] sm:$0xff] %v2357
        %3382 = vst [vmem:[%s145 + $0x4c0] sm:$0xff] %v2358
        %3383 = vst [vmem:[%s145 + $0x4c8] sm:$0xff] %v2359
        %3384 = vst [vmem:[%s145 + $0x4d0] sm:$0xff] %v2360
        %3385 = vst [vmem:[%s145 + $0x4d8] sm:$0xff] %v2361
        %3386 = vst [vmem:[%s145 + $0x4e0] sm:$0xff] %v2362
        %3387 = vst [vmem:[%s145 + $0x4e8] sm:$0xff] %v2363
        %3388 = vst [vmem:[%s145 + $0x4f0] sm:$0xff] %v2364
        %3389 = vst [vmem:[%s145 + $0x4f8] sm:$0xff] %v2365
        %3390 = vst [vmem:[%s145 + $0x500] sm:$0xff] %v2366
        %3391 = vst [vmem:[%s145 + $0x508] sm:$0xff] %v2367
        %3392 = vst [vmem:[%s145 + $0x510] sm:$0xff] %v2368
        %3393 = vst [vmem:[%s145 + $0x518] sm:$0xff] %v2369
        %3394 = vst [vmem:[%s145 + $0x520] sm:$0xff] %v2370
        %3395 = vst [vmem:[%s145 + $0x528] sm:$0xff] %v2371
        %3396 = vst [vmem:[%s145 + $0x530] sm:$0xff] %v2372
        %3397 = vst [vmem:[%s145 + $0x538] sm:$0xff] %v2373
        %3398 = vst [vmem:[%s145 + $0x540] sm:$0xff] %v2374
        %3399 = vst [vmem:[%s145 + $0x548] sm:$0xff] %v2375
        %3400 = vst [vmem:[%s145 + $0x550] sm:$0xff] %v2376
        %3401 = vst [vmem:[%s145 + $0x558] sm:$0xff] %v2377
        %3402 = vst [vmem:[%s145 + $0x560] sm:$0xff] %v2378
        %3403 = vst [vmem:[%s145 + $0x568] sm:$0xff] %v2379
        %3404 = vst [vmem:[%s145 + $0x570] sm:$0xff] %v2380
        %3405 = vst [vmem:[%s145 + $0x578] sm:$0xff] %v2381
        %3406 = vst [vmem:[%s145 + $0x580] sm:$0xff] %v2382
        %3407 = vst [vmem:[%s145 + $0x588] sm:$0xff] %v2383
        %3408 = vst [vmem:[%s145 + $0x590] sm:$0xff] %v2384
        %3409 = vst [vmem:[%s145 + $0x598] sm:$0xff] %v2385
        %3410 = vst [vmem:[%s145 + $0x5a0] sm:$0xff] %v2386
        %3411 = vst [vmem:[%s145 + $0x5a8] sm:$0xff] %v2387
        %3412 = vst [vmem:[%s145 + $0x5b0] sm:$0xff] %v2388
        %3413 = vst [vmem:[%s145 + $0x5b8] sm:$0xff] %v2389
        %3414 = vst [vmem:[%s145 + $0x5c0] sm:$0xff] %v2390
        %3415 = vst [vmem:[%s145 + $0x5c8] sm:$0xff] %v2391
        %3416 = vst [vmem:[%s145 + $0x5d0] sm:$0xff] %v2392
        %3417 = vst [vmem:[%s145 + $0x5d8] sm:$0xff] %v2393
        %3418 = vst [vmem:[%s145 + $0x5e0] sm:$0xff] %v2394
        %3419 = vst [vmem:[%s145 + $0x5e8] sm:$0xff] %v2395
        %3420 = vst [vmem:[%s145 + $0x5f0] sm:$0xff] %v2396
        %3421 = vst [vmem:[%s145 + $0x5f8] sm:$0xff] %v2397
        %3422 = vst [vmem:[%s145 + $0x600] sm:$0xff] %v2398
        %3423 = vst [vmem:[%s145 + $0x608] sm:$0xff] %v2399
        %3424 = vst [vmem:[%s145 + $0x610] sm:$0xff] %v2400
        %3425 = vst [vmem:[%s145 + $0x618] sm:$0xff] %v2401
        %3426 = vst [vmem:[%s145 + $0x620] sm:$0xff] %v2402
        %3427 = vst [vmem:[%s145 + $0x628] sm:$0xff] %v2403
        %3428 = vst [vmem:[%s145 + $0x630] sm:$0xff] %v2404
        %3429 = vst [vmem:[%s145 + $0x638] sm:$0xff] %v2405
        %3430 = vst [vmem:[%s145 + $0x640] sm:$0xff] %v2406
        %3431 = vst [vmem:[%s145 + $0x648] sm:$0xff] %v2407
        %3432 = vst [vmem:[%s145 + $0x650] sm:$0xff] %v2408
        %3433 = vst [vmem:[%s145 + $0x658] sm:$0xff] %v2409
        %3434 = vst [vmem:[%s145 + $0x660] sm:$0xff] %v2410
        %3435 = vst [vmem:[%s145 + $0x668] sm:$0xff] %v2411
        %3436 = vst [vmem:[%s145 + $0x670] sm:$0xff] %v2412
        %3437 = vst [vmem:[%s145 + $0x678] sm:$0xff] %v2413
        %3438 = vst [vmem:[%s145 + $0x680] sm:$0xff] %v2414
        %3439 = vst [vmem:[%s145 + $0x688] sm:$0xff] %v2415
        %3440 = vst [vmem:[%s145 + $0x690] sm:$0xff] %v2416
        %3441 = vst [vmem:[%s145 + $0x698] sm:$0xff] %v2417
        %3442 = vst [vmem:[%s145 + $0x6a0] sm:$0xff] %v2418
        %3443 = vst [vmem:[%s145 + $0x6a8] sm:$0xff] %v2419
        %3444 = vst [vmem:[%s145 + $0x6b0] sm:$0xff] %v2420
        %3445 = vst [vmem:[%s145 + $0x6b8] sm:$0xff] %v2421
        %3446 = vst [vmem:[%s145 + $0x6c0] sm:$0xff] %v2422
        %3447 = vst [vmem:[%s145 + $0x6c8] sm:$0xff] %v2423
        %3448 = vst [vmem:[%s145 + $0x6d0] sm:$0xff] %v2424
        %3449 = vst [vmem:[%s145 + $0x6d8] sm:$0xff] %v2425
        %3450 = vst [vmem:[%s145 + $0x6e0] sm:$0xff] %v2426
        %3451 = vst [vmem:[%s145 + $0x6e8] sm:$0xff] %v2427
        %3452 = vst [vmem:[%s145 + $0x6f0] sm:$0xff] %v2428
        %3453 = vst [vmem:[%s145 + $0x6f8] sm:$0xff] %v2429
        %3454 = vst [vmem:[%s145 + $0x700] sm:$0xff] %v2430
        %3455 = vst [vmem:[%s145 + $0x708] sm:$0xff] %v2431
        %3456 = vst [vmem:[%s145 + $0x710] sm:$0xff] %v2432
        %3457 = vst [vmem:[%s145 + $0x718] sm:$0xff] %v2433
        %3458 = vst [vmem:[%s145 + $0x720] sm:$0xff] %v2434
        %3459 = vst [vmem:[%s145 + $0x728] sm:$0xff] %v2435
        %3460 = vst [vmem:[%s145 + $0x730] sm:$0xff] %v2436
        %3461 = vst [vmem:[%s145 + $0x738] sm:$0xff] %v2437
        %3462 = vst [vmem:[%s145 + $0x740] sm:$0xff] %v2438
        %3463 = vst [vmem:[%s145 + $0x748] sm:$0xff] %v2439
        %3464 = vst [vmem:[%s145 + $0x750] sm:$0xff] %v2440
        %3465 = vst [vmem:[%s145 + $0x758] sm:$0xff] %v2441
        %3466 = vst [vmem:[%s145 + $0x760] sm:$0xff] %v2442
        %3467 = vst [vmem:[%s145 + $0x768] sm:$0xff] %v2443
        %3468 = vst [vmem:[%s145 + $0x770] sm:$0xff] %v2444
        %3469 = vst [vmem:[%s145 + $0x778] sm:$0xff] %v2445
        %3470 = vst [vmem:[%s145 + $0x780] sm:$0xff] %v2446
        %3471 = vst [vmem:[%s145 + $0x788] sm:$0xff] %v2447
        %3472 = vst [vmem:[%s145 + $0x790] sm:$0xff] %v2448
        %3473 = vst [vmem:[%s145 + $0x798] sm:$0xff] %v2449
        %3474 = vst [vmem:[%s145 + $0x7a0] sm:$0xff] %v2450
        %3475 = vst [vmem:[%s145 + $0x7a8] sm:$0xff] %v2451
        %3476 = vst [vmem:[%s145 + $0x7b0] sm:$0xff] %v2452
        %3477 = vst [vmem:[%s145 + $0x7b8] sm:$0xff] %v2453
        %3478 = vst [vmem:[%s145 + $0x7c0] sm:$0xff] %v2454
        %3479 = vst [vmem:[%s145 + $0x7c8] sm:$0xff] %v2455
        %3480 = vst [vmem:[%s145 + $0x7d0] sm:$0xff] %v2456
        %3481 = vst [vmem:[%s145 + $0x7d8] sm:$0xff] %v2457
        %3482 = vst [vmem:[%s145 + $0x7e0] sm:$0xff] %v2458
        %3483 = vst [vmem:[%s145 + $0x7e8] sm:$0xff] %v2459
        %3484 = vst [vmem:[%s145 + $0x7f0] sm:$0xff] %v2460
        %3485 = vst [vmem:[%s145 + $0x7f8] sm:$0xff] %v2461
        %3486 = vst [vmem:[%s145 + $0x800] sm:$0xff] %v2462
        %3487 = vst [vmem:[%s145 + $0x808] sm:$0xff] %v2463
        %3488 = vst [vmem:[%s145 + $0x810] sm:$0xff] %v2464
        %3489 = vst [vmem:[%s145 + $0x818] sm:$0xff] %v2465
        %3490 = vst [vmem:[%s145 + $0x820] sm:$0xff] %v2466
        %3491 = vst [vmem:[%s145 + $0x828] sm:$0xff] %v2467
        %3492 = vst [vmem:[%s145 + $0x830] sm:$0xff] %v2468
        %3493 = vst [vmem:[%s145 + $0x838] sm:$0xff] %v2469
        %3494 = vst [vmem:[%s145 + $0x840] sm:$0xff] %v2470
        %3495 = vst [vmem:[%s145 + $0x848] sm:$0xff] %v2471
        %3496 = vst [vmem:[%s145 + $0x850] sm:$0xff] %v2472
        %3497 = vst [vmem:[%s145 + $0x858] sm:$0xff] %v2473
        %3498 = vst [vmem:[%s145 + $0x860] sm:$0xff] %v2474
        %3499 = vst [vmem:[%s145 + $0x868] sm:$0xff] %v2475
        %3500 = vst [vmem:[%s145 + $0x870] sm:$0xff] %v2476
        %3501 = vst [vmem:[%s145 + $0x878] sm:$0xff] %v2477
        %3502 = vst [vmem:[%s145 + $0x880] sm:$0xff] %v2478
        %3503 = vst [vmem:[%s145 + $0x888] sm:$0xff] %v2479
        %3504 = vst [vmem:[%s145 + $0x890] sm:$0xff] %v2480
        %3505 = vst [vmem:[%s145 + $0x898] sm:$0xff] %v2481
        %3506 = vst [vmem:[%s145 + $0x8a0] sm:$0xff] %v2482
        %3507 = vst [vmem:[%s145 + $0x8a8] sm:$0xff] %v2483
        %3508 = vst [vmem:[%s145 + $0x8b0] sm:$0xff] %v2484
        %3509 = vst [vmem:[%s145 + $0x8b8] sm:$0xff] %v2485
        %3510 = vst [vmem:[%s145 + $0x8c0] sm:$0xff] %v2486
        %3511 = vst [vmem:[%s145 + $0x8c8] sm:$0xff] %v2487
        %3512 = vst [vmem:[%s145 + $0x8d0] sm:$0xff] %v2488
        %3513 = vst [vmem:[%s145 + $0x8d8] sm:$0xff] %v2489
        %3514 = vst [vmem:[%s145 + $0x8e0] sm:$0xff] %v2490
        %3515 = vst [vmem:[%s145 + $0x8e8] sm:$0xff] %v2491
        %3516 = vst [vmem:[%s145 + $0x8f0] sm:$0xff] %v2492
        %3517 = vst [vmem:[%s145 + $0x8f8] sm:$0xff] %v2493
        %3518 = vst [vmem:[%s145 + $0x900] sm:$0xff] %v2494
        %3519 = vst [vmem:[%s145 + $0x908] sm:$0xff] %v2495
        %3520 = vst [vmem:[%s145 + $0x910] sm:$0xff] %v2496
        %3521 = vst [vmem:[%s145 + $0x918] sm:$0xff] %v2497
        %3522 = vst [vmem:[%s145 + $0x920] sm:$0xff] %v2498
        %3523 = vst [vmem:[%s145 + $0x928] sm:$0xff] %v2499
        %3524 = vst [vmem:[%s145 + $0x930] sm:$0xff] %v2500
        %3525 = vst [vmem:[%s145 + $0x938] sm:$0xff] %v2501
        %3526 = vst [vmem:[%s145 + $0x940] sm:$0xff] %v2502
        %3527 = vst [vmem:[%s145 + $0x948] sm:$0xff] %v2503
        %3528 = vst [vmem:[%s145 + $0x950] sm:$0xff] %v2504
        %3529 = vst [vmem:[%s145 + $0x958] sm:$0xff] %v2505
        %3530 = vst [vmem:[%s145 + $0x960] sm:$0xff] %v2506
        %3531 = vst [vmem:[%s145 + $0x968] sm:$0xff] %v2507
        %3532 = vst [vmem:[%s145 + $0x970] sm:$0xff] %v2508
        %3533 = vst [vmem:[%s145 + $0x978] sm:$0xff] %v2509
        %3534 = vst [vmem:[%s145 + $0x980] sm:$0xff] %v2510
        %3535 = vst [vmem:[%s145 + $0x988] sm:$0xff] %v2511
        %3536 = vst [vmem:[%s145 + $0x990] sm:$0xff] %v2512
        %3537 = vst [vmem:[%s145 + $0x998] sm:$0xff] %v2513
        %3538 = vst [vmem:[%s145 + $0x9a0] sm:$0xff] %v2514
        %3539 = vst [vmem:[%s145 + $0x9a8] sm:$0xff] %v2515
        %3540 = vst [vmem:[%s145 + $0x9b0] sm:$0xff] %v2516
        %3541 = vst [vmem:[%s145 + $0x9b8] sm:$0xff] %v2517
        %3542 = vst [vmem:[%s145 + $0x9c0] sm:$0xff] %v2518
        %3543 = vst [vmem:[%s145 + $0x9c8] sm:$0xff] %v2519
        %3544 = vst [vmem:[%s145 + $0x9d0] sm:$0xff] %v2520
        %3545 = vst [vmem:[%s145 + $0x9d8] sm:$0xff] %v2521
        %3546 = vst [vmem:[%s145 + $0x9e0] sm:$0xff] %v2522
        %3547 = vst [vmem:[%s145 + $0x9e8] sm:$0xff] %v2523
        %3548 = vst [vmem:[%s145 + $0x9f0] sm:$0xff] %v2524
        %3549 = vst [vmem:[%s145 + $0x9f8] sm:$0xff] %v2525
        %3550 = vst [vmem:[%s145 + $0xa00] sm:$0xff] %v2526
        %3551 = vst [vmem:[%s145 + $0xa08] sm:$0xff] %v2527
        %3552 = vst [vmem:[%s145 + $0xa10] sm:$0xff] %v2528
        %3553 = vst [vmem:[%s145 + $0xa18] sm:$0xff] %v2529
        %3554 = vst [vmem:[%s145 + $0xa20] sm:$0xff] %v2530
        %3555 = vst [vmem:[%s145 + $0xa28] sm:$0xff] %v2531
        %3556 = vst [vmem:[%s145 + $0xa30] sm:$0xff] %v2532
        %3557 = vst [vmem:[%s145 + $0xa38] sm:$0xff] %v2533
        %3558 = vst [vmem:[%s145 + $0xa40] sm:$0xff] %v2534
        %3559 = vst [vmem:[%s145 + $0xa48] sm:$0xff] %v2535
        %3560 = vst [vmem:[%s145 + $0xa50] sm:$0xff] %v2536
        %3561 = vst [vmem:[%s145 + $0xa58] sm:$0xff] %v2537
        %3562 = vst [vmem:[%s145 + $0xa60] sm:$0xff] %v2538
        %3563 = vst [vmem:[%s145 + $0xa68] sm:$0xff] %v2539
        %3564 = vst [vmem:[%s145 + $0xa70] sm:$0xff] %v2540
        %3565 = vst [vmem:[%s145 + $0xa78] sm:$0xff] %v2541
        %3566 = vst [vmem:[%s145 + $0xa80] sm:$0xff] %v2542
        %3567 = vst [vmem:[%s145 + $0xa88] sm:$0xff] %v2543
        %3568 = vst [vmem:[%s145 + $0xa90] sm:$0xff] %v2544
        %3569 = vst [vmem:[%s145 + $0xa98] sm:$0xff] %v2545
        %3570 = vst [vmem:[%s145 + $0xaa0] sm:$0xff] %v2546
        %3571 = vst [vmem:[%s145 + $0xaa8] sm:$0xff] %v2547
        %3572 = vst [vmem:[%s145 + $0xab0] sm:$0xff] %v2548
        %3573 = vst [vmem:[%s145 + $0xab8] sm:$0xff] %v2549
        %3574 = vst [vmem:[%s145 + $0xac0] sm:$0xff] %v2550
        %3575 = vst [vmem:[%s145 + $0xac8] sm:$0xff] %v2551
        %3576 = vst [vmem:[%s145 + $0xad0] sm:$0xff] %v2552
        %3577 = vst [vmem:[%s145 + $0xad8] sm:$0xff] %v2553
        %3578 = vst [vmem:[%s145 + $0xae0] sm:$0xff] %v2554
        %3579 = vst [vmem:[%s145 + $0xae8] sm:$0xff] %v2555
        %3580 = vst [vmem:[%s145 + $0xaf0] sm:$0xff] %v2556
        %3581 = vst [vmem:[%s145 + $0xaf8] sm:$0xff] %v2557
        %3582 = vst [vmem:[%s145 + $0xb00] sm:$0xff] %v2558
        %3583 = vst [vmem:[%s145 + $0xb08] sm:$0xff] %v2559
        %3584 = vst [vmem:[%s145 + $0xb10] sm:$0xff] %v2560
        %3585 = vst [vmem:[%s145 + $0xb18] sm:$0xff] %v2561
        %3586 = vst [vmem:[%s145 + $0xb20] sm:$0xff] %v2562
        %3587 = vst [vmem:[%s145 + $0xb28] sm:$0xff] %v2563
        %3588 = vst [vmem:[%s145 + $0xb30] sm:$0xff] %v2564
        %3589 = vst [vmem:[%s145 + $0xb38] sm:$0xff] %v2565
        %3590 = vst [vmem:[%s145 + $0xb40] sm:$0xff] %v2566
        %3591 = vst [vmem:[%s145 + $0xb48] sm:$0xff] %v2567
        %3592 = vst [vmem:[%s145 + $0xb50] sm:$0xff] %v2568
        %3593 = vst [vmem:[%s145 + $0xb58] sm:$0xff] %v2569
        %3594 = vst [vmem:[%s145 + $0xb60] sm:$0xff] %v2570
        %3595 = vst [vmem:[%s145 + $0xb68] sm:$0xff] %v2571
        %3596 = vst [vmem:[%s145 + $0xb70] sm:$0xff] %v2572
        %3597 = vst [vmem:[%s145 + $0xb78] sm:$0xff] %v2573
        %3598 = vst [vmem:[%s145 + $0xb80] sm:$0xff] %v2574
        %3599 = vst [vmem:[%s145 + $0xb88] sm:$0xff] %v2575
        %3600 = vst [vmem:[%s145 + $0xb90] sm:$0xff] %v2576
        %3601 = vst [vmem:[%s145 + $0xb98] sm:$0xff] %v2577
        %3602 = vst [vmem:[%s145 + $0xba0] sm:$0xff] %v2578
        %3603 = vst [vmem:[%s145 + $0xba8] sm:$0xff] %v2579
        %3604 = vst [vmem:[%s145 + $0xbb0] sm:$0xff] %v2580
        %3605 = vst [vmem:[%s145 + $0xbb8] sm:$0xff] %v2581
        %3606 = vst [vmem:[%s145 + $0xbc0] sm:$0xff] %v2582
        %3607 = vst [vmem:[%s145 + $0xbc8] sm:$0xff] %v2583
        %3608 = vst [vmem:[%s145 + $0xbd0] sm:$0xff] %v2584
        %3609 = vst [vmem:[%s145 + $0xbd8] sm:$0xff] %v2585
        %3610 = vst [vmem:[%s145 + $0xbe0] sm:$0xff] %v2586
        %3611 = vst [vmem:[%s145 + $0xbe8] sm:$0xff] %v2587
        %3612 = vst [vmem:[%s145 + $0xbf0] sm:$0xff] %v2588
        %3613 = vst [vmem:[%s145 + $0xbf8] sm:$0xff] %v2589
        %3614 = vst [vmem:[%s145 + $0xc00] sm:$0xff] %v2590
        %3615 = vst [vmem:[%s145 + $0xc08] sm:$0xff] %v2591
        %3616 = vst [vmem:[%s145 + $0xc10] sm:$0xff] %v2592
        %3617 = vst [vmem:[%s145 + $0xc18] sm:$0xff] %v2593
        %3618 = vst [vmem:[%s145 + $0xc20] sm:$0xff] %v2594
        %3619 = vst [vmem:[%s145 + $0xc28] sm:$0xff] %v2595
        %3620 = vst [vmem:[%s145 + $0xc30] sm:$0xff] %v2596
        %3621 = vst [vmem:[%s145 + $0xc38] sm:$0xff] %v2597
        %3622 = vst [vmem:[%s145 + $0xc40] sm:$0xff] %v2598
        %3623 = vst [vmem:[%s145 + $0xc48] sm:$0xff] %v2599
        %3624 = vst [vmem:[%s145 + $0xc50] sm:$0xff] %v2600
        %3625 = vst [vmem:[%s145 + $0xc58] sm:$0xff] %v2601
        %3626 = vst [vmem:[%s145 + $0xc60] sm:$0xff] %v2602
        %3627 = vst [vmem:[%s145 + $0xc68] sm:$0xff] %v2603
        %3628 = vst [vmem:[%s145 + $0xc70] sm:$0xff] %v2604
        %3629 = vst [vmem:[%s145 + $0xc78] sm:$0xff] %v2605
        %3630 = vst [vmem:[%s145 + $0xc80] sm:$0xff] %v2606
        %3631 = vst [vmem:[%s145 + $0xc88] sm:$0xff] %v2607
        %3632 = vst [vmem:[%s145 + $0xc90] sm:$0xff] %v2608
        %3633 = vst [vmem:[%s145 + $0xc98] sm:$0xff] %v2609
        %3634 = vst [vmem:[%s145 + $0xca0] sm:$0xff] %v2610
        %3635 = vst [vmem:[%s145 + $0xca8] sm:$0xff] %v2611
        %3636 = vst [vmem:[%s145 + $0xcb0] sm:$0xff] %v2612
        %3637 = vst [vmem:[%s145 + $0xcb8] sm:$0xff] %v2613
        %3638 = vst [vmem:[%s145 + $0xcc0] sm:$0xff] %v2614
        %3639 = vst [vmem:[%s145 + $0xcc8] sm:$0xff] %v2615
        %3640 = vst [vmem:[%s145 + $0xcd0] sm:$0xff] %v2616
        %3641 = vst [vmem:[%s145 + $0xcd8] sm:$0xff] %v2617
        %3642 = vst [vmem:[%s145 + $0xce0] sm:$0xff] %v2618
        %3643 = vst [vmem:[%s145 + $0xce8] sm:$0xff] %v2619
        %3644 = vst [vmem:[%s145 + $0xcf0] sm:$0xff] %v2620
        %3645 = vst [vmem:[%s145 + $0xcf8] sm:$0xff] %v2621
        %3646 = vst [vmem:[%s145 + $0xd00] sm:$0xff] %v2622
        %3647 = vst [vmem:[%s145 + $0xd08] sm:$0xff] %v2623
        %3648 = vst [vmem:[%s145 + $0xd10] sm:$0xff] %v2624
        %3649 = vst [vmem:[%s145 + $0xd18] sm:$0xff] %v2625
        %3650 = vst [vmem:[%s145 + $0xd20] sm:$0xff] %v2626
        %3651 = vst [vmem:[%s145 + $0xd28] sm:$0xff] %v2627
        %3652 = vst [vmem:[%s145 + $0xd30] sm:$0xff] %v2628
        %3653 = vst [vmem:[%s145 + $0xd38] sm:$0xff] %v2629
        %3654 = vst [vmem:[%s145 + $0xd40] sm:$0xff] %v2630
        %3655 = vst [vmem:[%s145 + $0xd48] sm:$0xff] %v2631
        %3656 = vst [vmem:[%s145 + $0xd50] sm:$0xff] %v2632
        %3657 = vst [vmem:[%s145 + $0xd58] sm:$0xff] %v2633
        %3658 = vst [vmem:[%s145 + $0xd60] sm:$0xff] %v2634
        %3659 = vst [vmem:[%s145 + $0xd68] sm:$0xff] %v2635
        %3660 = vst [vmem:[%s145 + $0xd70] sm:$0xff] %v2636
        %3661 = vst [vmem:[%s145 + $0xd78] sm:$0xff] %v2637
        %3662 = vst [vmem:[%s145 + $0xd80] sm:$0xff] %v2638
        %3663 = vst [vmem:[%s145 + $0xd88] sm:$0xff] %v2639
        %3664 = vst [vmem:[%s145 + $0xd90] sm:$0xff] %v2640
        %3665 = vst [vmem:[%s145 + $0xd98] sm:$0xff] %v2641
        %3666 = vst [vmem:[%s145 + $0xda0] sm:$0xff] %v2642
        %3667 = vst [vmem:[%s145 + $0xda8] sm:$0xff] %v2643
        %3668 = vst [vmem:[%s145 + $0xdb0] sm:$0xff] %v2644
        %3669 = vst [vmem:[%s145 + $0xdb8] sm:$0xff] %v2645
        %3670 = vst [vmem:[%s145 + $0xdc0] sm:$0xff] %v2646
        %3671 = vst [vmem:[%s145 + $0xdc8] sm:$0xff] %v2647
        %3672 = vst [vmem:[%s145 + $0xdd0] sm:$0xff] %v2648
        %3673 = vst [vmem:[%s145 + $0xdd8] sm:$0xff] %v2649
        %3674 = vst [vmem:[%s145 + $0xde0] sm:$0xff] %v2650
        %3675 = vst [vmem:[%s145 + $0xde8] sm:$0xff] %v2651
        %3676 = vst [vmem:[%s145 + $0xdf0] sm:$0xff] %v2652
        %3677 = vst [vmem:[%s145 + $0xdf8] sm:$0xff] %v2653
        %3678 = vst [vmem:[%s145 + $0xe00] sm:$0xff] %v2654
        %3679 = vst [vmem:[%s145 + $0xe08] sm:$0xff] %v2655
        %3680 = vst [vmem:[%s145 + $0xe10] sm:$0xff] %v2656
        %3681 = vst [vmem:[%s145 + $0xe18] sm:$0xff] %v2657
        %3682 = vst [vmem:[%s145 + $0xe20] sm:$0xff] %v2658
        %3683 = vst [vmem:[%s145 + $0xe28] sm:$0xff] %v2659
        %3684 = vst [vmem:[%s145 + $0xe30] sm:$0xff] %v2660
        %3685 = vst [vmem:[%s145 + $0xe38] sm:$0xff] %v2661
        %3686 = vst [vmem:[%s145 + $0xe40] sm:$0xff] %v2662
        %3687 = vst [vmem:[%s145 + $0xe48] sm:$0xff] %v2663
        %3688 = vst [vmem:[%s145 + $0xe50] sm:$0xff] %v2664
        %3689 = vst [vmem:[%s145 + $0xe58] sm:$0xff] %v2665
        %3690 = vst [vmem:[%s145 + $0xe60] sm:$0xff] %v2666
        %3691 = vst [vmem:[%s145 + $0xe68] sm:$0xff] %v2667
        %3692 = vst [vmem:[%s145 + $0xe70] sm:$0xff] %v2668
        %3693 = vst [vmem:[%s145 + $0xe78] sm:$0xff] %v2669
        %3694 = vst [vmem:[%s145 + $0xe80] sm:$0xff] %v2670
        %3695 = vst [vmem:[%s145 + $0xe88] sm:$0xff] %v2671
        %3696 = vst [vmem:[%s145 + $0xe90] sm:$0xff] %v2672
        %3697 = vst [vmem:[%s145 + $0xe98] sm:$0xff] %v2673
        %3698 = vst [vmem:[%s145 + $0xea0] sm:$0xff] %v2674
        %3699 = vst [vmem:[%s145 + $0xea8] sm:$0xff] %v2675
        %3700 = vst [vmem:[%s145 + $0xeb0] sm:$0xff] %v2676
        %3701 = vst [vmem:[%s145 + $0xeb8] sm:$0xff] %v2677
        %3702 = vst [vmem:[%s145 + $0xec0] sm:$0xff] %v2678
        %3703 = vst [vmem:[%s145 + $0xec8] sm:$0xff] %v2679
        %3704 = vst [vmem:[%s145 + $0xed0] sm:$0xff] %v2680
        %3705 = vst [vmem:[%s145 + $0xed8] sm:$0xff] %v2681
        %3706 = vst [vmem:[%s145 + $0xee0] sm:$0xff] %v2682
        %3707 = vst [vmem:[%s145 + $0xee8] sm:$0xff] %v2683
        %3708 = vst [vmem:[%s145 + $0xef0] sm:$0xff] %v2684
        %3709 = vst [vmem:[%s145 + $0xef8] sm:$0xff] %v2685
        %3710 = vst [vmem:[%s145 + $0xf00] sm:$0xff] %v2686
        %3711 = vst [vmem:[%s145 + $0xf08] sm:$0xff] %v2687
        %3712 = vst [vmem:[%s145 + $0xf10] sm:$0xff] %v2688
        %3713 = vst [vmem:[%s145 + $0xf18] sm:$0xff] %v2689
        %3714 = vst [vmem:[%s145 + $0xf20] sm:$0xff] %v2690
        %3715 = vst [vmem:[%s145 + $0xf28] sm:$0xff] %v2691
        %3716 = vst [vmem:[%s145 + $0xf30] sm:$0xff] %v2692
        %3717 = vst [vmem:[%s145 + $0xf38] sm:$0xff] %v2693
        %3718 = vst [vmem:[%s145 + $0xf40] sm:$0xff] %v2694
        %3719 = vst [vmem:[%s145 + $0xf48] sm:$0xff] %v2695
        %3720 = vst [vmem:[%s145 + $0xf50] sm:$0xff] %v2696
        %3721 = vst [vmem:[%s145 + $0xf58] sm:$0xff] %v2697
        %3722 = vst [vmem:[%s145 + $0xf60] sm:$0xff] %v2698
        %3723 = vst [vmem:[%s145 + $0xf68] sm:$0xff] %v2699
        %3724 = vst [vmem:[%s145 + $0xf70] sm:$0xff] %v2700
        %3725 = vst [vmem:[%s145 + $0xf78] sm:$0xff] %v2701
        %3726 = vst [vmem:[%s145 + $0xf80] sm:$0xff] %v2702
        %3727 = vst [vmem:[%s145 + $0xf88] sm:$0xff] %v2703
        %3728 = vst [vmem:[%s145 + $0xf90] sm:$0xff] %v2704
        %3729 = vst [vmem:[%s145 + $0xf98] sm:$0xff] %v2705
        %3730 = vst [vmem:[%s145 + $0xfa0] sm:$0xff] %v2706
        %3731 = vst [vmem:[%s145 + $0xfa8] sm:$0xff] %v2707
        %3732 = vst [vmem:[%s145 + $0xfb0] sm:$0xff] %v2708
        %3733 = vst [vmem:[%s145 + $0xfb8] sm:$0xff] %v2709
        %3734 = vst [vmem:[%s145 + $0xfc0] sm:$0xff] %v2710
        %3735 = vst [vmem:[%s145 + $0xfc8] sm:$0xff] %v2711
        %3736 = vst [vmem:[%s145 + $0xfd0] sm:$0xff] %v2712
        %3737 = vst [vmem:[%s145 + $0xfd8] sm:$0xff] %v2713
        %3738 = vst [vmem:[%s145 + $0xfe0] sm:$0xff] %v2714
        %3739 = vst [vmem:[%s145 + $0xfe8] sm:$0xff] %v2715
        %3740 = vst [vmem:[%s145 + $0xff0] sm:$0xff] %v2716
        %3741 = vst [vmem:[%s145 + $0xff8] sm:$0xff] %v2717
        %3742 = vst [vmem:[%s145 + $0x1000] sm:$0xff] %v2718
        %3743 = vst [vmem:[%s145 + $0x1008] sm:$0xff] %v2719
        %3744 = vst [vmem:[%s145 + $0x1010] sm:$0xff] %v2720
        %3745 = vst [vmem:[%s145 + $0x1018] sm:$0xff] %v2721
        %3746 = vst [vmem:[%s145 + $0x1020] sm:$0xff] %v2722
        %3747 = vst [vmem:[%s145 + $0x1028] sm:$0xff] %v2723
        %3748 = vst [vmem:[%s145 + $0x1030] sm:$0xff] %v2724
        %3749 = vst [vmem:[%s145 + $0x1038] sm:$0xff] %v2725
        %3750 = vst [vmem:[%s145 + $0x1040] sm:$0xff] %v2726
        %3751 = vst [vmem:[%s145 + $0x1048] sm:$0xff] %v2727
        %3752 = vst [vmem:[%s145 + $0x1050] sm:$0xff] %v2728
        %3753 = vst [vmem:[%s145 + $0x1058] sm:$0xff] %v2729
        %3754 = vst [vmem:[%s145 + $0x1060] sm:$0xff] %v2730
        %3755 = vst [vmem:[%s145 + $0x1068] sm:$0xff] %v2731
        %3756 = vst [vmem:[%s145 + $0x1070] sm:$0xff] %v2732
        %3757 = vst [vmem:[%s145 + $0x1078] sm:$0xff] %v2733
        %3758 = vst [vmem:[%s145 + $0x1080] sm:$0xff] %v2734
        %3759 = vst [vmem:[%s145 + $0x1088] sm:$0xff] %v2735
        %3760 = vst [vmem:[%s145 + $0x1090] sm:$0xff] %v2736
        %3761 = vst [vmem:[%s145 + $0x1098] sm:$0xff] %v2737
        %3762 = vst [vmem:[%s145 + $0x10a0] sm:$0xff] %v2738
        %3763 = vst [vmem:[%s145 + $0x10a8] sm:$0xff] %v2739
        %3764 = vst [vmem:[%s145 + $0x10b0] sm:$0xff] %v2740
        %3765 = vst [vmem:[%s145 + $0x10b8] sm:$0xff] %v2741
        %3766 = vst [vmem:[%s145 + $0x10c0] sm:$0xff] %v2742
        %3767 = vst [vmem:[%s145 + $0x10c8] sm:$0xff] %v2743
        %3768 = vst [vmem:[%s145 + $0x10d0] sm:$0xff] %v2744
        %3769 = vst [vmem:[%s145 + $0x10d8] sm:$0xff] %v2745
        %3770 = vst [vmem:[%s145 + $0x10e0] sm:$0xff] %v2746
        %3771 = vst [vmem:[%s145 + $0x10e8] sm:$0xff] %v2747
        %3772 = vst [vmem:[%s145 + $0x10f0] sm:$0xff] %v2748
        %3773 = vst [vmem:[%s145 + $0x10f8] sm:$0xff] %v2749
        %3774 = vst [vmem:[%s145 + $0x1100] sm:$0xff] %v2750
        %3775 = vst [vmem:[%s145 + $0x1108] sm:$0xff] %v2751
        %3776 = vst [vmem:[%s145 + $0x1110] sm:$0xff] %v2752
        %3777 = vst [vmem:[%s145 + $0x1118] sm:$0xff] %v2753
        %3778 = vst [vmem:[%s145 + $0x1120] sm:$0xff] %v2754
        %3779 = vst [vmem:[%s145 + $0x1128] sm:$0xff] %v2755
        %3780 = vst [vmem:[%s145 + $0x1130] sm:$0xff] %v2756
        %3781 = vst [vmem:[%s145 + $0x1138] sm:$0xff] %v2757
        %3782 = vst [vmem:[%s145 + $0x1140] sm:$0xff] %v2758
        %3783 = vst [vmem:[%s145 + $0x1148] sm:$0xff] %v2759
        %3784 = vst [vmem:[%s145 + $0x1150] sm:$0xff] %v2760
        %3785 = vst [vmem:[%s145 + $0x1158] sm:$0xff] %v2761
        %3786 = vst [vmem:[%s145 + $0x1160] sm:$0xff] %v2762
        %3787 = vst [vmem:[%s145 + $0x1168] sm:$0xff] %v2763
        %3788 = vst [vmem:[%s145 + $0x1170] sm:$0xff] %v2764
        %3789 = vst [vmem:[%s145 + $0x1178] sm:$0xff] %v2765
        %3790 = vst [vmem:[%s145 + $0x1180] sm:$0xff] %v2766
        %3791 = vst [vmem:[%s145 + $0x1188] sm:$0xff] %v2767
        %3792 = vst [vmem:[%s145 + $0x1190] sm:$0xff] %v2768
        %3793 = vst [vmem:[%s145 + $0x1198] sm:$0xff] %v2769
        %3794 = vst [vmem:[%s145 + $0x11a0] sm:$0xff] %v2770
        %3795 = vst [vmem:[%s145 + $0x11a8] sm:$0xff] %v2771
        %3796 = vst [vmem:[%s145 + $0x11b0] sm:$0xff] %v2772
        %3797 = vst [vmem:[%s145 + $0x11b8] sm:$0xff] %v2773
        %3798 = vst [vmem:[%s145 + $0x11c0] sm:$0xff] %v2774
        %3799 = vst [vmem:[%s145 + $0x11c8] sm:$0xff] %v2775
        %3800 = vst [vmem:[%s145 + $0x11d0] sm:$0xff] %v2776
        %3801 = vst [vmem:[%s145 + $0x11d8] sm:$0xff] %v2777
        %3802 = vst [vmem:[%s145 + $0x11e0] sm:$0xff] %v2778
        %3803 = vst [vmem:[%s145 + $0x11e8] sm:$0xff] %v2779
        %3804 = vst [vmem:[%s145 + $0x11f0] sm:$0xff] %v2780
        %3805 = vst [vmem:[%s145 + $0x11f8] sm:$0xff] %v2781
        %3806 = vst [vmem:[%s145 + $0x1200] sm:$0xff] %v2782
        %3807 = vst [vmem:[%s145 + $0x1208] sm:$0xff] %v2783
        %3808 = vst [vmem:[%s145 + $0x1210] sm:$0xff] %v2784
        %3809 = vst [vmem:[%s145 + $0x1218] sm:$0xff] %v2785
        %3810 = vst [vmem:[%s145 + $0x1220] sm:$0xff] %v2786
        %3811 = vst [vmem:[%s145 + $0x1228] sm:$0xff] %v2787
        %3812 = vst [vmem:[%s145 + $0x1230] sm:$0xff] %v2788
        %3813 = vst [vmem:[%s145 + $0x1238] sm:$0xff] %v2789
        %3814 = vst [vmem:[%s145 + $0x1240] sm:$0xff] %v2790
        %3815 = vst [vmem:[%s145 + $0x1248] sm:$0xff] %v2791
        %3816 = vst [vmem:[%s145 + $0x1250] sm:$0xff] %v2792
        %3817 = vst [vmem:[%s145 + $0x1258] sm:$0xff] %v2793
        %3818 = vst [vmem:[%s145 + $0x1260] sm:$0xff] %v2794
        %3819 = vst [vmem:[%s145 + $0x1268] sm:$0xff] %v2795
        %3820 = vst [vmem:[%s145 + $0x1270] sm:$0xff] %v2796
        %3821 = vst [vmem:[%s145 + $0x1278] sm:$0xff] %v2797
        %3822 = vst [vmem:[%s145 + $0x1280] sm:$0xff] %v2798
        %3823 = vst [vmem:[%s145 + $0x1288] sm:$0xff] %v2799
        %3824 = vst [vmem:[%s145 + $0x1290] sm:$0xff] %v2800
        %3825 = vst [vmem:[%s145 + $0x1298] sm:$0xff] %v2801
        %3826 = vst [vmem:[%s145 + $0x12a0] sm:$0xff] %v2802
        %3827 = vst [vmem:[%s145 + $0x12a8] sm:$0xff] %v2803
        %3828 = vst [vmem:[%s145 + $0x12b0] sm:$0xff] %v2804
        %3829 = vst [vmem:[%s145 + $0x12b8] sm:$0xff] %v2805
        %3830 = vst [vmem:[%s145 + $0x12c0] sm:$0xff] %v2806
        %3831 = vst [vmem:[%s145 + $0x12c8] sm:$0xff] %v2807
        %3832 = vst [vmem:[%s145 + $0x12d0] sm:$0xff] %v2808
        %3833 = vst [vmem:[%s145 + $0x12d8] sm:$0xff] %v2809
        %3834 = vst [vmem:[%s145 + $0x12e0] sm:$0xff] %v2810
        %3835 = vst [vmem:[%s145 + $0x12e8] sm:$0xff] %v2811
        %3836 = vst [vmem:[%s145 + $0x12f0] sm:$0xff] %v2812
        %3837 = vst [vmem:[%s145 + $0x12f8] sm:$0xff] %v2813
        %3838 = vst [vmem:[%s145 + $0x1300] sm:$0xff] %v2814
        %3839 = vst [vmem:[%s145 + $0x1308] sm:$0xff] %v2815
        %3840 = vst [vmem:[%s145 + $0x1310] sm:$0xff] %v2816
        %3841 = vst [vmem:[%s145 + $0x1318] sm:$0xff] %v2817
        %3842 = vst [vmem:[%s145 + $0x1320] sm:$0xff] %v2818
        %3843 = vst [vmem:[%s145 + $0x1328] sm:$0xff] %v2819
        %3844 = vst [vmem:[%s145 + $0x1330] sm:$0xff] %v2820
        %3845 = vst [vmem:[%s145 + $0x1338] sm:$0xff] %v2821
        %3846 = vst [vmem:[%s145 + $0x1340] sm:$0xff] %v2822
        %3847 = vst [vmem:[%s145 + $0x1348] sm:$0xff] %v2823
        %3848 = vst [vmem:[%s145 + $0x1350] sm:$0xff] %v2824
        %3849 = vst [vmem:[%s145 + $0x1358] sm:$0xff] %v2825
        %3850 = vst [vmem:[%s145 + $0x1360] sm:$0xff] %v2826
        %3851 = vst [vmem:[%s145 + $0x1368] sm:$0xff] %v2827
        %3852 = vst [vmem:[%s145 + $0x1370] sm:$0xff] %v2828
        %3853 = vst [vmem:[%s145 + $0x1378] sm:$0xff] %v2829
        %3854 = vst [vmem:[%s145 + $0x1380] sm:$0xff] %v2830
        %3855 = vst [vmem:[%s145 + $0x1388] sm:$0xff] %v2831
        %3856 = vst [vmem:[%s145 + $0x1390] sm:$0xff] %v2832
        %3857 = vst [vmem:[%s145 + $0x1398] sm:$0xff] %v2833
        %3858 = vst [vmem:[%s145 + $0x13a0] sm:$0xff] %v2834
        %3859 = vst [vmem:[%s145 + $0x13a8] sm:$0xff] %v2835
        %3860 = vst [vmem:[%s145 + $0x13b0] sm:$0xff] %v2836
        %3861 = vst [vmem:[%s145 + $0x13b8] sm:$0xff] %v2837
        %3862 = vst [vmem:[%s145 + $0x13c0] sm:$0xff] %v2838
        %3863 = vst [vmem:[%s145 + $0x13c8] sm:$0xff] %v2839
        %3864 = vst [vmem:[%s145 + $0x13d0] sm:$0xff] %v2840
        %3865 = vst [vmem:[%s145 + $0x13d8] sm:$0xff] %v2841
        %3866 = vst [vmem:[%s145 + $0x13e0] sm:$0xff] %v2842
        %3867 = vst [vmem:[%s145 + $0x13e8] sm:$0xff] %v2843
        %3868 = vst [vmem:[%s145 + $0x13f0] sm:$0xff] %v2844
        %3869 = vst [vmem:[%s145 + $0x13f8] sm:$0xff] %v2845
        %3870 = vst [vmem:[%s145 + $0x1400] sm:$0xff] %v2846
        %3871 = vst [vmem:[%s145 + $0x1408] sm:$0xff] %v2847
        %3872 = vst [vmem:[%s145 + $0x1410] sm:$0xff] %v2848
        %3873 = vst [vmem:[%s145 + $0x1418] sm:$0xff] %v2849
        %3874 = vst [vmem:[%s145 + $0x1420] sm:$0xff] %v2850
        %3875 = vst [vmem:[%s145 + $0x1428] sm:$0xff] %v2851
        %3876 = vst [vmem:[%s145 + $0x1430] sm:$0xff] %v2852
        %3877 = vst [vmem:[%s145 + $0x1438] sm:$0xff] %v2853
        %3878 = vst [vmem:[%s145 + $0x1440] sm:$0xff] %v2854
        %3879 = vst [vmem:[%s145 + $0x1448] sm:$0xff] %v2855
        %3880 = vst [vmem:[%s145 + $0x1450] sm:$0xff] %v2856
        %3881 = vst [vmem:[%s145 + $0x1458] sm:$0xff] %v2857
        %3882 = vst [vmem:[%s145 + $0x1460] sm:$0xff] %v2858
        %3883 = vst [vmem:[%s145 + $0x1468] sm:$0xff] %v2859
        %3884 = vst [vmem:[%s145 + $0x1470] sm:$0xff] %v2860
        %3885 = vst [vmem:[%s145 + $0x1478] sm:$0xff] %v2861
        %3886 = vst [vmem:[%s145 + $0x1480] sm:$0xff] %v2862
        %3887 = vst [vmem:[%s145 + $0x1488] sm:$0xff] %v2863
        %3888 = vst [vmem:[%s145 + $0x1490] sm:$0xff] %v2864
        %3889 = vst [vmem:[%s145 + $0x1498] sm:$0xff] %v2865
        %3890 = vst [vmem:[%s145 + $0x14a0] sm:$0xff] %v2866
        %3891 = vst [vmem:[%s145 + $0x14a8] sm:$0xff] %v2867
        %3892 = vst [vmem:[%s145 + $0x14b0] sm:$0xff] %v2868
        %3893 = vst [vmem:[%s145 + $0x14b8] sm:$0xff] %v2869
        %3894 = vst [vmem:[%s145 + $0x14c0] sm:$0xff] %v2870
        %3895 = vst [vmem:[%s145 + $0x14c8] sm:$0xff] %v2871
        %3896 = vst [vmem:[%s145 + $0x14d0] sm:$0xff] %v2872
        %3897 = vst [vmem:[%s145 + $0x14d8] sm:$0xff] %v2873
        %3898 = vst [vmem:[%s145 + $0x14e0] sm:$0xff] %v2874
        %3899 = vst [vmem:[%s145 + $0x14e8] sm:$0xff] %v2875
        %3900 = vst [vmem:[%s145 + $0x14f0] sm:$0xff] %v2876
        %3901 = vst [vmem:[%s145 + $0x14f8] sm:$0xff] %v2877
        %3902 = vst [vmem:[%s145 + $0x1500] sm:$0xff] %v2878
        %3903 = vst [vmem:[%s145 + $0x1508] sm:$0xff] %v2879
        %3904 = vst [vmem:[%s145 + $0x1510] sm:$0xff] %v2880
        %3905 = vst [vmem:[%s145 + $0x1518] sm:$0xff] %v2881
        %3906 = vst [vmem:[%s145 + $0x1520] sm:$0xff] %v2882
        %3907 = vst [vmem:[%s145 + $0x1528] sm:$0xff] %v2883
        %3908 = vst [vmem:[%s145 + $0x1530] sm:$0xff] %v2884
        %3909 = vst [vmem:[%s145 + $0x1538] sm:$0xff] %v2885
        %3910 = vst [vmem:[%s145 + $0x1540] sm:$0xff] %v2886
        %3911 = vst [vmem:[%s145 + $0x1548] sm:$0xff] %v2887
        %3912 = vst [vmem:[%s145 + $0x1550] sm:$0xff] %v2888
        %3913 = vst [vmem:[%s145 + $0x1558] sm:$0xff] %v2889
        %3914 = vst [vmem:[%s145 + $0x1560] sm:$0xff] %v2890
        %3915 = vst [vmem:[%s145 + $0x1568] sm:$0xff] %v2891
        %3916 = vst [vmem:[%s145 + $0x1570] sm:$0xff] %v2892
        %3917 = vst [vmem:[%s145 + $0x1578] sm:$0xff] %v2893
        %3918 = vst [vmem:[%s145 + $0x1580] sm:$0xff] %v2894
        %3919 = vst [vmem:[%s145 + $0x1588] sm:$0xff] %v2895
        %3920 = vst [vmem:[%s145 + $0x1590] sm:$0xff] %v2896
        %3921 = vst [vmem:[%s145 + $0x1598] sm:$0xff] %v2897
        %3922 = vst [vmem:[%s145 + $0x15a0] sm:$0xff] %v2898
        %3923 = vst [vmem:[%s145 + $0x15a8] sm:$0xff] %v2899
        %3924 = vst [vmem:[%s145 + $0x15b0] sm:$0xff] %v2900
        %3925 = vst [vmem:[%s145 + $0x15b8] sm:$0xff] %v2901
        %3926 = vst [vmem:[%s145 + $0x15c0] sm:$0xff] %v2902
        %3927 = vst [vmem:[%s145 + $0x15c8] sm:$0xff] %v2903
        %3928 = vst [vmem:[%s145 + $0x15d0] sm:$0xff] %v2904
        %3929 = vst [vmem:[%s145 + $0x15d8] sm:$0xff] %v2905
        %3930 = vst [vmem:[%s145 + $0x15e0] sm:$0xff] %v2906
        %3931 = vst [vmem:[%s145 + $0x15e8] sm:$0xff] %v2907
        %3932 = vst [vmem:[%s145 + $0x15f0] sm:$0xff] %v2908
        %3933 = vst [vmem:[%s145 + $0x15f8] sm:$0xff] %v2909
        %3934 = vst [vmem:[%s145 + $0x1600] sm:$0xff] %v2910
        %3935 = vst [vmem:[%s145 + $0x1608] sm:$0xff] %v2911
        %3936 = vst [vmem:[%s145 + $0x1610] sm:$0xff] %v2912
        %3937 = vst [vmem:[%s145 + $0x1618] sm:$0xff] %v2913
        %3938 = vst [vmem:[%s145 + $0x1620] sm:$0xff] %v2914
        %3939 = vst [vmem:[%s145 + $0x1628] sm:$0xff] %v2915
        %3940 = vst [vmem:[%s145 + $0x1630] sm:$0xff] %v2916
        %3941 = vst [vmem:[%s145 + $0x1638] sm:$0xff] %v2917
        %3942 = vst [vmem:[%s145 + $0x1640] sm:$0xff] %v2918
        %3943 = vst [vmem:[%s145 + $0x1648] sm:$0xff] %v2919
        %3944 = vst [vmem:[%s145 + $0x1650] sm:$0xff] %v2920
        %3945 = vst [vmem:[%s145 + $0x1658] sm:$0xff] %v2921
        %3946 = vst [vmem:[%s145 + $0x1660] sm:$0xff] %v2922
        %3947 = vst [vmem:[%s145 + $0x1668] sm:$0xff] %v2923
        %3948 = vst [vmem:[%s145 + $0x1670] sm:$0xff] %v2924
        %3949 = vst [vmem:[%s145 + $0x1678] sm:$0xff] %v2925
        %3950 = vst [vmem:[%s145 + $0x1680] sm:$0xff] %v2926
        %3951 = vst [vmem:[%s145 + $0x1688] sm:$0xff] %v2927
        %3952 = vst [vmem:[%s145 + $0x1690] sm:$0xff] %v2928
        %3953 = vst [vmem:[%s145 + $0x1698] sm:$0xff] %v2929
        %3954 = vst [vmem:[%s145 + $0x16a0] sm:$0xff] %v2930
        %3955 = vst [vmem:[%s145 + $0x16a8] sm:$0xff] %v2931
        %3956 = vst [vmem:[%s145 + $0x16b0] sm:$0xff] %v2932
        %3957 = vst [vmem:[%s145 + $0x16b8] sm:$0xff] %v2933
        %3958 = vst [vmem:[%s145 + $0x16c0] sm:$0xff] %v2934
        %3959 = vst [vmem:[%s145 + $0x16c8] sm:$0xff] %v2935
        %3960 = vst [vmem:[%s145 + $0x16d0] sm:$0xff] %v2936
        %3961 = vst [vmem:[%s145 + $0x16d8] sm:$0xff] %v2937
        %3962 = vst [vmem:[%s145 + $0x16e0] sm:$0xff] %v2938
        %3963 = vst [vmem:[%s145 + $0x16e8] sm:$0xff] %v2939
        %3964 = vst [vmem:[%s145 + $0x16f0] sm:$0xff] %v2940
        %3965 = vst [vmem:[%s145 + $0x16f8] sm:$0xff] %v2941
        %3966 = vst [vmem:[%s145 + $0x1700] sm:$0xff] %v2942
        %3967 = vst [vmem:[%s145 + $0x1708] sm:$0xff] %v2943
        %3968 = vst [vmem:[%s145 + $0x1710] sm:$0xff] %v2944
        %3969 = vst [vmem:[%s145 + $0x1718] sm:$0xff] %v2945
        %3970 = vst [vmem:[%s145 + $0x1720] sm:$0xff] %v2946
        %3971 = vst [vmem:[%s145 + $0x1728] sm:$0xff] %v2947
        %3972 = vst [vmem:[%s145 + $0x1730] sm:$0xff] %v2948
        %3973 = vst [vmem:[%s145 + $0x1738] sm:$0xff] %v2949
        %3974 = vst [vmem:[%s145 + $0x1740] sm:$0xff] %v2950
        %3975 = vst [vmem:[%s145 + $0x1748] sm:$0xff] %v2951
        %3976 = vst [vmem:[%s145 + $0x1750] sm:$0xff] %v2952
        %3977 = vst [vmem:[%s145 + $0x1758] sm:$0xff] %v2953
        %3978 = vst [vmem:[%s145 + $0x1760] sm:$0xff] %v2954
        %3979 = vst [vmem:[%s145 + $0x1768] sm:$0xff] %v2955
        %3980 = vst [vmem:[%s145 + $0x1770] sm:$0xff] %v2956
        %3981 = vst [vmem:[%s145 + $0x1778] sm:$0xff] %v2957
        %3982 = vst [vmem:[%s145 + $0x1780] sm:$0xff] %v2958
        %3983 = vst [vmem:[%s145 + $0x1788] sm:$0xff] %v2959
        %3984 = vst [vmem:[%s145 + $0x1790] sm:$0xff] %v2960
        %3985 = vst [vmem:[%s145 + $0x1798] sm:$0xff] %v2961
        %3986 = vst [vmem:[%s145 + $0x17a0] sm:$0xff] %v2962
        %3987 = vst [vmem:[%s145 + $0x17a8] sm:$0xff] %v2963
        %3988 = vst [vmem:[%s145 + $0x17b0] sm:$0xff] %v2964
        %3989 = vst [vmem:[%s145 + $0x17b8] sm:$0xff] %v2965
        %3990 = vst [vmem:[%s145 + $0x17c0] sm:$0xff] %v2966
        %3991 = vst [vmem:[%s145 + $0x17c8] sm:$0xff] %v2967
        %3992 = vst [vmem:[%s145 + $0x17d0] sm:$0xff] %v2968
        %3993 = vst [vmem:[%s145 + $0x17d8] sm:$0xff] %v2969
        %3994 = vst [vmem:[%s145 + $0x17e0] sm:$0xff] %v2970
        %3995 = vst [vmem:[%s145 + $0x17e8] sm:$0xff] %v2971
        %3996 = vst [vmem:[%s145 + $0x17f0] sm:$0xff] %v2972
        %3997 = vst [vmem:[%s145 + $0x17f8] sm:$0xff] %v2973
        %3998 = vst [vmem:[%s145 + $0x1800] sm:$0xff] %v2974
        %3999 = vst [vmem:[%s145 + $0x1808] sm:$0xff] %v2975
        %4000 = vst [vmem:[%s145 + $0x1810] sm:$0xff] %v2976
        %4001 = vst [vmem:[%s145 + $0x1818] sm:$0xff] %v2977
        %4002 = vst [vmem:[%s145 + $0x1820] sm:$0xff] %v2978
        %4003 = vst [vmem:[%s145 + $0x1828] sm:$0xff] %v2979
        %4004 = vst [vmem:[%s145 + $0x1830] sm:$0xff] %v2980
        %4005 = vst [vmem:[%s145 + $0x1838] sm:$0xff] %v2981
        %4006 = vst [vmem:[%s145 + $0x1840] sm:$0xff] %v2982
        %4007 = vst [vmem:[%s145 + $0x1848] sm:$0xff] %v2983
        %4008 = vst [vmem:[%s145 + $0x1850] sm:$0xff] %v2984
        %4009 = vst [vmem:[%s145 + $0x1858] sm:$0xff] %v2985
        %4010 = vst [vmem:[%s145 + $0x1860] sm:$0xff] %v2986
        %4011 = vst [vmem:[%s145 + $0x1868] sm:$0xff] %v2987
        %4012 = vst [vmem:[%s145 + $0x1870] sm:$0xff] %v2988
        %4013 = vst [vmem:[%s145 + $0x1878] sm:$0xff] %v2989
        %4014 = vst [vmem:[%s145 + $0x1880] sm:$0xff] %v2990
        %4015 = vst [vmem:[%s145 + $0x1888] sm:$0xff] %v2991
        %4016 = vst [vmem:[%s145 + $0x1890] sm:$0xff] %v2992
        %4017 = vst [vmem:[%s145 + $0x1898] sm:$0xff] %v2993
        %4018 = vst [vmem:[%s145 + $0x18a0] sm:$0xff] %v2994
        %4019 = vst [vmem:[%s145 + $0x18a8] sm:$0xff] %v2995
        %4020 = vst [vmem:[%s145 + $0x18b0] sm:$0xff] %v2996
        %4021 = vst [vmem:[%s145 + $0x18b8] sm:$0xff] %v2997
        %4022 = vst [vmem:[%s145 + $0x18c0] sm:$0xff] %v2998
        %4023 = vst [vmem:[%s145 + $0x18c8] sm:$0xff] %v2999
        %4024 = vst [vmem:[%s145 + $0x18d0] sm:$0xff] %v3000
        %4025 = vst [vmem:[%s145 + $0x18d8] sm:$0xff] %v3001
        %4026 = vst [vmem:[%s145 + $0x18e0] sm:$0xff] %v3002
        %4027 = vst [vmem:[%s145 + $0x18e8] sm:$0xff] %v3003
        %4028 = vst [vmem:[%s145 + $0x18f0] sm:$0xff] %v3004
        %4029 = vst [vmem:[%s145 + $0x18f8] sm:$0xff] %v3005
        %4030 = vst [vmem:[%s145 + $0x1900] sm:$0xff] %v3006
        %4031 = vst [vmem:[%s145 + $0x1908] sm:$0xff] %v3007
        %4032 = vst [vmem:[%s145 + $0x1910] sm:$0xff] %v3008
        %4033 = vst [vmem:[%s145 + $0x1918] sm:$0xff] %v3009
        %4034 = vst [vmem:[%s145 + $0x1920] sm:$0xff] %v3010
        %4035 = vst [vmem:[%s145 + $0x1928] sm:$0xff] %v3011
        %4036 = vst [vmem:[%s145 + $0x1930] sm:$0xff] %v3012
        %4037 = vst [vmem:[%s145 + $0x1938] sm:$0xff] %v3013
        %4038 = vst [vmem:[%s145 + $0x1940] sm:$0xff] %v3014
        %4039 = vst [vmem:[%s145 + $0x1948] sm:$0xff] %v3015
        %4040 = vst [vmem:[%s145 + $0x1950] sm:$0xff] %v3016
        %4041 = vst [vmem:[%s145 + $0x1958] sm:$0xff] %v3017
        %4042 = vst [vmem:[%s145 + $0x1960] sm:$0xff] %v3018
        %4043 = vst [vmem:[%s145 + $0x1968] sm:$0xff] %v3019
        %4044 = vst [vmem:[%s145 + $0x1970] sm:$0xff] %v3020
        %4045 = vst [vmem:[%s145 + $0x1978] sm:$0xff] %v3021
        %4046 = vst [vmem:[%s145 + $0x1980] sm:$0xff] %v3022
        %4047 = vst [vmem:[%s145 + $0x1988] sm:$0xff] %v3023
        %4048 = vst [vmem:[%s145 + $0x1990] sm:$0xff] %v3024
        %4049 = vst [vmem:[%s145 + $0x1998] sm:$0xff] %v3025
        %4050 = vst [vmem:[%s145 + $0x19a0] sm:$0xff] %v3026
        %4051 = vst [vmem:[%s145 + $0x19a8] sm:$0xff] %v3027
        %4052 = vst [vmem:[%s145 + $0x19b0] sm:$0xff] %v3028
        %4053 = vst [vmem:[%s145 + $0x19b8] sm:$0xff] %v3029
        %4054 = vst [vmem:[%s145 + $0x19c0] sm:$0xff] %v3030
        %4055 = vst [vmem:[%s145 + $0x19c8] sm:$0xff] %v3031
        %4056 = vst [vmem:[%s145 + $0x19d0] sm:$0xff] %v3032
        %4057 = vst [vmem:[%s145 + $0x19d8] sm:$0xff] %v3033
        %4058 = vst [vmem:[%s145 + $0x19e0] sm:$0xff] %v3034
        %4059 = vst [vmem:[%s145 + $0x19e8] sm:$0xff] %v3035
        %4060 = vst [vmem:[%s145 + $0x19f0] sm:$0xff] %v3036
        %4061 = vst [vmem:[%s145 + $0x19f8] sm:$0xff] %v3037
        %4062 = vst [vmem:[%s145 + $0x1a00] sm:$0xff] %v3038
        %4063 = vst [vmem:[%s145 + $0x1a08] sm:$0xff] %v3039
        %4064 = vst [vmem:[%s145 + $0x1a10] sm:$0xff] %v3040
        %4065 = vst [vmem:[%s145 + $0x1a18] sm:$0xff] %v3041
        %4066 = vst [vmem:[%s145 + $0x1a20] sm:$0xff] %v3042
        %4067 = vst [vmem:[%s145 + $0x1a28] sm:$0xff] %v3043
        %4068 = vst [vmem:[%s145 + $0x1a30] sm:$0xff] %v3044
        %4069 = vst [vmem:[%s145 + $0x1a38] sm:$0xff] %v3045
        %4070 = vst [vmem:[%s145 + $0x1a40] sm:$0xff] %v3046
        %4071 = vst [vmem:[%s145 + $0x1a48] sm:$0xff] %v3047
        %4072 = vst [vmem:[%s145 + $0x1a50] sm:$0xff] %v3048
        %4073 = vst [vmem:[%s145 + $0x1a58] sm:$0xff] %v3049
        %4074 = vst [vmem:[%s145 + $0x1a60] sm:$0xff] %v3050
        %4075 = vst [vmem:[%s145 + $0x1a68] sm:$0xff] %v3051
        %4076 = vst [vmem:[%s145 + $0x1a70] sm:$0xff] %v3052
        %4077 = vst [vmem:[%s145 + $0x1a78] sm:$0xff] %v3053
        %4078 = vst [vmem:[%s145 + $0x1a80] sm:$0xff] %v3054
        %4079 = vst [vmem:[%s145 + $0x1a88] sm:$0xff] %v3055
        %4080 = vst [vmem:[%s145 + $0x1a90] sm:$0xff] %v3056
        %4081 = vst [vmem:[%s145 + $0x1a98] sm:$0xff] %v3057
        %4082 = vst [vmem:[%s145 + $0x1aa0] sm:$0xff] %v3058
        %4083 = vst [vmem:[%s145 + $0x1aa8] sm:$0xff] %v3059
        %4084 = vst [vmem:[%s145 + $0x1ab0] sm:$0xff] %v3060
        %4085 = vst [vmem:[%s145 + $0x1ab8] sm:$0xff] %v3061
        %4086 = vst [vmem:[%s145 + $0x1ac0] sm:$0xff] %v3062
        %4087 = vst [vmem:[%s145 + $0x1ac8] sm:$0xff] %v3063
        %4088 = vst [vmem:[%s145 + $0x1ad0] sm:$0xff] %v3064
        %4089 = vst [vmem:[%s145 + $0x1ad8] sm:$0xff] %v3065
        %4090 = vst [vmem:[%s145 + $0x1ae0] sm:$0xff] %v3066
        %4091 = vst [vmem:[%s145 + $0x1ae8] sm:$0xff] %v3067
        %4092 = vst [vmem:[%s145 + $0x1af0] sm:$0xff] %v3068
        %4093 = vst [vmem:[%s145 + $0x1af8] sm:$0xff] %v3069
        %4094 = vst [vmem:[%s145 + $0x1b00] sm:$0xff] %v3070
        %4095 = vst [vmem:[%s145 + $0x1b08] sm:$0xff] %v3071
        %4096 = vst [vmem:[%s145 + $0x1b10] sm:$0xff] %v3072
        %4097 = vst [vmem:[%s145 + $0x1b18] sm:$0xff] %v3073
        %4098 = vst [vmem:[%s145 + $0x1b20] sm:$0xff] %v3074
        %4099 = vst [vmem:[%s145 + $0x1b28] sm:$0xff] %v3075
        %4100 = vst [vmem:[%s145 + $0x1b30] sm:$0xff] %v3076
        %4101 = vst [vmem:[%s145 + $0x1b38] sm:$0xff] %v3077
        %4102 = vst [vmem:[%s145 + $0x1b40] sm:$0xff] %v3078
        %4103 = vst [vmem:[%s145 + $0x1b48] sm:$0xff] %v3079
        %4104 = vst [vmem:[%s145 + $0x1b50] sm:$0xff] %v3080
        %4105 = vst [vmem:[%s145 + $0x1b58] sm:$0xff] %v3081
        %4106 = vst [vmem:[%s145 + $0x1b60] sm:$0xff] %v3082
        %4107 = vst [vmem:[%s145 + $0x1b68] sm:$0xff] %v3083
        %4108 = vst [vmem:[%s145 + $0x1b70] sm:$0xff] %v3084
        %4109 = vst [vmem:[%s145 + $0x1b78] sm:$0xff] %v3085
        %4110 = vst [vmem:[%s145 + $0x1b80] sm:$0xff] %v3086
        %4111 = vst [vmem:[%s145 + $0x1b88] sm:$0xff] %v3087
        %4112 = vst [vmem:[%s145 + $0x1b90] sm:$0xff] %v3088
        %4113 = vst [vmem:[%s145 + $0x1b98] sm:$0xff] %v3089
        %4114 = vst [vmem:[%s145 + $0x1ba0] sm:$0xff] %v3090
        %4115 = vst [vmem:[%s145 + $0x1ba8] sm:$0xff] %v3091
        %4116 = vst [vmem:[%s145 + $0x1bb0] sm:$0xff] %v3092
        %4117 = vst [vmem:[%s145 + $0x1bb8] sm:$0xff] %v3093
        %4118 = vst [vmem:[%s145 + $0x1bc0] sm:$0xff] %v3094
        %4119 = vst [vmem:[%s145 + $0x1bc8] sm:$0xff] %v3095
        %4120 = vst [vmem:[%s145 + $0x1bd0] sm:$0xff] %v3096
        %4121 = vst [vmem:[%s145 + $0x1bd8] sm:$0xff] %v3097
        %4122 = vst [vmem:[%s145 + $0x1be0] sm:$0xff] %v3098
        %4123 = vst [vmem:[%s145 + $0x1be8] sm:$0xff] %v3099
        %4124 = vst [vmem:[%s145 + $0x1bf0] sm:$0xff] %v3100
        %4125 = vst [vmem:[%s145 + $0x1bf8] sm:$0xff] %v3101
        %4126 = vst [vmem:[%s145 + $0x1c00] sm:$0xff] %v3102
        %4127 = vst [vmem:[%s145 + $0x1c08] sm:$0xff] %v3103
        %4128 = vst [vmem:[%s145 + $0x1c10] sm:$0xff] %v3104
        %4129 = vst [vmem:[%s145 + $0x1c18] sm:$0xff] %v3105
        %4130 = vst [vmem:[%s145 + $0x1c20] sm:$0xff] %v3106
        %4131 = vst [vmem:[%s145 + $0x1c28] sm:$0xff] %v3107
        %4132 = vst [vmem:[%s145 + $0x1c30] sm:$0xff] %v3108
        %4133 = vst [vmem:[%s145 + $0x1c38] sm:$0xff] %v3109
        %4134 = vst [vmem:[%s145 + $0x1c40] sm:$0xff] %v3110
        %4135 = vst [vmem:[%s145 + $0x1c48] sm:$0xff] %v3111
        %4136 = vst [vmem:[%s145 + $0x1c50] sm:$0xff] %v3112
        %4137 = vst [vmem:[%s145 + $0x1c58] sm:$0xff] %v3113
        %4138 = vst [vmem:[%s145 + $0x1c60] sm:$0xff] %v3114
        %4139 = vst [vmem:[%s145 + $0x1c68] sm:$0xff] %v3115
        %4140 = vst [vmem:[%s145 + $0x1c70] sm:$0xff] %v3116
        %4141 = vst [vmem:[%s145 + $0x1c78] sm:$0xff] %v3117
        %4142 = vst [vmem:[%s145 + $0x1c80] sm:$0xff] %v3118
        %4143 = vst [vmem:[%s145 + $0x1c88] sm:$0xff] %v3119
        %4144 = vst [vmem:[%s145 + $0x1c90] sm:$0xff] %v3120
        %4145 = vst [vmem:[%s145 + $0x1c98] sm:$0xff] %v3121
        %4146 = vst [vmem:[%s145 + $0x1ca0] sm:$0xff] %v3122
        %4147 = vst [vmem:[%s145 + $0x1ca8] sm:$0xff] %v3123
        %4148 = vst [vmem:[%s145 + $0x1cb0] sm:$0xff] %v3124
        %4149 = vst [vmem:[%s145 + $0x1cb8] sm:$0xff] %v3125
        %4150 = vst [vmem:[%s145 + $0x1cc0] sm:$0xff] %v3126
        %4151 = vst [vmem:[%s145 + $0x1cc8] sm:$0xff] %v3127
        %4152 = vst [vmem:[%s145 + $0x1cd0] sm:$0xff] %v3128
        %4153 = vst [vmem:[%s145 + $0x1cd8] sm:$0xff] %v3129
        %4154 = vst [vmem:[%s145 + $0x1ce0] sm:$0xff] %v3130
        %4155 = vst [vmem:[%s145 + $0x1ce8] sm:$0xff] %v3131
        %4156 = vst [vmem:[%s145 + $0x1cf0] sm:$0xff] %v3132
        %4157 = vst [vmem:[%s145 + $0x1cf8] sm:$0xff] %v3133
        %4158 = vst [vmem:[%s145 + $0x1d00] sm:$0xff] %v3134
        %4159 = vst [vmem:[%s145 + $0x1d08] sm:$0xff] %v3135
        %4160 = vst [vmem:[%s145 + $0x1d10] sm:$0xff] %v3136
        %4161 = vst [vmem:[%s145 + $0x1d18] sm:$0xff] %v3137
        %4162 = vst [vmem:[%s145 + $0x1d20] sm:$0xff] %v3138
        %4163 = vst [vmem:[%s145 + $0x1d28] sm:$0xff] %v3139
        %4164 = vst [vmem:[%s145 + $0x1d30] sm:$0xff] %v3140
        %4165 = vst [vmem:[%s145 + $0x1d38] sm:$0xff] %v3141
        %4166 = vst [vmem:[%s145 + $0x1d40] sm:$0xff] %v3142
        %4167 = vst [vmem:[%s145 + $0x1d48] sm:$0xff] %v3143
        %4168 = vst [vmem:[%s145 + $0x1d50] sm:$0xff] %v3144
        %4169 = vst [vmem:[%s145 + $0x1d58] sm:$0xff] %v3145
        %4170 = vst [vmem:[%s145 + $0x1d60] sm:$0xff] %v3146
        %4171 = vst [vmem:[%s145 + $0x1d68] sm:$0xff] %v3147
        %4172 = vst [vmem:[%s145 + $0x1d70] sm:$0xff] %v3148
        %4173 = vst [vmem:[%s145 + $0x1d78] sm:$0xff] %v3149
        %4174 = vst [vmem:[%s145 + $0x1d80] sm:$0xff] %v3150
        %4175 = vst [vmem:[%s145 + $0x1d88] sm:$0xff] %v3151
        %4176 = vst [vmem:[%s145 + $0x1d90] sm:$0xff] %v3152
        %4177 = vst [vmem:[%s145 + $0x1d98] sm:$0xff] %v3153
        %4178 = vst [vmem:[%s145 + $0x1da0] sm:$0xff] %v3154
        %4179 = vst [vmem:[%s145 + $0x1da8] sm:$0xff] %v3155
        %4180 = vst [vmem:[%s145 + $0x1db0] sm:$0xff] %v3156
        %4181 = vst [vmem:[%s145 + $0x1db8] sm:$0xff] %v3157
        %4182 = vst [vmem:[%s145 + $0x1dc0] sm:$0xff] %v3158
        %4183 = vst [vmem:[%s145 + $0x1dc8] sm:$0xff] %v3159
        %4184 = vst [vmem:[%s145 + $0x1dd0] sm:$0xff] %v3160
        %4185 = vst [vmem:[%s145 + $0x1dd8] sm:$0xff] %v3161
        %4186 = vst [vmem:[%s145 + $0x1de0] sm:$0xff] %v3162
        %4187 = vst [vmem:[%s145 + $0x1de8] sm:$0xff] %v3163
        %4188 = vst [vmem:[%s145 + $0x1df0] sm:$0xff] %v3164
        %4189 = vst [vmem:[%s145 + $0x1df8] sm:$0xff] %v3165
        %4190 = vst [vmem:[%s145 + $0x1e00] sm:$0xff] %v3166
        %4191 = vst [vmem:[%s145 + $0x1e08] sm:$0xff] %v3167
        %4192 = vst [vmem:[%s145 + $0x1e10] sm:$0xff] %v3168
        %4193 = vst [vmem:[%s145 + $0x1e18] sm:$0xff] %v3169
        %4194 = vst [vmem:[%s145 + $0x1e20] sm:$0xff] %v3170
        %4195 = vst [vmem:[%s145 + $0x1e28] sm:$0xff] %v3171
        %4196 = vst [vmem:[%s145 + $0x1e30] sm:$0xff] %v3172
        %4197 = vst [vmem:[%s145 + $0x1e38] sm:$0xff] %v3173
        %4198 = vst [vmem:[%s145 + $0x1e40] sm:$0xff] %v3174
        %4199 = vst [vmem:[%s145 + $0x1e48] sm:$0xff] %v3175
        %4200 = vst [vmem:[%s145 + $0x1e50] sm:$0xff] %v3176
        %4201 = vst [vmem:[%s145 + $0x1e58] sm:$0xff] %v3177
        %4202 = vst [vmem:[%s145 + $0x1e60] sm:$0xff] %v3178
        %4203 = vst [vmem:[%s145 + $0x1e68] sm:$0xff] %v3179
        %4204 = vst [vmem:[%s145 + $0x1e70] sm:$0xff] %v3180
        %4205 = vst [vmem:[%s145 + $0x1e78] sm:$0xff] %v3181
        %4206 = vst [vmem:[%s145 + $0x1e80] sm:$0xff] %v3182
        %4207 = vst [vmem:[%s145 + $0x1e88] sm:$0xff] %v3183
        %4208 = vst [vmem:[%s145 + $0x1e90] sm:$0xff] %v3184
        %4209 = vst [vmem:[%s145 + $0x1e98] sm:$0xff] %v3185
        %4210 = vst [vmem:[%s145 + $0x1ea0] sm:$0xff] %v3186
        %4211 = vst [vmem:[%s145 + $0x1ea8] sm:$0xff] %v3187
        %4212 = vst [vmem:[%s145 + $0x1eb0] sm:$0xff] %v3188
        %4213 = vst [vmem:[%s145 + $0x1eb8] sm:$0xff] %v3189
        %4214 = vst [vmem:[%s145 + $0x1ec0] sm:$0xff] %v3190
        %4215 = vst [vmem:[%s145 + $0x1ec8] sm:$0xff] %v3191
        %4216 = vst [vmem:[%s145 + $0x1ed0] sm:$0xff] %v3192
        %4217 = vst [vmem:[%s145 + $0x1ed8] sm:$0xff] %v3193
        %4218 = vst [vmem:[%s145 + $0x1ee0] sm:$0xff] %v3194
        %4219 = vst [vmem:[%s145 + $0x1ee8] sm:$0xff] %v3195
        %4220 = vst [vmem:[%s145 + $0x1ef0] sm:$0xff] %v3196
        %4221 = vst [vmem:[%s145 + $0x1ef8] sm:$0xff] %v3197
        %4222 = vst [vmem:[%s145 + $0x1f00] sm:$0xff] %v3198
        %4223 = vst [vmem:[%s145 + $0x1f08] sm:$0xff] %v3199
        %4224 = vst [vmem:[%s145 + $0x1f10] sm:$0xff] %v3200
        %4225 = vst [vmem:[%s145 + $0x1f18] sm:$0xff] %v3201
        %4226 = vst [vmem:[%s145 + $0x1f20] sm:$0xff] %v3202
        %4227 = vst [vmem:[%s145 + $0x1f28] sm:$0xff] %v3203
        %4228 = vst [vmem:[%s145 + $0x1f30] sm:$0xff] %v3204
        %4229 = vst [vmem:[%s145 + $0x1f38] sm:$0xff] %v3205
        %4230 = vst [vmem:[%s145 + $0x1f40] sm:$0xff] %v3206
        %4231 = vst [vmem:[%s145 + $0x1f48] sm:$0xff] %v3207
        %4232 = vst [vmem:[%s145 + $0x1f50] sm:$0xff] %v3208
        %4233 = vst [vmem:[%s145 + $0x1f58] sm:$0xff] %v3209
        %4234 = vst [vmem:[%s145 + $0x1f60] sm:$0xff] %v3210
        %4235 = vst [vmem:[%s145 + $0x1f68] sm:$0xff] %v3211
        %4236 = vst [vmem:[%s145 + $0x1f70] sm:$0xff] %v3212
        %4237 = vst [vmem:[%s145 + $0x1f78] sm:$0xff] %v3213
        %4238 = vst [vmem:[%s145 + $0x1f80] sm:$0xff] %v3214
        %4239 = vst [vmem:[%s145 + $0x1f88] sm:$0xff] %v3215
        %4240 = vst [vmem:[%s145 + $0x1f90] sm:$0xff] %v3216
        %4241 = vst [vmem:[%s145 + $0x1f98] sm:$0xff] %v3217
        %4242 = vst [vmem:[%s145 + $0x1fa0] sm:$0xff] %v3218
        %4243 = vst [vmem:[%s145 + $0x1fa8] sm:$0xff] %v3219
        %4244 = vst [vmem:[%s145 + $0x1fb0] sm:$0xff] %v3220
        %4245 = vst [vmem:[%s145 + $0x1fb8] sm:$0xff] %v3221
        %4246 = vst [vmem:[%s145 + $0x1fc0] sm:$0xff] %v3222
        %4247 = vst [vmem:[%s145 + $0x1fc8] sm:$0xff] %v3223
        %4248 = vst [vmem:[%s145 + $0x1fd0] sm:$0xff] %v3224
        %4249 = vst [vmem:[%s145 + $0x1fd8] sm:$0xff] %v3225
        %4250 = vst [vmem:[%s145 + $0x1fe0] sm:$0xff] %v3226
        %4251 = vst [vmem:[%s145 + $0x1fe8] sm:$0xff] %v3227
        %4252 = vst [vmem:[%s145 + $0x1ff0] sm:$0xff] %v3228
        %4253 = vst [vmem:[%s145 + $0x1ff8] sm:$0xff] %v3229
        %s4254 = sand.u32 %s52, 1
        %s4255 = scalar_lea.sflag [#allocation4], %s4254
        %s4256 = sand.u32 %s52, 1
        %s4257 = smul.addr %s4256, 8192
        %s4258 = scalar_lea.vmem [#allocation5], %s4257
        // Predicated region
        $region29: #{tpu_custom_call.1} parent=23 // pred_check
          %p4259 = pneg %p62
        $region30: #{tpu_custom_call.1} parent=23 // pred_check_branch
          %4261 = sbr.rel (%p4259) target = $region32
        $region31: #{tpu_custom_call.1} parent=23 // pred_region
          %s4262 = smul.u32 64, %s18
          %s4263 = ssub.s32 72, %s4262
          %p4264 = scmp.lt.s32.totalorder %s4263, 64
          %s4265 = scalar_select %p4264, %s4263, 64
          %s4266 = smul.u32 8, %s4265
          %s4267 = smul.u32 %s4266, 16
          %s4268 = ssub.s32 8192, %s4267
          %s4269 = sshll.u32 %s4268, 4
          %4270 = vsyncadd %s4255, %s4269
          %p4271 = scmp.ne.s32.totalorder 0, %s4267
          %s4272 = smul.addr %s4262, 16
          %s4273 = smul.addr %s4272, 8
          %s4274 = scalar_lea.hbm %s1, %s4273
          %s4275 = smul.u32 128, %s4265
          %s4276 = sshll.u32 %s4258, 4
          %s4277 = int_to_ptr.vmem [resolvable:$true] %s4276
          %s4278 = sshll.u32 %s4274, 4
          %s4279 = int_to_ptr.hbm [resolvable:$true] %s4278
          %s4280 = sshll.u32 %s4275, 4
          %4284 = dma.vmem_to_hbm [thread:$0]  (%p4271), %s4277, %s4280, %s4279, %s4255, 2048, 2048, 128
        $region32: #{tpu_custom_call.1} parent=23 // pred_fallthru
          _
      $region24: #{tpu_custom_call.1} parent=5 // pred_fallthru
        _
      %p4285 = scmp.le.s32.totalorder 2, %s13
      // Predicated region
      $region33: #{tpu_custom_call.1} parent=5 // pred_check
        %p4286 = pneg %p4285
      $region34: #{tpu_custom_call.1} parent=5 // pred_check_branch
        %4288 = sbr.rel (%p4286) target = $region36
      $region35: #{tpu_custom_call.1} parent=5 // pred_region
        %s4289 = ssub.s32 %s13, 2
        // Predicated region
        $region37: #{tpu_custom_call.1} parent=35 // pred_check
          %p4290 = pneg %p68
        $region38: #{tpu_custom_call.1} parent=35 // pred_check_branch
          %4292 = sbr.rel (%p4290) target = $region40
        $region39: #{tpu_custom_call.1} parent=35 // pred_region
          %s4293 = sand.u32 %s53, 1
          %s4294 = scalar_lea.sflag [#allocation4], %s4293
          %s4295 = sand.u32 %s53, 1
          %s4296 = smul.addr %s4295, 8192
          %s4297 = scalar_lea.vmem [#allocation5], %s4296
          %4299 = dma.done %s4294, 131072
        $region40: #{tpu_custom_call.1} parent=35 // pred_fallthru
          _
      $region36: #{tpu_custom_call.1} parent=5 // pred_fallthru
        _
    $region6: #{tpu_custom_call.1} parent=1 // loop_footer
      %s17 = sadd.s32 1, %s13
    $region7: #{tpu_custom_call.1} parent=1 // loop_footer_branch
      %12 = sbr.rel target = $region3
    $region8: #{tpu_custom_call.1} parent=1 // loop_exit
      _
    %4300 = vsyncpa [#allocation3], 1
    %s4301 = scalar_lea.sflag [#allocation3], 1
    %4302 = vsyncpa %s4301, 1
    %4303 = vsyncpa [#allocation4], 1
    %s4304 = scalar_lea.sflag [#allocation4], 1
    %4305 = vsyncpa %s4304, 1

</llo_original>
